<compile_context>
chip_gen: v5e
topology: v5e:2x2
jax: 0.10.0
libtpu: 0.0.40
codegen_flags: <defaults>
</compile_context>

<pallas_src>
import numpy as np
import jax
import jax.numpy as jnp
from jax import lax
from jax.experimental import pallas as pl
from jax.experimental.pallas import tpu as pltpu

BASEPLANES = 8
NGROUPS = 4
INPUT_CHANNELS = 1
OBS_SPATIAL = 64                          # observation H = W
SPATIAL_SIZE = OBS_SPATIAL // 2           # 32, after F.avg_pool2d(x, 2)
FINAL_COMPRESS = 1.0 / 8.0                # backbone final_spatial_compress
FINAL_CHANNELS = 2 * BASEPLANES           # 16
FINAL_SPATIAL = int(SPATIAL_SIZE * FINAL_COMPRESS)                                  # 4
AFTER_COMPRESSION_FLAT = 2048
NUM_COMPRESSION_CHANNELS = int(round(AFTER_COMPRESSION_FLAT / FINAL_SPATIAL ** 2))  # 128
GN_EPS = 1e-5


# ------------------------- folding helpers (all host-side numpy) -------------------------
def _np_row_select(K, Hin, stride, pad):
    """R[ky, ho, hi] = 1 iff hi == stride*ho + ky - pad and 0 <= hi < Hin."""
    Ho = (Hin + 2 * pad - K) // stride + 1
    R = np.zeros((K, Ho, Hin), np.float32)
    for ky in range(K):
        for ho in range(Ho):
            hi = stride * ho + ky - pad
            if 0 <= hi < Hin:
                R[ky, ho, hi] = 1.0
    return R


def _fold_conv_lanes(w, Win, stride, pad):
    """w: (K, K, Cin, Cout) HWIO -> M: (K, Win*Cin, Wo*Cout) banded lane-GEMM matrices."""
    w = np.asarray(w, np.float32)
    K, _, Cin, Cout = w.shape
    Wo = (Win + 2 * pad - K) // stride + 1
    M = np.zeros((K, Win * Cin, Wo * Cout), np.float32)
    for ky in range(K):
        for wo in range(Wo):
            for kx in range(K):
                wi = stride * wo + kx - pad
                if 0 <= wi < Win:
                    M[ky, wi * Cin:(wi + 1) * Cin, wo * Cout:(wo + 1) * Cout] = w[ky, kx]
    return M


def _np_maxpool_lane_select(Win, C):
    """3x3/s2/p1 lane gather: S[kx, wi*C + c, wo*C + c] = 1 iff wi == 2*wo + kx - 1."""
    Wo = (Win + 2 - 3) // 2 + 1
    S = np.zeros((3, Win * C, Wo * C), np.float32)
    for kx in range(3):
        for wo in range(Wo):
            wi = 2 * wo + kx - 1
            if 0 <= wi < Win:
                for c in range(C):
                    S[kx, wi * C + c, wo * C + c] = 1.0
    return S


def _np_avgpool_mat(Hin):
    """P[i, h] = 0.5 iff h in {2i, 2i+1}; avgpool2x2 = (P @ X) @ P.T."""
    Ho = Hin // 2
    P = np.zeros((Ho, Hin), np.float32)
    P[np.arange(Ho), 2 * np.arange(Ho)] = 0.5
    P[np.arange(Ho), 2 * np.arange(Ho) + 1] = 0.5
    return P


def _edge_masks(B, H):
    """Per-image edge-row masks for the shift-based stride-1 row taps (B*H, 1)."""
    rows = np.arange(B * H)
    top = (rows % H != 0).astype(np.float32).reshape(-1, 1)      # zero the h == 0 rows
    bot = (rows % H != H - 1).astype(np.float32).reshape(-1, 1)  # zero the h == H-1 rows
    return top, bot


def _gn_proj(W, C, G, H):
    """Per-lane group projection (WC, WC): 1/count where lanes share a group (lane = w*C + c)."""
    lanes = np.arange(W * C)
    grp = (lanes % C) // (C // G)
    P = (grp[:, None] == grp[None, :]).astype(np.float32)
    return P / float(H * (W * C // G))


def _gn_rowsum(B, H):
    """kron(I_B, ones(H, H)): per-image row-sum (replicated) matrix for batched GroupNorm."""
    return np.kron(np.eye(B, dtype=np.float32), np.ones((H, H), np.float32))


def _kron_rows(r, B):
    """(K, Ho, Hin) -> block-diagonal (K, B*Ho, B*Hin) batched row selection."""
    K, Ho, Hin = r.shape
    out = np.zeros((K, B * Ho, B * Hin), np.float32)
    for b in range(B):
        out[:, b * Ho:(b + 1) * Ho, b * Hin:(b + 1) * Hin] = r
    return out


def build_folded(params, B):
    """One-time folding of module parameters into GEMM-ready constants for batch block B."""
    c1, c2, cc = BASEPLANES, 2 * BASEPLANES, NUM_COMPRESSION_CHANNELS
    bf = lambda a: jnp.asarray(a, jnp.bfloat16)
    f32 = lambda a: jnp.asarray(a, jnp.float32)

    def lane_affine(g, b_, W):
        return (f32(np.tile(np.asarray(g, np.float32), W)[None, :]),
                f32(np.tile(np.asarray(b_, np.float32), W)[None, :]))

    # ---- stem: avg-pool 2x2 folded into conv7x7/s2/p3 (exact, both linear) ----
    Ph = _np_avgpool_mat(OBS_SPATIAL)                           # (32, 64)
    stem_R = _np_row_select(7, SPATIAL_SIZE, 2, 3)              # (7, 16, 32) on pooled rows
    stem_Rp = np.einsum('koh,hi->koi', stem_R, Ph)              # (7, 16, 64) on raw rows
    stem_M = _fold_conv_lanes(params['conv1_w'], SPATIAL_SIZE, 2, 3)   # (7, 32, 128)
    stem_Mp = np.einsum('ip,kpo->kio', Ph.T, stem_M)            # (7, 64, 128) on raw lanes
    stem_r = bf(_kron_rows(stem_Rp, B))                         # (7, B*16, B*64)
    stem_m = bf(stem_Mp.reshape(7 * 64, 16 * c1))               # (448, 128) ky-stacked
    gn1_g, gn1_b = lane_affine(params['gn1_g'], params['gn1_b'], 16)
    p_stem = f32(_gn_proj(16, c1, NGROUPS, 16))                 # (128, 128)
    a16 = f32(_gn_rowsum(B, 16))
    # ---- max-pool 3x3/s2/p1 (separable row/lane gathers) ----
    mp_r = bf(_kron_rows(_np_row_select(3, 16, 2, 1), B))       # (3, B*8, B*16)
    mp_s = bf(_np_maxpool_lane_select(16, c1))                  # (3, 128, 64)
    # ---- basic block 1 (stride 1, identity shortcut) ----
    mt8, mb8 = _edge_masks(B, 8)
    b1c1_m = bf(_fold_conv_lanes(params['b1c1_w'], 8, 1, 1).reshape(3 * 64, 64))
    b1g1_g, b1g1_b = lane_affine(params['b1g1_g'], params['b1g1_b'], 8)
    b1c2_m = bf(_fold_conv_lanes(params['b1c2_w'], 8, 1, 1).reshape(3 * 64, 64))
    b1g2_g, b1g2_b = lane_affine(params['b1g2_g'], params['b1g2_b'], 8)
    p64_c8 = f32(_gn_proj(8, c1, NGROUPS, 8))                   # (64, 64)
    a8 = f32(_gn_rowsum(B, 8))
    # ---- basic block 2 (stride 2, 1x1/s2 downsample shortcut) ----
    ds_r = bf(_kron_rows(_np_row_select(1, 8, 2, 0), B))        # (1, B*4, B*8)
    ds_m = bf(_fold_conv_lanes(params['b2ds_w'], 8, 2, 0).reshape(64, 64))
    dsg_g, dsg_b = lane_affine(params['b2dsg_g'], params['b2dsg_b'], 4)
    b2c1_r = bf(_kron_rows(_np_row_select(3, 8, 2, 1), B))      # (3, B*4, B*8)
    b2c1_m = bf(_fold_conv_lanes(params['b2c1_w'], 8, 2, 1).reshape(3 * 64, 64))
    b2g1_g, b2g1_b = lane_affine(params['b2g1_g'], params['b2g1_b'], 4)
    mt4, mb4 = _edge_masks(B, 4)
    b2c2_m = bf(_fold_conv_lanes(params['b2c2_w'], 4, 1, 1).reshape(3 * 64, 64))
    b2g2_g, b2g2_b = lane_affine(params['b2g2_g'], params['b2g2_b'], 4)
    p64_c16 = f32(_gn_proj(4, c2, NGROUPS, 4))                  # (64, 64)
    a4 = f32(_gn_rowsum(B, 4))
    # ---- compression head: conv3x3/p1 (16 -> 128) + GN(1, 128) + ReLU ----
    comp_m = bf(_fold_conv_lanes(params['comp_w'], 4, 1, 1).reshape(3 * 64, 4 * cc))
    compg_g, compg_b = lane_affine(params['compg_g'], params['compg_b'], 4)

    return (stem_r, stem_m, gn1_g, gn1_b, p_stem, a16,
            mp_r, mp_s,
            bf(mt8), bf(mb8), b1c1_m, b1g1_g, b1g1_b, b1c2_m, b1g2_g, b1g2_b, p64_c8, a8,
            ds_r, ds_m, dsg_g, dsg_b, b2c1_r, b2c1_m, b2g1_g, b2g1_b,
            bf(mt4), bf(mb4), b2c2_m, b2g2_g, b2g2_b, p64_c16, a4,
            comp_m, compg_g, compg_b)


# ----------------------------------- in-kernel helpers -----------------------------------
def _rows_gather(x_bf16, r_ref):
    """Row taps via block-diagonal 0/1(0.5) selection matmuls (stride-2 / stem)."""
    return [jnp.dot(r_ref[k], x_bf16, preferred_element_type=jnp.float32).astype(jnp.bfloat16)
            for k in range(r_ref.shape[0])]


def _rows_shift(x_bf16, mt_ref, mb_ref):
    """Row taps for stride-1/pad-1 K=3 convs via sublane shifts + per-image edge masks."""
    up = jnp.roll(x_bf16, 1, axis=0) * mt_ref[...]    # ky = 0: row h reads h-1 (0 at h == 0)
    dn = jnp.roll(x_bf16, -1, axis=0) * mb_ref[...]   # ky = 2: row h reads h+1 (0 at h == H-1)
    return [up, x_bf16, dn]


def _conv_lanes(pieces, m_ref):
    """Fused deep conv GEMM: lane-concat the ky pieces, single MXU contraction with vstacked M."""
    lhs = pieces[0] if len(pieces) == 1 else jnp.concatenate(pieces, axis=1)
    return jnp.dot(lhs, m_ref[...], preferred_element_type=jnp.float32)


def _maxpool(x_bf16, r_ref, s_ref):
    """Separable 3x3/s2/p1 max-pool (inputs >= 0, so zero padding == -inf padding)."""
    rows = None
    for ky in range(3):
        t = jnp.dot(r_ref[ky], x_bf16, preferred_element_type=jnp.float32)
        rows = t if rows is None else jnp.maximum(rows, t)
    rows = rows.astype(jnp.bfloat16)
    out = None
    for kx in range(3):
        t = jnp.dot(rows, s_ref[kx], preferred_element_type=jnp.float32)
        out = t if out is None else jnp.maximum(out, t)
    return out


def _group_norm(x, a_ref, p_ref, g_ref, b_ref, inv_cnt=None, residual=None, relu=True):
    """Batched, per-image GroupNorm on the folded (B*H, W*C) layout (all math in f32).

    a_ref: kron(I_B, ones(H,H)) per-image row-sum matrix.
    p_ref: per-lane group projection (already scaled by 1/count), or None for G == 1
           (then inv_cnt = 1 / (H * W * C) and the lane mean is a plain reduction).
    """
    rowsum = jnp.dot(a_ref[...], x, preferred_element_type=jnp.float32)
    if p_ref is None:
        mean = jnp.sum(rowsum, axis=1, keepdims=True) * inv_cnt
    else:
        mean = jnp.dot(rowsum, p_ref[...], preferred_element_type=jnp.float32)
    d = x - mean
    rowsum2 = jnp.dot(a_ref[...], d * d, preferred_element_type=jnp.float32)
    if p_ref is None:
        var = jnp.sum(rowsum2, axis=1, keepdims=True) * inv_cnt
    else:
        var = jnp.dot(rowsum2, p_ref[...], preferred_element_type=jnp.float32)
    y = d * lax.rsqrt(var + GN_EPS) * g_ref[...] + b_ref[...]
    if residual is not None:
        y = y + residual
    if relu:
        y = jnp.maximum(y, 0.0)
    return y


# -------------------------------- fused forward kernel -----------------------------------
def _fused_kernel(
        x_ref,
        # stem
        stem_r_ref, stem_m_ref, gn1_g_ref, gn1_b_ref, p_stem_ref, a16_ref,
        # max-pool
        mp_r_ref, mp_s_ref,
        # basic block 1
        mt8_ref, mb8_ref, b1c1_m_ref, b1g1_g_ref, b1g1_b_ref,
        b1c2_m_ref, b1g2_g_ref, b1g2_b_ref, p64c8_ref, a8_ref,
        # basic block 2
        ds_r_ref, ds_m_ref, dsg_g_ref, dsg_b_ref,
        b2c1_r_ref, b2c1_m_ref, b2g1_g_ref, b2g1_b_ref,
        mt4_ref, mb4_ref, b2c2_m_ref, b2g2_g_ref, b2g2_b_ref, p64c16_ref, a4_ref,
        # compression
        comp_m_ref, compg_g_ref, compg_b_ref,
        # output
        o_ref):
    # B images stacked along rows; torch.cat of one input + empty Sequential = identity.
    x_raw = x_ref[...].astype(jnp.bfloat16)                       # (B*64, 64) raw images
    # ---- stem: (avg-pool 2x2 folded) conv7x7/s2/p3 (1->8) + GN(4,8) + ReLU -> (B*16, 128) ----
    x = _conv_lanes(_rows_gather(x_raw, stem_r_ref), stem_m_ref)
    x = _group_norm(x, a16_ref, p_stem_ref, gn1_g_ref, gn1_b_ref)
    # ---- max-pool 3x3/s2/p1 -> (B*8, 64) ----
    x = _maxpool(x.astype(jnp.bfloat16), mp_r_ref, mp_s_ref)
    # ---- basic block 1 (identity shortcut, stride 1) ----
    res = x
    y = _conv_lanes(_rows_shift(x.astype(jnp.bfloat16), mt8_ref, mb8_ref), b1c1_m_ref)
    y = _group_norm(y, a8_ref, p64c8_ref, b1g1_g_ref, b1g1_b_ref)
    y = _conv_lanes(_rows_shift(y.astype(jnp.bfloat16), mt8_ref, mb8_ref), b1c2_m_ref)
    x = _group_norm(y, a8_ref, p64c8_ref, b1g2_g_ref, b1g2_b_ref, residual=res)
    # ---- basic block 2 (stride 2, 1x1/s2 downsample shortcut) -> (B*4, 64) ----
    xb = x.astype(jnp.bfloat16)
    rs = _conv_lanes(_rows_gather(xb, ds_r_ref), ds_m_ref)
    rs = _group_norm(rs, a4_ref, p64c16_ref, dsg_g_ref, dsg_b_ref, relu=False)
    y = _conv_lanes(_rows_gather(xb, b2c1_r_ref), b2c1_m_ref)
    y = _group_norm(y, a4_ref, p64c16_ref, b2g1_g_ref, b2g1_b_ref)
    y = _conv_lanes(_rows_shift(y.astype(jnp.bfloat16), mt4_ref, mb4_ref), b2c2_m_ref)
    x = _group_norm(y, a4_ref, p64c16_ref, b2g2_g_ref, b2g2_b_ref, residual=rs)
    # ---- compression: conv3x3/p1 (16 -> 128) + GN(1, 128) + ReLU -> (B*4, 512) ----
    y = _conv_lanes(_rows_shift(x.astype(jnp.bfloat16), mt4_ref, mb4_ref), comp_m_ref)
    y = _group_norm(y, a4_ref, None, compg_g_ref, compg_b_ref,
                    inv_cnt=1.0 / (FINAL_SPATIAL * FINAL_SPATIAL * NUM_COMPRESSION_CHANNELS))
    o_ref[...] = y.astype(o_ref.dtype)                            # lane+sublane dense slab


# -------------------------------------- forward -------------------------------------------
def resnet_encoder_forward(observations, folded, batch_block=2):
    """observations: (N, 1, 64, 64). Returns (N, 128, 4, 4) NCHW, like the PyTorch module.

    `batch_block` = images per grid step (static). Use ~16 on v5e and ~32 on v6e/v7x so the
    deepest-stage GEMMs present 128/256 rows; the whole working set stays well under VMEM.
    """
    N = observations.shape[0]
    B = int(batch_block)
    assert observations.shape[1:] == (INPUT_CHANNELS, OBS_SPATIAL, OBS_SPATIAL)
    x = observations.reshape(N, OBS_SPATIAL, OBS_SPATIAL).astype(jnp.float32)
    pad = (-N) % B
    if pad:
        x = jnp.concatenate([x, jnp.zeros((pad, OBS_SPATIAL, OBS_SPATIAL), jnp.float32)], 0)
    npad = N + pad
    x = x.reshape(npad * OBS_SPATIAL, OBS_SPATIAL)                # batch stacked along rows

    out_lanes = FINAL_SPATIAL * NUM_COMPRESSION_CHANNELS          # 512 lanes (w*C + c)
    in_specs = [pl.BlockSpec((B * OBS_SPATIAL, OBS_SPATIAL), lambda i: (i, 0))]
    in_specs += [pl.BlockSpec(tuple(a.shape), lambda i, _nd=a.ndim: (0,) * _nd) for a in folded]

    out = pl.pallas_call(
        _fused_kernel,
        out_shape=jax.ShapeDtypeStruct((npad * FINAL_SPATIAL, out_lanes), jnp.float32),
        grid=(npad // B,),
        in_specs=in_specs,
        out_specs=pl.BlockSpec((B * FINAL_SPATIAL, out_lanes), lambda i: (i, 0)),
        # On v7x the batch axis could be pltpu.CORE_PARALLEL to shard across both TensorCores.
        compiler_params=pltpu.CompilerParams(dimension_semantics=("parallel",)),
    )(x, *folded)

    out = out.reshape(npad, FINAL_SPATIAL, FINAL_SPATIAL, NUM_COMPRESSION_CHANNELS)[:N]
    # NHWC -> NCHW to match the PyTorch module; consumers could instead fold this permutation
    # into the following Linear's weight and take the flat (N, 2048) NHWC output directly.
    return jnp.transpose(out, (0, 3, 1, 2))


# ------------------------------------- parameters ------------------------------------------
def _kaiming_conv(key, k, cin, cout):
    # kaiming_normal with relu gain: std = sqrt(2 / fan_in), fan_in = k*k*cin.  HWIO layout.
    std = (2.0 / (k * k * cin)) ** 0.5
    return jax.random.normal(key, (k, k, cin, cout), jnp.float32) * std


def init_params(key):
    c1, c2, cc = BASEPLANES, 2 * BASEPLANES, NUM_COMPRESSION_CHANNELS
    ks = jax.random.split(key, 7)
    ones = lambda c: jnp.ones((c,), jnp.float32)
    zeros = lambda c: jnp.zeros((c,), jnp.float32)
    return {
        # stem
        "conv1_w": _kaiming_conv(ks[0], 7, INPUT_CHANNELS, c1),
        "gn1_g": ones(c1), "gn1_b": zeros(c1),
        # basic block 1 (stride 1)
        "b1c1_w": _kaiming_conv(ks[1], 3, c1, c1), "b1g1_g": ones(c1), "b1g1_b": zeros(c1),
        "b1c2_w": _kaiming_conv(ks[2], 3, c1, c1), "b1g2_g": ones(c1), "b1g2_b": zeros(c1),
        # basic block 2 (stride 2, with downsample)
        "b2c1_w": _kaiming_conv(ks[3], 3, c1, c2), "b2g1_g": ones(c2), "b2g1_b": zeros(c2),
        "b2c2_w": _kaiming_conv(ks[4], 3, c2, c2), "b2g2_g": ones(c2), "b2g2_b": zeros(c2),
        "b2ds_w": _kaiming_conv(ks[5], 1, c1, c2), "b2dsg_g": ones(c2), "b2dsg_b": zeros(c2),
        # compression head
        "comp_w": _kaiming_conv(ks[6], 3, c2, cc), "compg_g": ones(cc), "compg_b": zeros(cc),
    }


# ---------------------------------------- main ---------------------------------------------
if __name__ == "__main__":
    key = jax.random.PRNGKey(0)
    k_obs, k_par = jax.random.split(key)
    observations = jax.random.uniform(k_obs, (2, INPUT_CHANNELS, OBS_SPATIAL, OBS_SPATIAL),
                                      jnp.float32)
    params = init_params(k_par)

    B = 2                                   # images per grid step (small demo batch)
    folded = build_folded(params, B)        # one-time weight/index folding (off the hot path)

    fwd = jax.jit(resnet_encoder_forward, static_argnames=("batch_block",))
    out = fwd(observations, folded, batch_block=B)
    out = jax.block_until_ready(out)

    expected = (2, NUM_COMPRESSION_CHANNELS, FINAL_SPATIAL, FINAL_SPATIAL)  # (2, 128, 4, 4)
    assert out.shape == expected, (out.shape, expected)
    assert bool(jnp.all(jnp.isfinite(out)))
    print("KERNEL_OK")
</pallas_src>

<mosaic_0001>
module attributes {stable_mosaic.version = 11 : i64} {
  func.func @_fused_kernel(%arg0: i32, %arg1: memref<128x64xf32, #tpu.memory_space<vmem>>, %arg2: memref<7x32x128xbf16, #tpu.memory_space<vmem>>, %arg3: memref<448x128xbf16, #tpu.memory_space<vmem>>, %arg4: memref<1x128xf32, #tpu.memory_space<vmem>>, %arg5: memref<1x128xf32, #tpu.memory_space<vmem>>, %arg6: memref<128x128xf32, #tpu.memory_space<vmem>>, %arg7: memref<32x32xf32, #tpu.memory_space<vmem>>, %arg8: memref<3x16x32xbf16, #tpu.memory_space<vmem>>, %arg9: memref<3x128x64xbf16, #tpu.memory_space<vmem>>, %arg10: memref<16x1xbf16, #tpu.memory_space<vmem>>, %arg11: memref<16x1xbf16, #tpu.memory_space<vmem>>, %arg12: memref<192x64xbf16, #tpu.memory_space<vmem>>, %arg13: memref<1x64xf32, #tpu.memory_space<vmem>>, %arg14: memref<1x64xf32, #tpu.memory_space<vmem>>, %arg15: memref<192x64xbf16, #tpu.memory_space<vmem>>, %arg16: memref<1x64xf32, #tpu.memory_space<vmem>>, %arg17: memref<1x64xf32, #tpu.memory_space<vmem>>, %arg18: memref<64x64xf32, #tpu.memory_space<vmem>>, %arg19: memref<16x16xf32, #tpu.memory_space<vmem>>, %arg20: memref<1x8x16xbf16, #tpu.memory_space<vmem>>, %arg21: memref<64x64xbf16, #tpu.memory_space<vmem>>, %arg22: memref<1x64xf32, #tpu.memory_space<vmem>>, %arg23: memref<1x64xf32, #tpu.memory_space<vmem>>, %arg24: memref<3x8x16xbf16, #tpu.memory_space<vmem>>, %arg25: memref<192x64xbf16, #tpu.memory_space<vmem>>, %arg26: memref<1x64xf32, #tpu.memory_space<vmem>>, %arg27: memref<1x64xf32, #tpu.memory_space<vmem>>, %arg28: memref<8x1xbf16, #tpu.memory_space<vmem>>, %arg29: memref<8x1xbf16, #tpu.memory_space<vmem>>, %arg30: memref<192x64xbf16, #tpu.memory_space<vmem>>, %arg31: memref<1x64xf32, #tpu.memory_space<vmem>>, %arg32: memref<1x64xf32, #tpu.memory_space<vmem>>, %arg33: memref<64x64xf32, #tpu.memory_space<vmem>>, %arg34: memref<8x8xf32, #tpu.memory_space<vmem>>, %arg35: memref<192x512xbf16, #tpu.memory_space<vmem>>, %arg36: memref<1x512xf32, #tpu.memory_space<vmem>>, %arg37: memref<1x512xf32, #tpu.memory_space<vmem>>, %arg38: memref<8x512xf32, #tpu.memory_space<vmem>>) attributes {dimension_semantics = [#tpu.dimension_semantics<parallel>], iteration_bounds = array<i64: 1>, scalar_prefetch = 0 : i64, scratch_operands = 0 : i64, tpu.core_type = #tpu.core_type<tc>, window_params = [{transform_indices = @transform_0, window_bounds = array<i64: 128, 64>}, {pipeline_mode = #tpu.pipeline_mode<synchronous>, transform_indices = @transform_1, window_bounds = array<i64: 7, 32, 128>}, {pipeline_mode = #tpu.pipeline_mode<synchronous>, transform_indices = @transform_2, window_bounds = array<i64: 448, 128>}, {pipeline_mode = #tpu.pipeline_mode<synchronous>, transform_indices = @transform_3, window_bounds = array<i64: 1, 128>}, {pipeline_mode = #tpu.pipeline_mode<synchronous>, transform_indices = @transform_4, window_bounds = array<i64: 1, 128>}, {pipeline_mode = #tpu.pipeline_mode<synchronous>, transform_indices = @transform_5, window_bounds = array<i64: 128, 128>}, {pipeline_mode = #tpu.pipeline_mode<synchronous>, transform_indices = @transform_6, window_bounds = array<i64: 32, 32>}, {pipeline_mode = #tpu.pipeline_mode<synchronous>, transform_indices = @transform_7, window_bounds = array<i64: 3, 16, 32>}, {pipeline_mode = #tpu.pipeline_mode<synchronous>, transform_indices = @transform_8, window_bounds = array<i64: 3, 128, 64>}, {pipeline_mode = #tpu.pipeline_mode<synchronous>, transform_indices = @transform_9, window_bounds = array<i64: 16, 1>}, {pipeline_mode = #tpu.pipeline_mode<synchronous>, transform_indices = @transform_10, window_bounds = array<i64: 16, 1>}, {pipeline_mode = #tpu.pipeline_mode<synchronous>, transform_indices = @transform_11, window_bounds = array<i64: 192, 64>}, {pipeline_mode = #tpu.pipeline_mode<synchronous>, transform_indices = @transform_12, window_bounds = array<i64: 1, 64>}, {pipeline_mode = #tpu.pipeline_mode<synchronous>, transform_indices = @transform_13, window_bounds = array<i64: 1, 64>}, {pipeline_mode = #tpu.pipeline_mode<synchronous>, transform_indices = @transform_14, window_bounds = array<i64: 192, 64>}, {pipeline_mode = #tpu.pipeline_mode<synchronous>, transform_indices = @transform_15, window_bounds = array<i64: 1, 64>}, {pipeline_mode = #tpu.pipeline_mode<synchronous>, transform_indices = @transform_16, window_bounds = array<i64: 1, 64>}, {pipeline_mode = #tpu.pipeline_mode<synchronous>, transform_indices = @transform_17, window_bounds = array<i64: 64, 64>}, {pipeline_mode = #tpu.pipeline_mode<synchronous>, transform_indices = @transform_18, window_bounds = array<i64: 16, 16>}, {pipeline_mode = #tpu.pipeline_mode<synchronous>, transform_indices = @transform_19, window_bounds = array<i64: 1, 8, 16>}, {pipeline_mode = #tpu.pipeline_mode<synchronous>, transform_indices = @transform_20, window_bounds = array<i64: 64, 64>}, {pipeline_mode = #tpu.pipeline_mode<synchronous>, transform_indices = @transform_21, window_bounds = array<i64: 1, 64>}, {pipeline_mode = #tpu.pipeline_mode<synchronous>, transform_indices = @transform_22, window_bounds = array<i64: 1, 64>}, {pipeline_mode = #tpu.pipeline_mode<synchronous>, transform_indices = @transform_23, window_bounds = array<i64: 3, 8, 16>}, {pipeline_mode = #tpu.pipeline_mode<synchronous>, transform_indices = @transform_24, window_bounds = array<i64: 192, 64>}, {pipeline_mode = #tpu.pipeline_mode<synchronous>, transform_indices = @transform_25, window_bounds = array<i64: 1, 64>}, {pipeline_mode = #tpu.pipeline_mode<synchronous>, transform_indices = @transform_26, window_bounds = array<i64: 1, 64>}, {pipeline_mode = #tpu.pipeline_mode<synchronous>, transform_indices = @transform_27, window_bounds = array<i64: 8, 1>}, {pipeline_mode = #tpu.pipeline_mode<synchronous>, transform_indices = @transform_28, window_bounds = array<i64: 8, 1>}, {pipeline_mode = #tpu.pipeline_mode<synchronous>, transform_indices = @transform_29, window_bounds = array<i64: 192, 64>}, {pipeline_mode = #tpu.pipeline_mode<synchronous>, transform_indices = @transform_30, window_bounds = array<i64: 1, 64>}, {pipeline_mode = #tpu.pipeline_mode<synchronous>, transform_indices = @transform_31, window_bounds = array<i64: 1, 64>}, {pipeline_mode = #tpu.pipeline_mode<synchronous>, transform_indices = @transform_32, window_bounds = array<i64: 64, 64>}, {pipeline_mode = #tpu.pipeline_mode<synchronous>, transform_indices = @transform_33, window_bounds = array<i64: 8, 8>}, {pipeline_mode = #tpu.pipeline_mode<synchronous>, transform_indices = @transform_34, window_bounds = array<i64: 192, 512>}, {pipeline_mode = #tpu.pipeline_mode<synchronous>, transform_indices = @transform_35, window_bounds = array<i64: 1, 512>}, {pipeline_mode = #tpu.pipeline_mode<synchronous>, transform_indices = @transform_36, window_bounds = array<i64: 1, 512>}, {transform_indices = @transform_37, window_bounds = array<i64: 8, 512>}]} {
    %c0 = arith.constant 0 : index
    %c0_0 = arith.constant 0 : index
    %0 = vector.load %arg1[%c0, %c0_0] : memref<128x64xf32, #tpu.memory_space<vmem>>, vector<128x64xf32>
    %1 = arith.truncf %0 : vector<128x64xf32> to vector<128x64xbf16>
    %c0_1 = arith.constant 0 : index
    %c0_2 = arith.constant 0 : index
    %c0_3 = arith.constant 0 : index
    %2 = vector.load %arg2[%c0_1, %c0_2, %c0_3] : memref<7x32x128xbf16, #tpu.memory_space<vmem>>, vector<1x32x128xbf16>
    %3 = vector.shape_cast %2 : vector<1x32x128xbf16> to vector<32x128xbf16>
    %cst = arith.constant dense<0.000000e+00> : vector<32x64xf32>
    %4 = tpu.matmul %3, %1, %cst {dimension_numbers = #tpu.dot_dimension_numbers<[1], [0], [0], [1], [0, 0, 1, 1], [], []>} : vector<32x128xbf16>, vector<128x64xbf16>, vector<32x64xf32> -> vector<32x64xf32>
    %5 = arith.truncf %4 : vector<32x64xf32> to vector<32x64xbf16>
    %c1 = arith.constant 1 : index
    %c0_4 = arith.constant 0 : index
    %c0_5 = arith.constant 0 : index
    %6 = vector.load %arg2[%c1, %c0_4, %c0_5] : memref<7x32x128xbf16, #tpu.memory_space<vmem>>, vector<1x32x128xbf16>
    %7 = vector.shape_cast %6 : vector<1x32x128xbf16> to vector<32x128xbf16>
    %cst_6 = arith.constant dense<0.000000e+00> : vector<32x64xf32>
    %8 = tpu.matmul %7, %1, %cst_6 {dimension_numbers = #tpu.dot_dimension_numbers<[1], [0], [0], [1], [0, 0, 1, 1], [], []>} : vector<32x128xbf16>, vector<128x64xbf16>, vector<32x64xf32> -> vector<32x64xf32>
    %9 = arith.truncf %8 : vector<32x64xf32> to vector<32x64xbf16>
    %c2 = arith.constant 2 : index
    %c0_7 = arith.constant 0 : index
    %c0_8 = arith.constant 0 : index
    %10 = vector.load %arg2[%c2, %c0_7, %c0_8] : memref<7x32x128xbf16, #tpu.memory_space<vmem>>, vector<1x32x128xbf16>
    %11 = vector.shape_cast %10 : vector<1x32x128xbf16> to vector<32x128xbf16>
    %cst_9 = arith.constant dense<0.000000e+00> : vector<32x64xf32>
    %12 = tpu.matmul %11, %1, %cst_9 {dimension_numbers = #tpu.dot_dimension_numbers<[1], [0], [0], [1], [0, 0, 1, 1], [], []>} : vector<32x128xbf16>, vector<128x64xbf16>, vector<32x64xf32> -> vector<32x64xf32>
    %13 = arith.truncf %12 : vector<32x64xf32> to vector<32x64xbf16>
    %c3 = arith.constant 3 : index
    %c0_10 = arith.constant 0 : index
    %c0_11 = arith.constant 0 : index
    %14 = vector.load %arg2[%c3, %c0_10, %c0_11] : memref<7x32x128xbf16, #tpu.memory_space<vmem>>, vector<1x32x128xbf16>
    %15 = vector.shape_cast %14 : vector<1x32x128xbf16> to vector<32x128xbf16>
    %cst_12 = arith.constant dense<0.000000e+00> : vector<32x64xf32>
    %16 = tpu.matmul %15, %1, %cst_12 {dimension_numbers = #tpu.dot_dimension_numbers<[1], [0], [0], [1], [0, 0, 1, 1], [], []>} : vector<32x128xbf16>, vector<128x64xbf16>, vector<32x64xf32> -> vector<32x64xf32>
    %17 = arith.truncf %16 : vector<32x64xf32> to vector<32x64xbf16>
    %c4 = arith.constant 4 : index
    %c0_13 = arith.constant 0 : index
    %c0_14 = arith.constant 0 : index
    %18 = vector.load %arg2[%c4, %c0_13, %c0_14] : memref<7x32x128xbf16, #tpu.memory_space<vmem>>, vector<1x32x128xbf16>
    %19 = vector.shape_cast %18 : vector<1x32x128xbf16> to vector<32x128xbf16>
    %cst_15 = arith.constant dense<0.000000e+00> : vector<32x64xf32>
    %20 = tpu.matmul %19, %1, %cst_15 {dimension_numbers = #tpu.dot_dimension_numbers<[1], [0], [0], [1], [0, 0, 1, 1], [], []>} : vector<32x128xbf16>, vector<128x64xbf16>, vector<32x64xf32> -> vector<32x64xf32>
    %21 = arith.truncf %20 : vector<32x64xf32> to vector<32x64xbf16>
    %c5 = arith.constant 5 : index
    %c0_16 = arith.constant 0 : index
    %c0_17 = arith.constant 0 : index
    %22 = vector.load %arg2[%c5, %c0_16, %c0_17] : memref<7x32x128xbf16, #tpu.memory_space<vmem>>, vector<1x32x128xbf16>
    %23 = vector.shape_cast %22 : vector<1x32x128xbf16> to vector<32x128xbf16>
    %cst_18 = arith.constant dense<0.000000e+00> : vector<32x64xf32>
    %24 = tpu.matmul %23, %1, %cst_18 {dimension_numbers = #tpu.dot_dimension_numbers<[1], [0], [0], [1], [0, 0, 1, 1], [], []>} : vector<32x128xbf16>, vector<128x64xbf16>, vector<32x64xf32> -> vector<32x64xf32>
    %25 = arith.truncf %24 : vector<32x64xf32> to vector<32x64xbf16>
    %c6 = arith.constant 6 : index
    %c0_19 = arith.constant 0 : index
    %c0_20 = arith.constant 0 : index
    %26 = vector.load %arg2[%c6, %c0_19, %c0_20] : memref<7x32x128xbf16, #tpu.memory_space<vmem>>, vector<1x32x128xbf16>
    %27 = vector.shape_cast %26 : vector<1x32x128xbf16> to vector<32x128xbf16>
    %cst_21 = arith.constant dense<0.000000e+00> : vector<32x64xf32>
    %28 = tpu.matmul %27, %1, %cst_21 {dimension_numbers = #tpu.dot_dimension_numbers<[1], [0], [0], [1], [0, 0, 1, 1], [], []>} : vector<32x128xbf16>, vector<128x64xbf16>, vector<32x64xf32> -> vector<32x64xf32>
    %29 = arith.truncf %28 : vector<32x64xf32> to vector<32x64xbf16>
    %30 = tpu.concatenate %5, %9, %13, %17, %21, %25, %29 in 1 : vector<32x64xbf16>, vector<32x64xbf16>, vector<32x64xbf16>, vector<32x64xbf16>, vector<32x64xbf16>, vector<32x64xbf16>, vector<32x64xbf16> -> vector<32x448xbf16>
    %c0_22 = arith.constant 0 : index
    %c0_23 = arith.constant 0 : index
    %31 = vector.load %arg3[%c0_22, %c0_23] : memref<448x128xbf16, #tpu.memory_space<vmem>>, vector<448x128xbf16>
    %cst_24 = arith.constant dense<0.000000e+00> : vector<32x128xf32>
    %32 = tpu.matmul %30, %31, %cst_24 {dimension_numbers = #tpu.dot_dimension_numbers<[1], [0], [0], [1], [0, 0, 1, 1], [], []>} : vector<32x448xbf16>, vector<448x128xbf16>, vector<32x128xf32> -> vector<32x128xf32>
    %c0_25 = arith.constant 0 : index
    %c0_26 = arith.constant 0 : index
    %33 = vector.load %arg7[%c0_25, %c0_26] : memref<32x32xf32, #tpu.memory_space<vmem>>, vector<32x32xf32>
    %cst_27 = arith.constant dense<0.000000e+00> : vector<32x128xf32>
    %34 = tpu.matmul %33, %32, %cst_27 {dimension_numbers = #tpu.dot_dimension_numbers<[1], [0], [0], [1], [0, 0, 1, 1], [], []>} : vector<32x32xf32>, vector<32x128xf32>, vector<32x128xf32> -> vector<32x128xf32>
    %c0_28 = arith.constant 0 : index
    %c0_29 = arith.constant 0 : index
    %35 = vector.load %arg6[%c0_28, %c0_29] : memref<128x128xf32, #tpu.memory_space<vmem>>, vector<128x128xf32>
    %cst_30 = arith.constant dense<0.000000e+00> : vector<32x128xf32>
    %36 = tpu.matmul %34, %35, %cst_30 {dimension_numbers = #tpu.dot_dimension_numbers<[1], [0], [0], [1], [0, 0, 1, 1], [], []>} : vector<32x128xf32>, vector<128x128xf32>, vector<32x128xf32> -> vector<32x128xf32>
    %37 = arith.subf %32, %36 : vector<32x128xf32>
    %c0_31 = arith.constant 0 : index
    %c0_32 = arith.constant 0 : index
    %38 = vector.load %arg7[%c0_31, %c0_32] : memref<32x32xf32, #tpu.memory_space<vmem>>, vector<32x32xf32>
    %39 = arith.mulf %37, %37 : vector<32x128xf32>
    %cst_33 = arith.constant dense<0.000000e+00> : vector<32x128xf32>
    %40 = tpu.matmul %38, %39, %cst_33 {dimension_numbers = #tpu.dot_dimension_numbers<[1], [0], [0], [1], [0, 0, 1, 1], [], []>} : vector<32x32xf32>, vector<32x128xf32>, vector<32x128xf32> -> vector<32x128xf32>
    %c0_34 = arith.constant 0 : index
    %c0_35 = arith.constant 0 : index
    %41 = vector.load %arg6[%c0_34, %c0_35] : memref<128x128xf32, #tpu.memory_space<vmem>>, vector<128x128xf32>
    %cst_36 = arith.constant dense<0.000000e+00> : vector<32x128xf32>
    %42 = tpu.matmul %40, %41, %cst_36 {dimension_numbers = #tpu.dot_dimension_numbers<[1], [0], [0], [1], [0, 0, 1, 1], [], []>} : vector<32x128xf32>, vector<128x128xf32>, vector<32x128xf32> -> vector<32x128xf32>
    %cst_37 = arith.constant 9.99999974E-6 : f32
    %43 = vector.broadcast %cst_37 : f32 to vector<32x128xf32>
    %44 = arith.addf %42, %43 : vector<32x128xf32>
    %45 = math.rsqrt %44 : vector<32x128xf32>
    %46 = arith.mulf %37, %45 : vector<32x128xf32>
    %c0_38 = arith.constant 0 : index
    %c0_39 = arith.constant 0 : index
    %47 = vector.load %arg4[%c0_38, %c0_39] : memref<1x128xf32, #tpu.memory_space<vmem>>, vector<1x128xf32>
    %48 = vector.broadcast %47 : vector<1x128xf32> to vector<32x128xf32>
    %49 = arith.mulf %46, %48 : vector<32x128xf32>
    %c0_40 = arith.constant 0 : index
    %c0_41 = arith.constant 0 : index
    %50 = vector.load %arg5[%c0_40, %c0_41] : memref<1x128xf32, #tpu.memory_space<vmem>>, vector<1x128xf32>
    %51 = vector.broadcast %50 : vector<1x128xf32> to vector<32x128xf32>
    %52 = arith.addf %49, %51 : vector<32x128xf32>
    %cst_42 = arith.constant 0.000000e+00 : f32
    %53 = vector.broadcast %cst_42 : f32 to vector<32x128xf32>
    %54 = arith.maximumf %52, %53 : vector<32x128xf32>
    %55 = arith.truncf %54 : vector<32x128xf32> to vector<32x128xbf16>
    %c0_43 = arith.constant 0 : index
    %c0_44 = arith.constant 0 : index
    %c0_45 = arith.constant 0 : index
    %56 = vector.load %arg8[%c0_43, %c0_44, %c0_45] : memref<3x16x32xbf16, #tpu.memory_space<vmem>>, vector<1x16x32xbf16>
    %57 = vector.shape_cast %56 : vector<1x16x32xbf16> to vector<16x32xbf16>
    %cst_46 = arith.constant dense<0.000000e+00> : vector<16x128xf32>
    %58 = tpu.matmul %57, %55, %cst_46 {dimension_numbers = #tpu.dot_dimension_numbers<[1], [0], [0], [1], [0, 0, 1, 1], [], []>} : vector<16x32xbf16>, vector<32x128xbf16>, vector<16x128xf32> -> vector<16x128xf32>
    %c1_47 = arith.constant 1 : index
    %c0_48 = arith.constant 0 : index
    %c0_49 = arith.constant 0 : index
    %59 = vector.load %arg8[%c1_47, %c0_48, %c0_49] : memref<3x16x32xbf16, #tpu.memory_space<vmem>>, vector<1x16x32xbf16>
    %60 = vector.shape_cast %59 : vector<1x16x32xbf16> to vector<16x32xbf16>
    %cst_50 = arith.constant dense<0.000000e+00> : vector<16x128xf32>
    %61 = tpu.matmul %60, %55, %cst_50 {dimension_numbers = #tpu.dot_dimension_numbers<[1], [0], [0], [1], [0, 0, 1, 1], [], []>} : vector<16x32xbf16>, vector<32x128xbf16>, vector<16x128xf32> -> vector<16x128xf32>
    %62 = arith.maximumf %58, %61 : vector<16x128xf32>
    %c2_51 = arith.constant 2 : index
    %c0_52 = arith.constant 0 : index
    %c0_53 = arith.constant 0 : index
    %63 = vector.load %arg8[%c2_51, %c0_52, %c0_53] : memref<3x16x32xbf16, #tpu.memory_space<vmem>>, vector<1x16x32xbf16>
    %64 = vector.shape_cast %63 : vector<1x16x32xbf16> to vector<16x32xbf16>
    %cst_54 = arith.constant dense<0.000000e+00> : vector<16x128xf32>
    %65 = tpu.matmul %64, %55, %cst_54 {dimension_numbers = #tpu.dot_dimension_numbers<[1], [0], [0], [1], [0, 0, 1, 1], [], []>} : vector<16x32xbf16>, vector<32x128xbf16>, vector<16x128xf32> -> vector<16x128xf32>
    %66 = arith.maximumf %62, %65 : vector<16x128xf32>
    %67 = arith.truncf %66 : vector<16x128xf32> to vector<16x128xbf16>
    %c0_55 = arith.constant 0 : index
    %c0_56 = arith.constant 0 : index
    %c0_57 = arith.constant 0 : index
    %68 = vector.load %arg9[%c0_55, %c0_56, %c0_57] : memref<3x128x64xbf16, #tpu.memory_space<vmem>>, vector<1x128x64xbf16>
    %69 = vector.shape_cast %68 : vector<1x128x64xbf16> to vector<128x64xbf16>
    %cst_58 = arith.constant dense<0.000000e+00> : vector<16x64xf32>
    %70 = tpu.matmul %67, %69, %cst_58 {dimension_numbers = #tpu.dot_dimension_numbers<[1], [0], [0], [1], [0, 0, 1, 1], [], []>} : vector<16x128xbf16>, vector<128x64xbf16>, vector<16x64xf32> -> vector<16x64xf32>
    %c1_59 = arith.constant 1 : index
    %c0_60 = arith.constant 0 : index
    %c0_61 = arith.constant 0 : index
    %71 = vector.load %arg9[%c1_59, %c0_60, %c0_61] : memref<3x128x64xbf16, #tpu.memory_space<vmem>>, vector<1x128x64xbf16>
    %72 = vector.shape_cast %71 : vector<1x128x64xbf16> to vector<128x64xbf16>
    %cst_62 = arith.constant dense<0.000000e+00> : vector<16x64xf32>
    %73 = tpu.matmul %67, %72, %cst_62 {dimension_numbers = #tpu.dot_dimension_numbers<[1], [0], [0], [1], [0, 0, 1, 1], [], []>} : vector<16x128xbf16>, vector<128x64xbf16>, vector<16x64xf32> -> vector<16x64xf32>
    %74 = arith.maximumf %70, %73 : vector<16x64xf32>
    %c2_63 = arith.constant 2 : index
    %c0_64 = arith.constant 0 : index
    %c0_65 = arith.constant 0 : index
    %75 = vector.load %arg9[%c2_63, %c0_64, %c0_65] : memref<3x128x64xbf16, #tpu.memory_space<vmem>>, vector<1x128x64xbf16>
    %76 = vector.shape_cast %75 : vector<1x128x64xbf16> to vector<128x64xbf16>
    %cst_66 = arith.constant dense<0.000000e+00> : vector<16x64xf32>
    %77 = tpu.matmul %67, %76, %cst_66 {dimension_numbers = #tpu.dot_dimension_numbers<[1], [0], [0], [1], [0, 0, 1, 1], [], []>} : vector<16x128xbf16>, vector<128x64xbf16>, vector<16x64xf32> -> vector<16x64xf32>
    %78 = arith.maximumf %74, %77 : vector<16x64xf32>
    %79 = arith.truncf %78 : vector<16x64xf32> to vector<16x64xbf16>
    %80 = vector.extract_strided_slice %79 {offsets = [15, 0], sizes = [1, 64], strides = [1, 1]} : vector<16x64xbf16> to vector<1x64xbf16>
    %81 = vector.extract_strided_slice %79 {offsets = [0, 0], sizes = [15, 64], strides = [1, 1]} : vector<16x64xbf16> to vector<15x64xbf16>
    %82 = tpu.concatenate %80, %81 in 0 : vector<1x64xbf16>, vector<15x64xbf16> -> vector<16x64xbf16>
    %c0_67 = arith.constant 0 : index
    %c0_68 = arith.constant 0 : index
    %83 = vector.load %arg10[%c0_67, %c0_68] : memref<16x1xbf16, #tpu.memory_space<vmem>>, vector<16x1xbf16>
    %84 = vector.broadcast %83 : vector<16x1xbf16> to vector<16x64xbf16>
    %85 = arith.mulf %82, %84 : vector<16x64xbf16>
    %86 = vector.extract_strided_slice %79 {offsets = [1, 0], sizes = [15, 64], strides = [1, 1]} : vector<16x64xbf16> to vector<15x64xbf16>
    %87 = vector.extract_strided_slice %79 {offsets = [0, 0], sizes = [1, 64], strides = [1, 1]} : vector<16x64xbf16> to vector<1x64xbf16>
    %88 = tpu.concatenate %86, %87 in 0 : vector<15x64xbf16>, vector<1x64xbf16> -> vector<16x64xbf16>
    %c0_69 = arith.constant 0 : index
    %c0_70 = arith.constant 0 : index
    %89 = vector.load %arg11[%c0_69, %c0_70] : memref<16x1xbf16, #tpu.memory_space<vmem>>, vector<16x1xbf16>
    %90 = vector.broadcast %89 : vector<16x1xbf16> to vector<16x64xbf16>
    %91 = arith.mulf %88, %90 : vector<16x64xbf16>
    %92 = tpu.concatenate %85, %79, %91 in 1 : vector<16x64xbf16>, vector<16x64xbf16>, vector<16x64xbf16> -> vector<16x192xbf16>
    %c0_71 = arith.constant 0 : index
    %c0_72 = arith.constant 0 : index
    %93 = vector.load %arg12[%c0_71, %c0_72] : memref<192x64xbf16, #tpu.memory_space<vmem>>, vector<192x64xbf16>
    %cst_73 = arith.constant dense<0.000000e+00> : vector<16x64xf32>
    %94 = tpu.matmul %92, %93, %cst_73 {dimension_numbers = #tpu.dot_dimension_numbers<[1], [0], [0], [1], [0, 0, 1, 1], [], []>} : vector<16x192xbf16>, vector<192x64xbf16>, vector<16x64xf32> -> vector<16x64xf32>
    %c0_74 = arith.constant 0 : index
    %c0_75 = arith.constant 0 : index
    %95 = vector.load %arg19[%c0_74, %c0_75] : memref<16x16xf32, #tpu.memory_space<vmem>>, vector<16x16xf32>
    %cst_76 = arith.constant dense<0.000000e+00> : vector<16x64xf32>
    %96 = tpu.matmul %95, %94, %cst_76 {dimension_numbers = #tpu.dot_dimension_numbers<[1], [0], [0], [1], [0, 0, 1, 1], [], []>} : vector<16x16xf32>, vector<16x64xf32>, vector<16x64xf32> -> vector<16x64xf32>
    %c0_77 = arith.constant 0 : index
    %c0_78 = arith.constant 0 : index
    %97 = vector.load %arg18[%c0_77, %c0_78] : memref<64x64xf32, #tpu.memory_space<vmem>>, vector<64x64xf32>
    %cst_79 = arith.constant dense<0.000000e+00> : vector<16x64xf32>
    %98 = tpu.matmul %96, %97, %cst_79 {dimension_numbers = #tpu.dot_dimension_numbers<[1], [0], [0], [1], [0, 0, 1, 1], [], []>} : vector<16x64xf32>, vector<64x64xf32>, vector<16x64xf32> -> vector<16x64xf32>
    %99 = arith.subf %94, %98 : vector<16x64xf32>
    %c0_80 = arith.constant 0 : index
    %c0_81 = arith.constant 0 : index
    %100 = vector.load %arg19[%c0_80, %c0_81] : memref<16x16xf32, #tpu.memory_space<vmem>>, vector<16x16xf32>
    %101 = arith.mulf %99, %99 : vector<16x64xf32>
    %cst_82 = arith.constant dense<0.000000e+00> : vector<16x64xf32>
    %102 = tpu.matmul %100, %101, %cst_82 {dimension_numbers = #tpu.dot_dimension_numbers<[1], [0], [0], [1], [0, 0, 1, 1], [], []>} : vector<16x16xf32>, vector<16x64xf32>, vector<16x64xf32> -> vector<16x64xf32>
    %c0_83 = arith.constant 0 : index
    %c0_84 = arith.constant 0 : index
    %103 = vector.load %arg18[%c0_83, %c0_84] : memref<64x64xf32, #tpu.memory_space<vmem>>, vector<64x64xf32>
    %cst_85 = arith.constant dense<0.000000e+00> : vector<16x64xf32>
    %104 = tpu.matmul %102, %103, %cst_85 {dimension_numbers = #tpu.dot_dimension_numbers<[1], [0], [0], [1], [0, 0, 1, 1], [], []>} : vector<16x64xf32>, vector<64x64xf32>, vector<16x64xf32> -> vector<16x64xf32>
    %cst_86 = arith.constant 9.99999974E-6 : f32
    %105 = vector.broadcast %cst_86 : f32 to vector<16x64xf32>
    %106 = arith.addf %104, %105 : vector<16x64xf32>
    %107 = math.rsqrt %106 : vector<16x64xf32>
    %108 = arith.mulf %99, %107 : vector<16x64xf32>
    %c0_87 = arith.constant 0 : index
    %c0_88 = arith.constant 0 : index
    %109 = vector.load %arg13[%c0_87, %c0_88] : memref<1x64xf32, #tpu.memory_space<vmem>>, vector<1x64xf32>
    %110 = vector.broadcast %109 : vector<1x64xf32> to vector<16x64xf32>
    %111 = arith.mulf %108, %110 : vector<16x64xf32>
    %c0_89 = arith.constant 0 : index
    %c0_90 = arith.constant 0 : index
    %112 = vector.load %arg14[%c0_89, %c0_90] : memref<1x64xf32, #tpu.memory_space<vmem>>, vector<1x64xf32>
    %113 = vector.broadcast %112 : vector<1x64xf32> to vector<16x64xf32>
    %114 = arith.addf %111, %113 : vector<16x64xf32>
    %cst_91 = arith.constant 0.000000e+00 : f32
    %115 = vector.broadcast %cst_91 : f32 to vector<16x64xf32>
    %116 = arith.maximumf %114, %115 : vector<16x64xf32>
    %117 = arith.truncf %116 : vector<16x64xf32> to vector<16x64xbf16>
    %118 = vector.extract_strided_slice %117 {offsets = [15, 0], sizes = [1, 64], strides = [1, 1]} : vector<16x64xbf16> to vector<1x64xbf16>
    %119 = vector.extract_strided_slice %117 {offsets = [0, 0], sizes = [15, 64], strides = [1, 1]} : vector<16x64xbf16> to vector<15x64xbf16>
    %120 = tpu.concatenate %118, %119 in 0 : vector<1x64xbf16>, vector<15x64xbf16> -> vector<16x64xbf16>
    %c0_92 = arith.constant 0 : index
    %c0_93 = arith.constant 0 : index
    %121 = vector.load %arg10[%c0_92, %c0_93] : memref<16x1xbf16, #tpu.memory_space<vmem>>, vector<16x1xbf16>
    %122 = vector.broadcast %121 : vector<16x1xbf16> to vector<16x64xbf16>
    %123 = arith.mulf %120, %122 : vector<16x64xbf16>
    %124 = vector.extract_strided_slice %117 {offsets = [1, 0], sizes = [15, 64], strides = [1, 1]} : vector<16x64xbf16> to vector<15x64xbf16>
    %125 = vector.extract_strided_slice %117 {offsets = [0, 0], sizes = [1, 64], strides = [1, 1]} : vector<16x64xbf16> to vector<1x64xbf16>
    %126 = tpu.concatenate %124, %125 in 0 : vector<15x64xbf16>, vector<1x64xbf16> -> vector<16x64xbf16>
    %c0_94 = arith.constant 0 : index
    %c0_95 = arith.constant 0 : index
    %127 = vector.load %arg11[%c0_94, %c0_95] : memref<16x1xbf16, #tpu.memory_space<vmem>>, vector<16x1xbf16>
    %128 = vector.broadcast %127 : vector<16x1xbf16> to vector<16x64xbf16>
    %129 = arith.mulf %126, %128 : vector<16x64xbf16>
    %130 = tpu.concatenate %123, %117, %129 in 1 : vector<16x64xbf16>, vector<16x64xbf16>, vector<16x64xbf16> -> vector<16x192xbf16>
    %c0_96 = arith.constant 0 : index
    %c0_97 = arith.constant 0 : index
    %131 = vector.load %arg15[%c0_96, %c0_97] : memref<192x64xbf16, #tpu.memory_space<vmem>>, vector<192x64xbf16>
    %cst_98 = arith.constant dense<0.000000e+00> : vector<16x64xf32>
    %132 = tpu.matmul %130, %131, %cst_98 {dimension_numbers = #tpu.dot_dimension_numbers<[1], [0], [0], [1], [0, 0, 1, 1], [], []>} : vector<16x192xbf16>, vector<192x64xbf16>, vector<16x64xf32> -> vector<16x64xf32>
    %c0_99 = arith.constant 0 : index
    %c0_100 = arith.constant 0 : index
    %133 = vector.load %arg19[%c0_99, %c0_100] : memref<16x16xf32, #tpu.memory_space<vmem>>, vector<16x16xf32>
    %cst_101 = arith.constant dense<0.000000e+00> : vector<16x64xf32>
    %134 = tpu.matmul %133, %132, %cst_101 {dimension_numbers = #tpu.dot_dimension_numbers<[1], [0], [0], [1], [0, 0, 1, 1], [], []>} : vector<16x16xf32>, vector<16x64xf32>, vector<16x64xf32> -> vector<16x64xf32>
    %c0_102 = arith.constant 0 : index
    %c0_103 = arith.constant 0 : index
    %135 = vector.load %arg18[%c0_102, %c0_103] : memref<64x64xf32, #tpu.memory_space<vmem>>, vector<64x64xf32>
    %cst_104 = arith.constant dense<0.000000e+00> : vector<16x64xf32>
    %136 = tpu.matmul %134, %135, %cst_104 {dimension_numbers = #tpu.dot_dimension_numbers<[1], [0], [0], [1], [0, 0, 1, 1], [], []>} : vector<16x64xf32>, vector<64x64xf32>, vector<16x64xf32> -> vector<16x64xf32>
    %137 = arith.subf %132, %136 : vector<16x64xf32>
    %c0_105 = arith.constant 0 : index
    %c0_106 = arith.constant 0 : index
    %138 = vector.load %arg19[%c0_105, %c0_106] : memref<16x16xf32, #tpu.memory_space<vmem>>, vector<16x16xf32>
    %139 = arith.mulf %137, %137 : vector<16x64xf32>
    %cst_107 = arith.constant dense<0.000000e+00> : vector<16x64xf32>
    %140 = tpu.matmul %138, %139, %cst_107 {dimension_numbers = #tpu.dot_dimension_numbers<[1], [0], [0], [1], [0, 0, 1, 1], [], []>} : vector<16x16xf32>, vector<16x64xf32>, vector<16x64xf32> -> vector<16x64xf32>
    %c0_108 = arith.constant 0 : index
    %c0_109 = arith.constant 0 : index
    %141 = vector.load %arg18[%c0_108, %c0_109] : memref<64x64xf32, #tpu.memory_space<vmem>>, vector<64x64xf32>
    %cst_110 = arith.constant dense<0.000000e+00> : vector<16x64xf32>
    %142 = tpu.matmul %140, %141, %cst_110 {dimension_numbers = #tpu.dot_dimension_numbers<[1], [0], [0], [1], [0, 0, 1, 1], [], []>} : vector<16x64xf32>, vector<64x64xf32>, vector<16x64xf32> -> vector<16x64xf32>
    %cst_111 = arith.constant 9.99999974E-6 : f32
    %143 = vector.broadcast %cst_111 : f32 to vector<16x64xf32>
    %144 = arith.addf %142, %143 : vector<16x64xf32>
    %145 = math.rsqrt %144 : vector<16x64xf32>
    %146 = arith.mulf %137, %145 : vector<16x64xf32>
    %c0_112 = arith.constant 0 : index
    %c0_113 = arith.constant 0 : index
    %147 = vector.load %arg16[%c0_112, %c0_113] : memref<1x64xf32, #tpu.memory_space<vmem>>, vector<1x64xf32>
    %148 = vector.broadcast %147 : vector<1x64xf32> to vector<16x64xf32>
    %149 = arith.mulf %146, %148 : vector<16x64xf32>
    %c0_114 = arith.constant 0 : index
    %c0_115 = arith.constant 0 : index
    %150 = vector.load %arg17[%c0_114, %c0_115] : memref<1x64xf32, #tpu.memory_space<vmem>>, vector<1x64xf32>
    %151 = vector.broadcast %150 : vector<1x64xf32> to vector<16x64xf32>
    %152 = arith.addf %149, %151 : vector<16x64xf32>
    %153 = arith.addf %152, %78 : vector<16x64xf32>
    %cst_116 = arith.constant 0.000000e+00 : f32
    %154 = vector.broadcast %cst_116 : f32 to vector<16x64xf32>
    %155 = arith.maximumf %153, %154 : vector<16x64xf32>
    %156 = arith.truncf %155 : vector<16x64xf32> to vector<16x64xbf16>
    %c0_117 = arith.constant 0 : index
    %c0_118 = arith.constant 0 : index
    %c0_119 = arith.constant 0 : index
    %157 = vector.load %arg20[%c0_117, %c0_118, %c0_119] : memref<1x8x16xbf16, #tpu.memory_space<vmem>>, vector<1x8x16xbf16>
    %158 = vector.shape_cast %157 : vector<1x8x16xbf16> to vector<8x16xbf16>
    %cst_120 = arith.constant dense<0.000000e+00> : vector<8x64xf32>
    %159 = tpu.matmul %158, %156, %cst_120 {dimension_numbers = #tpu.dot_dimension_numbers<[1], [0], [0], [1], [0, 0, 1, 1], [], []>} : vector<8x16xbf16>, vector<16x64xbf16>, vector<8x64xf32> -> vector<8x64xf32>
    %160 = arith.truncf %159 : vector<8x64xf32> to vector<8x64xbf16>
    %c0_121 = arith.constant 0 : index
    %c0_122 = arith.constant 0 : index
    %161 = vector.load %arg21[%c0_121, %c0_122] : memref<64x64xbf16, #tpu.memory_space<vmem>>, vector<64x64xbf16>
    %cst_123 = arith.constant dense<0.000000e+00> : vector<8x64xf32>
    %162 = tpu.matmul %160, %161, %cst_123 {dimension_numbers = #tpu.dot_dimension_numbers<[1], [0], [0], [1], [0, 0, 1, 1], [], []>} : vector<8x64xbf16>, vector<64x64xbf16>, vector<8x64xf32> -> vector<8x64xf32>
    %c0_124 = arith.constant 0 : index
    %c0_125 = arith.constant 0 : index
    %163 = vector.load %arg34[%c0_124, %c0_125] : memref<8x8xf32, #tpu.memory_space<vmem>>, vector<8x8xf32>
    %cst_126 = arith.constant dense<0.000000e+00> : vector<8x64xf32>
    %164 = tpu.matmul %163, %162, %cst_126 {dimension_numbers = #tpu.dot_dimension_numbers<[1], [0], [0], [1], [0, 0, 1, 1], [], []>} : vector<8x8xf32>, vector<8x64xf32>, vector<8x64xf32> -> vector<8x64xf32>
    %c0_127 = arith.constant 0 : index
    %c0_128 = arith.constant 0 : index
    %165 = vector.load %arg33[%c0_127, %c0_128] : memref<64x64xf32, #tpu.memory_space<vmem>>, vector<64x64xf32>
    %cst_129 = arith.constant dense<0.000000e+00> : vector<8x64xf32>
    %166 = tpu.matmul %164, %165, %cst_129 {dimension_numbers = #tpu.dot_dimension_numbers<[1], [0], [0], [1], [0, 0, 1, 1], [], []>} : vector<8x64xf32>, vector<64x64xf32>, vector<8x64xf32> -> vector<8x64xf32>
    %167 = arith.subf %162, %166 : vector<8x64xf32>
    %c0_130 = arith.constant 0 : index
    %c0_131 = arith.constant 0 : index
    %168 = vector.load %arg34[%c0_130, %c0_131] : memref<8x8xf32, #tpu.memory_space<vmem>>, vector<8x8xf32>
    %169 = arith.mulf %167, %167 : vector<8x64xf32>
    %cst_132 = arith.constant dense<0.000000e+00> : vector<8x64xf32>
    %170 = tpu.matmul %168, %169, %cst_132 {dimension_numbers = #tpu.dot_dimension_numbers<[1], [0], [0], [1], [0, 0, 1, 1], [], []>} : vector<8x8xf32>, vector<8x64xf32>, vector<8x64xf32> -> vector<8x64xf32>
    %c0_133 = arith.constant 0 : index
    %c0_134 = arith.constant 0 : index
    %171 = vector.load %arg33[%c0_133, %c0_134] : memref<64x64xf32, #tpu.memory_space<vmem>>, vector<64x64xf32>
    %cst_135 = arith.constant dense<0.000000e+00> : vector<8x64xf32>
    %172 = tpu.matmul %170, %171, %cst_135 {dimension_numbers = #tpu.dot_dimension_numbers<[1], [0], [0], [1], [0, 0, 1, 1], [], []>} : vector<8x64xf32>, vector<64x64xf32>, vector<8x64xf32> -> vector<8x64xf32>
    %cst_136 = arith.constant 9.99999974E-6 : f32
    %173 = vector.broadcast %cst_136 : f32 to vector<8x64xf32>
    %174 = arith.addf %172, %173 : vector<8x64xf32>
    %175 = math.rsqrt %174 : vector<8x64xf32>
    %176 = arith.mulf %167, %175 : vector<8x64xf32>
    %c0_137 = arith.constant 0 : index
    %c0_138 = arith.constant 0 : index
    %177 = vector.load %arg22[%c0_137, %c0_138] : memref<1x64xf32, #tpu.memory_space<vmem>>, vector<1x64xf32>
    %178 = vector.broadcast %177 : vector<1x64xf32> to vector<8x64xf32>
    %179 = arith.mulf %176, %178 : vector<8x64xf32>
    %c0_139 = arith.constant 0 : index
    %c0_140 = arith.constant 0 : index
    %180 = vector.load %arg23[%c0_139, %c0_140] : memref<1x64xf32, #tpu.memory_space<vmem>>, vector<1x64xf32>
    %181 = vector.broadcast %180 : vector<1x64xf32> to vector<8x64xf32>
    %182 = arith.addf %179, %181 : vector<8x64xf32>
    %c0_141 = arith.constant 0 : index
    %c0_142 = arith.constant 0 : index
    %c0_143 = arith.constant 0 : index
    %183 = vector.load %arg24[%c0_141, %c0_142, %c0_143] : memref<3x8x16xbf16, #tpu.memory_space<vmem>>, vector<1x8x16xbf16>
    %184 = vector.shape_cast %183 : vector<1x8x16xbf16> to vector<8x16xbf16>
    %cst_144 = arith.constant dense<0.000000e+00> : vector<8x64xf32>
    %185 = tpu.matmul %184, %156, %cst_144 {dimension_numbers = #tpu.dot_dimension_numbers<[1], [0], [0], [1], [0, 0, 1, 1], [], []>} : vector<8x16xbf16>, vector<16x64xbf16>, vector<8x64xf32> -> vector<8x64xf32>
    %186 = arith.truncf %185 : vector<8x64xf32> to vector<8x64xbf16>
    %c1_145 = arith.constant 1 : index
    %c0_146 = arith.constant 0 : index
    %c0_147 = arith.constant 0 : index
    %187 = vector.load %arg24[%c1_145, %c0_146, %c0_147] : memref<3x8x16xbf16, #tpu.memory_space<vmem>>, vector<1x8x16xbf16>
    %188 = vector.shape_cast %187 : vector<1x8x16xbf16> to vector<8x16xbf16>
    %cst_148 = arith.constant dense<0.000000e+00> : vector<8x64xf32>
    %189 = tpu.matmul %188, %156, %cst_148 {dimension_numbers = #tpu.dot_dimension_numbers<[1], [0], [0], [1], [0, 0, 1, 1], [], []>} : vector<8x16xbf16>, vector<16x64xbf16>, vector<8x64xf32> -> vector<8x64xf32>
    %190 = arith.truncf %189 : vector<8x64xf32> to vector<8x64xbf16>
    %c2_149 = arith.constant 2 : index
    %c0_150 = arith.constant 0 : index
    %c0_151 = arith.constant 0 : index
    %191 = vector.load %arg24[%c2_149, %c0_150, %c0_151] : memref<3x8x16xbf16, #tpu.memory_space<vmem>>, vector<1x8x16xbf16>
    %192 = vector.shape_cast %191 : vector<1x8x16xbf16> to vector<8x16xbf16>
    %cst_152 = arith.constant dense<0.000000e+00> : vector<8x64xf32>
    %193 = tpu.matmul %192, %156, %cst_152 {dimension_numbers = #tpu.dot_dimension_numbers<[1], [0], [0], [1], [0, 0, 1, 1], [], []>} : vector<8x16xbf16>, vector<16x64xbf16>, vector<8x64xf32> -> vector<8x64xf32>
    %194 = arith.truncf %193 : vector<8x64xf32> to vector<8x64xbf16>
    %195 = tpu.concatenate %186, %190, %194 in 1 : vector<8x64xbf16>, vector<8x64xbf16>, vector<8x64xbf16> -> vector<8x192xbf16>
    %c0_153 = arith.constant 0 : index
    %c0_154 = arith.constant 0 : index
    %196 = vector.load %arg25[%c0_153, %c0_154] : memref<192x64xbf16, #tpu.memory_space<vmem>>, vector<192x64xbf16>
    %cst_155 = arith.constant dense<0.000000e+00> : vector<8x64xf32>
    %197 = tpu.matmul %195, %196, %cst_155 {dimension_numbers = #tpu.dot_dimension_numbers<[1], [0], [0], [1], [0, 0, 1, 1], [], []>} : vector<8x192xbf16>, vector<192x64xbf16>, vector<8x64xf32> -> vector<8x64xf32>
    %c0_156 = arith.constant 0 : index
    %c0_157 = arith.constant 0 : index
    %198 = vector.load %arg34[%c0_156, %c0_157] : memref<8x8xf32, #tpu.memory_space<vmem>>, vector<8x8xf32>
    %cst_158 = arith.constant dense<0.000000e+00> : vector<8x64xf32>
    %199 = tpu.matmul %198, %197, %cst_158 {dimension_numbers = #tpu.dot_dimension_numbers<[1], [0], [0], [1], [0, 0, 1, 1], [], []>} : vector<8x8xf32>, vector<8x64xf32>, vector<8x64xf32> -> vector<8x64xf32>
    %c0_159 = arith.constant 0 : index
    %c0_160 = arith.constant 0 : index
    %200 = vector.load %arg33[%c0_159, %c0_160] : memref<64x64xf32, #tpu.memory_space<vmem>>, vector<64x64xf32>
    %cst_161 = arith.constant dense<0.000000e+00> : vector<8x64xf32>
    %201 = tpu.matmul %199, %200, %cst_161 {dimension_numbers = #tpu.dot_dimension_numbers<[1], [0], [0], [1], [0, 0, 1, 1], [], []>} : vector<8x64xf32>, vector<64x64xf32>, vector<8x64xf32> -> vector<8x64xf32>
    %202 = arith.subf %197, %201 : vector<8x64xf32>
    %c0_162 = arith.constant 0 : index
    %c0_163 = arith.constant 0 : index
    %203 = vector.load %arg34[%c0_162, %c0_163] : memref<8x8xf32, #tpu.memory_space<vmem>>, vector<8x8xf32>
    %204 = arith.mulf %202, %202 : vector<8x64xf32>
    %cst_164 = arith.constant dense<0.000000e+00> : vector<8x64xf32>
    %205 = tpu.matmul %203, %204, %cst_164 {dimension_numbers = #tpu.dot_dimension_numbers<[1], [0], [0], [1], [0, 0, 1, 1], [], []>} : vector<8x8xf32>, vector<8x64xf32>, vector<8x64xf32> -> vector<8x64xf32>
    %c0_165 = arith.constant 0 : index
    %c0_166 = arith.constant 0 : index
    %206 = vector.load %arg33[%c0_165, %c0_166] : memref<64x64xf32, #tpu.memory_space<vmem>>, vector<64x64xf32>
    %cst_167 = arith.constant dense<0.000000e+00> : vector<8x64xf32>
    %207 = tpu.matmul %205, %206, %cst_167 {dimension_numbers = #tpu.dot_dimension_numbers<[1], [0], [0], [1], [0, 0, 1, 1], [], []>} : vector<8x64xf32>, vector<64x64xf32>, vector<8x64xf32> -> vector<8x64xf32>
    %cst_168 = arith.constant 9.99999974E-6 : f32
    %208 = vector.broadcast %cst_168 : f32 to vector<8x64xf32>
    %209 = arith.addf %207, %208 : vector<8x64xf32>
    %210 = math.rsqrt %209 : vector<8x64xf32>
    %211 = arith.mulf %202, %210 : vector<8x64xf32>
    %c0_169 = arith.constant 0 : index
    %c0_170 = arith.constant 0 : index
    %212 = vector.load %arg26[%c0_169, %c0_170] : memref<1x64xf32, #tpu.memory_space<vmem>>, vector<1x64xf32>
    %213 = vector.broadcast %212 : vector<1x64xf32> to vector<8x64xf32>
    %214 = arith.mulf %211, %213 : vector<8x64xf32>
    %c0_171 = arith.constant 0 : index
    %c0_172 = arith.constant 0 : index
    %215 = vector.load %arg27[%c0_171, %c0_172] : memref<1x64xf32, #tpu.memory_space<vmem>>, vector<1x64xf32>
    %216 = vector.broadcast %215 : vector<1x64xf32> to vector<8x64xf32>
    %217 = arith.addf %214, %216 : vector<8x64xf32>
    %cst_173 = arith.constant 0.000000e+00 : f32
    %218 = vector.broadcast %cst_173 : f32 to vector<8x64xf32>
    %219 = arith.maximumf %217, %218 : vector<8x64xf32>
    %220 = arith.truncf %219 : vector<8x64xf32> to vector<8x64xbf16>
    %221 = vector.extract_strided_slice %220 {offsets = [7, 0], sizes = [1, 64], strides = [1, 1]} : vector<8x64xbf16> to vector<1x64xbf16>
    %222 = vector.extract_strided_slice %220 {offsets = [0, 0], sizes = [7, 64], strides = [1, 1]} : vector<8x64xbf16> to vector<7x64xbf16>
    %223 = tpu.concatenate %221, %222 in 0 : vector<1x64xbf16>, vector<7x64xbf16> -> vector<8x64xbf16>
    %c0_174 = arith.constant 0 : index
    %c0_175 = arith.constant 0 : index
    %224 = vector.load %arg28[%c0_174, %c0_175] : memref<8x1xbf16, #tpu.memory_space<vmem>>, vector<8x1xbf16>
    %225 = vector.broadcast %224 : vector<8x1xbf16> to vector<8x64xbf16>
    %226 = arith.mulf %223, %225 : vector<8x64xbf16>
    %227 = vector.extract_strided_slice %220 {offsets = [1, 0], sizes = [7, 64], strides = [1, 1]} : vector<8x64xbf16> to vector<7x64xbf16>
    %228 = vector.extract_strided_slice %220 {offsets = [0, 0], sizes = [1, 64], strides = [1, 1]} : vector<8x64xbf16> to vector<1x64xbf16>
    %229 = tpu.concatenate %227, %228 in 0 : vector<7x64xbf16>, vector<1x64xbf16> -> vector<8x64xbf16>
    %c0_176 = arith.constant 0 : index
    %c0_177 = arith.constant 0 : index
    %230 = vector.load %arg29[%c0_176, %c0_177] : memref<8x1xbf16, #tpu.memory_space<vmem>>, vector<8x1xbf16>
    %231 = vector.broadcast %230 : vector<8x1xbf16> to vector<8x64xbf16>
    %232 = arith.mulf %229, %231 : vector<8x64xbf16>
    %233 = tpu.concatenate %226, %220, %232 in 1 : vector<8x64xbf16>, vector<8x64xbf16>, vector<8x64xbf16> -> vector<8x192xbf16>
    %c0_178 = arith.constant 0 : index
    %c0_179 = arith.constant 0 : index
    %234 = vector.load %arg30[%c0_178, %c0_179] : memref<192x64xbf16, #tpu.memory_space<vmem>>, vector<192x64xbf16>
    %cst_180 = arith.constant dense<0.000000e+00> : vector<8x64xf32>
    %235 = tpu.matmul %233, %234, %cst_180 {dimension_numbers = #tpu.dot_dimension_numbers<[1], [0], [0], [1], [0, 0, 1, 1], [], []>} : vector<8x192xbf16>, vector<192x64xbf16>, vector<8x64xf32> -> vector<8x64xf32>
    %c0_181 = arith.constant 0 : index
    %c0_182 = arith.constant 0 : index
    %236 = vector.load %arg34[%c0_181, %c0_182] : memref<8x8xf32, #tpu.memory_space<vmem>>, vector<8x8xf32>
    %cst_183 = arith.constant dense<0.000000e+00> : vector<8x64xf32>
    %237 = tpu.matmul %236, %235, %cst_183 {dimension_numbers = #tpu.dot_dimension_numbers<[1], [0], [0], [1], [0, 0, 1, 1], [], []>} : vector<8x8xf32>, vector<8x64xf32>, vector<8x64xf32> -> vector<8x64xf32>
    %c0_184 = arith.constant 0 : index
    %c0_185 = arith.constant 0 : index
    %238 = vector.load %arg33[%c0_184, %c0_185] : memref<64x64xf32, #tpu.memory_space<vmem>>, vector<64x64xf32>
    %cst_186 = arith.constant dense<0.000000e+00> : vector<8x64xf32>
    %239 = tpu.matmul %237, %238, %cst_186 {dimension_numbers = #tpu.dot_dimension_numbers<[1], [0], [0], [1], [0, 0, 1, 1], [], []>} : vector<8x64xf32>, vector<64x64xf32>, vector<8x64xf32> -> vector<8x64xf32>
    %240 = arith.subf %235, %239 : vector<8x64xf32>
    %c0_187 = arith.constant 0 : index
    %c0_188 = arith.constant 0 : index
    %241 = vector.load %arg34[%c0_187, %c0_188] : memref<8x8xf32, #tpu.memory_space<vmem>>, vector<8x8xf32>
    %242 = arith.mulf %240, %240 : vector<8x64xf32>
    %cst_189 = arith.constant dense<0.000000e+00> : vector<8x64xf32>
    %243 = tpu.matmul %241, %242, %cst_189 {dimension_numbers = #tpu.dot_dimension_numbers<[1], [0], [0], [1], [0, 0, 1, 1], [], []>} : vector<8x8xf32>, vector<8x64xf32>, vector<8x64xf32> -> vector<8x64xf32>
    %c0_190 = arith.constant 0 : index
    %c0_191 = arith.constant 0 : index
    %244 = vector.load %arg33[%c0_190, %c0_191] : memref<64x64xf32, #tpu.memory_space<vmem>>, vector<64x64xf32>
    %cst_192 = arith.constant dense<0.000000e+00> : vector<8x64xf32>
    %245 = tpu.matmul %243, %244, %cst_192 {dimension_numbers = #tpu.dot_dimension_numbers<[1], [0], [0], [1], [0, 0, 1, 1], [], []>} : vector<8x64xf32>, vector<64x64xf32>, vector<8x64xf32> -> vector<8x64xf32>
    %cst_193 = arith.constant 9.99999974E-6 : f32
    %246 = vector.broadcast %cst_193 : f32 to vector<8x64xf32>
    %247 = arith.addf %245, %246 : vector<8x64xf32>
    %248 = math.rsqrt %247 : vector<8x64xf32>
    %249 = arith.mulf %240, %248 : vector<8x64xf32>
    %c0_194 = arith.constant 0 : index
    %c0_195 = arith.constant 0 : index
    %250 = vector.load %arg31[%c0_194, %c0_195] : memref<1x64xf32, #tpu.memory_space<vmem>>, vector<1x64xf32>
    %251 = vector.broadcast %250 : vector<1x64xf32> to vector<8x64xf32>
    %252 = arith.mulf %249, %251 : vector<8x64xf32>
    %c0_196 = arith.constant 0 : index
    %c0_197 = arith.constant 0 : index
    %253 = vector.load %arg32[%c0_196, %c0_197] : memref<1x64xf32, #tpu.memory_space<vmem>>, vector<1x64xf32>
    %254 = vector.broadcast %253 : vector<1x64xf32> to vector<8x64xf32>
    %255 = arith.addf %252, %254 : vector<8x64xf32>
    %256 = arith.addf %255, %182 : vector<8x64xf32>
    %cst_198 = arith.constant 0.000000e+00 : f32
    %257 = vector.broadcast %cst_198 : f32 to vector<8x64xf32>
    %258 = arith.maximumf %256, %257 : vector<8x64xf32>
    %259 = arith.truncf %258 : vector<8x64xf32> to vector<8x64xbf16>
    %260 = vector.extract_strided_slice %259 {offsets = [7, 0], sizes = [1, 64], strides = [1, 1]} : vector<8x64xbf16> to vector<1x64xbf16>
    %261 = vector.extract_strided_slice %259 {offsets = [0, 0], sizes = [7, 64], strides = [1, 1]} : vector<8x64xbf16> to vector<7x64xbf16>
    %262 = tpu.concatenate %260, %261 in 0 : vector<1x64xbf16>, vector<7x64xbf16> -> vector<8x64xbf16>
    %c0_199 = arith.constant 0 : index
    %c0_200 = arith.constant 0 : index
    %263 = vector.load %arg28[%c0_199, %c0_200] : memref<8x1xbf16, #tpu.memory_space<vmem>>, vector<8x1xbf16>
    %264 = vector.broadcast %263 : vector<8x1xbf16> to vector<8x64xbf16>
    %265 = arith.mulf %262, %264 : vector<8x64xbf16>
    %266 = vector.extract_strided_slice %259 {offsets = [1, 0], sizes = [7, 64], strides = [1, 1]} : vector<8x64xbf16> to vector<7x64xbf16>
    %267 = vector.extract_strided_slice %259 {offsets = [0, 0], sizes = [1, 64], strides = [1, 1]} : vector<8x64xbf16> to vector<1x64xbf16>
    %268 = tpu.concatenate %266, %267 in 0 : vector<7x64xbf16>, vector<1x64xbf16> -> vector<8x64xbf16>
    %c0_201 = arith.constant 0 : index
    %c0_202 = arith.constant 0 : index
    %269 = vector.load %arg29[%c0_201, %c0_202] : memref<8x1xbf16, #tpu.memory_space<vmem>>, vector<8x1xbf16>
    %270 = vector.broadcast %269 : vector<8x1xbf16> to vector<8x64xbf16>
    %271 = arith.mulf %268, %270 : vector<8x64xbf16>
    %272 = tpu.concatenate %265, %259, %271 in 1 : vector<8x64xbf16>, vector<8x64xbf16>, vector<8x64xbf16> -> vector<8x192xbf16>
    %c0_203 = arith.constant 0 : index
    %c0_204 = arith.constant 0 : index
    %273 = vector.load %arg35[%c0_203, %c0_204] : memref<192x512xbf16, #tpu.memory_space<vmem>>, vector<192x512xbf16>
    %cst_205 = arith.constant dense<0.000000e+00> : vector<8x512xf32>
    %274 = tpu.matmul %272, %273, %cst_205 {dimension_numbers = #tpu.dot_dimension_numbers<[1], [0], [0], [1], [0, 0, 1, 1], [], []>} : vector<8x192xbf16>, vector<192x512xbf16>, vector<8x512xf32> -> vector<8x512xf32>
    %c0_206 = arith.constant 0 : index
    %c0_207 = arith.constant 0 : index
    %275 = vector.load %arg34[%c0_206, %c0_207] : memref<8x8xf32, #tpu.memory_space<vmem>>, vector<8x8xf32>
    %cst_208 = arith.constant dense<0.000000e+00> : vector<8x512xf32>
    %276 = tpu.matmul %275, %274, %cst_208 {dimension_numbers = #tpu.dot_dimension_numbers<[1], [0], [0], [1], [0, 0, 1, 1], [], []>} : vector<8x8xf32>, vector<8x512xf32>, vector<8x512xf32> -> vector<8x512xf32>
    %cst_209 = arith.constant dense<0.000000e+00> : vector<8xf32>
    %277 = vector.multi_reduction <add>, %276, %cst_209 [1] : vector<8x512xf32> to vector<8xf32>
    %278 = vector.shape_cast %277 : vector<8xf32> to vector<8x1xf32>
    %cst_210 = arith.constant 4.8828125E-4 : f32
    %279 = vector.broadcast %cst_210 : f32 to vector<8x1xf32>
    %280 = arith.mulf %278, %279 : vector<8x1xf32>
    %281 = vector.broadcast %280 : vector<8x1xf32> to vector<8x512xf32>
    %282 = arith.subf %274, %281 : vector<8x512xf32>
    %c0_211 = arith.constant 0 : index
    %c0_212 = arith.constant 0 : index
    %283 = vector.load %arg34[%c0_211, %c0_212] : memref<8x8xf32, #tpu.memory_space<vmem>>, vector<8x8xf32>
    %284 = arith.mulf %282, %282 : vector<8x512xf32>
    %cst_213 = arith.constant dense<0.000000e+00> : vector<8x512xf32>
    %285 = tpu.matmul %283, %284, %cst_213 {dimension_numbers = #tpu.dot_dimension_numbers<[1], [0], [0], [1], [0, 0, 1, 1], [], []>} : vector<8x8xf32>, vector<8x512xf32>, vector<8x512xf32> -> vector<8x512xf32>
    %cst_214 = arith.constant dense<0.000000e+00> : vector<8xf32>
    %286 = vector.multi_reduction <add>, %285, %cst_214 [1] : vector<8x512xf32> to vector<8xf32>
    %287 = vector.shape_cast %286 : vector<8xf32> to vector<8x1xf32>
    %cst_215 = arith.constant 4.8828125E-4 : f32
    %288 = vector.broadcast %cst_215 : f32 to vector<8x1xf32>
    %289 = arith.mulf %287, %288 : vector<8x1xf32>
    %cst_216 = arith.constant 9.99999974E-6 : f32
    %290 = vector.broadcast %cst_216 : f32 to vector<8x1xf32>
    %291 = arith.addf %289, %290 : vector<8x1xf32>
    %292 = math.rsqrt %291 : vector<8x1xf32>
    %293 = vector.broadcast %292 : vector<8x1xf32> to vector<8x512xf32>
    %294 = arith.mulf %282, %293 : vector<8x512xf32>
    %c0_217 = arith.constant 0 : index
    %c0_218 = arith.constant 0 : index
    %295 = vector.load %arg36[%c0_217, %c0_218] : memref<1x512xf32, #tpu.memory_space<vmem>>, vector<1x512xf32>
    %296 = vector.broadcast %295 : vector<1x512xf32> to vector<8x512xf32>
    %297 = arith.mulf %294, %296 : vector<8x512xf32>
    %c0_219 = arith.constant 0 : index
    %c0_220 = arith.constant 0 : index
    %298 = vector.load %arg37[%c0_219, %c0_220] : memref<1x512xf32, #tpu.memory_space<vmem>>, vector<1x512xf32>
    %299 = vector.broadcast %298 : vector<1x512xf32> to vector<8x512xf32>
    %300 = arith.addf %297, %299 : vector<8x512xf32>
    %cst_221 = arith.constant 0.000000e+00 : f32
    %301 = vector.broadcast %cst_221 : f32 to vector<8x512xf32>
    %302 = arith.maximumf %300, %301 : vector<8x512xf32>
    %c0_222 = arith.constant 0 : index
    %c0_223 = arith.constant 0 : index
    %303 = vector.load %arg38[%c0_222, %c0_223] : memref<8x512xf32, #tpu.memory_space<vmem>>, vector<8x512xf32>
    tpu.vector_store %arg38[%c0_222, %c0_223], %302 {strides = array<i32>} : memref<8x512xf32, #tpu.memory_space<vmem>>, vector<8x512xf32>,
    return
  }
  func.func @transform_0(%arg0: i32) -> (i32, i32) {
    %c0_i32 = arith.constant 0 : i32
    %c0_i32_0 = arith.constant 0 : i32
    return %arg0, %c0_i32 : i32, i32
  }
  func.func @transform_1(%arg0: i32) -> (i32, i32, i32) {
    %c0_i32 = arith.constant 0 : i32
    %c0_i32_0 = arith.constant 0 : i32
    %c0_i32_1 = arith.constant 0 : i32
    %c0_i32_2 = arith.constant 0 : i32
    return %c0_i32, %c0_i32_0, %c0_i32_1 : i32, i32, i32
  }
  func.func @transform_2(%arg0: i32) -> (i32, i32) {
    %c0_i32 = arith.constant 0 : i32
    %c0_i32_0 = arith.constant 0 : i32
    %c0_i32_1 = arith.constant 0 : i32
    return %c0_i32, %c0_i32_0 : i32, i32
  }
  func.func @transform_3(%arg0: i32) -> (i32, i32) {
    %c0_i32 = arith.constant 0 : i32
    %c0_i32_0 = arith.constant 0 : i32
    %c0_i32_1 = arith.constant 0 : i32
    return %c0_i32, %c0_i32_0 : i32, i32
  }
  func.func @transform_4(%arg0: i32) -> (i32, i32) {
    %c0_i32 = arith.constant 0 : i32
    %c0_i32_0 = arith.constant 0 : i32
    %c0_i32_1 = arith.constant 0 : i32
    return %c0_i32, %c0_i32_0 : i32, i32
  }
  func.func @transform_5(%arg0: i32) -> (i32, i32) {
    %c0_i32 = arith.constant 0 : i32
    %c0_i32_0 = arith.constant 0 : i32
    %c0_i32_1 = arith.constant 0 : i32
    return %c0_i32, %c0_i32_0 : i32, i32
  }
  func.func @transform_6(%arg0: i32) -> (i32, i32) {
    %c0_i32 = arith.constant 0 : i32
    %c0_i32_0 = arith.constant 0 : i32
    %c0_i32_1 = arith.constant 0 : i32
    return %c0_i32, %c0_i32_0 : i32, i32
  }
  func.func @transform_7(%arg0: i32) -> (i32, i32, i32) {
    %c0_i32 = arith.constant 0 : i32
    %c0_i32_0 = arith.constant 0 : i32
    %c0_i32_1 = arith.constant 0 : i32
    %c0_i32_2 = arith.constant 0 : i32
    return %c0_i32, %c0_i32_0, %c0_i32_1 : i32, i32, i32
  }
  func.func @transform_8(%arg0: i32) -> (i32, i32, i32) {
    %c0_i32 = arith.constant 0 : i32
    %c0_i32_0 = arith.constant 0 : i32
    %c0_i32_1 = arith.constant 0 : i32
    %c0_i32_2 = arith.constant 0 : i32
    return %c0_i32, %c0_i32_0, %c0_i32_1 : i32, i32, i32
  }
  func.func @transform_9(%arg0: i32) -> (i32, i32) {
    %c0_i32 = arith.constant 0 : i32
    %c0_i32_0 = arith.constant 0 : i32
    %c0_i32_1 = arith.constant 0 : i32
    return %c0_i32, %c0_i32_0 : i32, i32
  }
  func.func @transform_10(%arg0: i32) -> (i32, i32) {
    %c0_i32 = arith.constant 0 : i32
    %c0_i32_0 = arith.constant 0 : i32
    %c0_i32_1 = arith.constant 0 : i32
    return %c0_i32, %c0_i32_0 : i32, i32
  }
  func.func @transform_11(%arg0: i32) -> (i32, i32) {
    %c0_i32 = arith.constant 0 : i32
    %c0_i32_0 = arith.constant 0 : i32
    %c0_i32_1 = arith.constant 0 : i32
    return %c0_i32, %c0_i32_0 : i32, i32
  }
  func.func @transform_12(%arg0: i32) -> (i32, i32) {
    %c0_i32 = arith.constant 0 : i32
    %c0_i32_0 = arith.constant 0 : i32
    %c0_i32_1 = arith.constant 0 : i32
    return %c0_i32, %c0_i32_0 : i32, i32
  }
  func.func @transform_13(%arg0: i32) -> (i32, i32) {
    %c0_i32 = arith.constant 0 : i32
    %c0_i32_0 = arith.constant 0 : i32
    %c0_i32_1 = arith.constant 0 : i32
    return %c0_i32, %c0_i32_0 : i32, i32
  }
  func.func @transform_14(%arg0: i32) -> (i32, i32) {
    %c0_i32 = arith.constant 0 : i32
    %c0_i32_0 = arith.constant 0 : i32
    %c0_i32_1 = arith.constant 0 : i32
    return %c0_i32, %c0_i32_0 : i32, i32
  }
  func.func @transform_15(%arg0: i32) -> (i32, i32) {
    %c0_i32 = arith.constant 0 : i32
    %c0_i32_0 = arith.constant 0 : i32
    %c0_i32_1 = arith.constant 0 : i32
    return %c0_i32, %c0_i32_0 : i32, i32
  }
  func.func @transform_16(%arg0: i32) -> (i32, i32) {
    %c0_i32 = arith.constant 0 : i32
    %c0_i32_0 = arith.constant 0 : i32
    %c0_i32_1 = arith.constant 0 : i32
    return %c0_i32, %c0_i32_0 : i32, i32
  }
  func.func @transform_17(%arg0: i32) -> (i32, i32) {
    %c0_i32 = arith.constant 0 : i32
    %c0_i32_0 = arith.constant 0 : i32
    %c0_i32_1 = arith.constant 0 : i32
    return %c0_i32, %c0_i32_0 : i32, i32
  }
  func.func @transform_18(%arg0: i32) -> (i32, i32) {
    %c0_i32 = arith.constant 0 : i32
    %c0_i32_0 = arith.constant 0 : i32
    %c0_i32_1 = arith.constant 0 : i32
    return %c0_i32, %c0_i32_0 : i32, i32
  }
  func.func @transform_19(%arg0: i32) -> (i32, i32, i32) {
    %c0_i32 = arith.constant 0 : i32
    %c0_i32_0 = arith.constant 0 : i32
    %c0_i32_1 = arith.constant 0 : i32
    %c0_i32_2 = arith.constant 0 : i32
    return %c0_i32, %c0_i32_0, %c0_i32_1 : i32, i32, i32
  }
  func.func @transform_20(%arg0: i32) -> (i32, i32) {
    %c0_i32 = arith.constant 0 : i32
    %c0_i32_0 = arith.constant 0 : i32
    %c0_i32_1 = arith.constant 0 : i32
    return %c0_i32, %c0_i32_0 : i32, i32
  }
  func.func @transform_21(%arg0: i32) -> (i32, i32) {
    %c0_i32 = arith.constant 0 : i32
    %c0_i32_0 = arith.constant 0 : i32
    %c0_i32_1 = arith.constant 0 : i32
    return %c0_i32, %c0_i32_0 : i32, i32
  }
  func.func @transform_22(%arg0: i32) -> (i32, i32) {
    %c0_i32 = arith.constant 0 : i32
    %c0_i32_0 = arith.constant 0 : i32
    %c0_i32_1 = arith.constant 0 : i32
    return %c0_i32, %c0_i32_0 : i32, i32
  }
  func.func @transform_23(%arg0: i32) -> (i32, i32, i32) {
    %c0_i32 = arith.constant 0 : i32
    %c0_i32_0 = arith.constant 0 : i32
    %c0_i32_1 = arith.constant 0 : i32
    %c0_i32_2 = arith.constant 0 : i32
    return %c0_i32, %c0_i32_0, %c0_i32_1 : i32, i32, i32
  }
  func.func @transform_24(%arg0: i32) -> (i32, i32) {
    %c0_i32 = arith.constant 0 : i32
    %c0_i32_0 = arith.constant 0 : i32
    %c0_i32_1 = arith.constant 0 : i32
    return %c0_i32, %c0_i32_0 : i32, i32
  }
  func.func @transform_25(%arg0: i32) -> (i32, i32) {
    %c0_i32 = arith.constant 0 : i32
    %c0_i32_0 = arith.constant 0 : i32
    %c0_i32_1 = arith.constant 0 : i32
    return %c0_i32, %c0_i32_0 : i32, i32
  }
  func.func @transform_26(%arg0: i32) -> (i32, i32) {
    %c0_i32 = arith.constant 0 : i32
    %c0_i32_0 = arith.constant 0 : i32
    %c0_i32_1 = arith.constant 0 : i32
    return %c0_i32, %c0_i32_0 : i32, i32
  }
  func.func @transform_27(%arg0: i32) -> (i32, i32) {
    %c0_i32 = arith.constant 0 : i32
    %c0_i32_0 = arith.constant 0 : i32
    %c0_i32_1 = arith.constant 0 : i32
    return %c0_i32, %c0_i32_0 : i32, i32
  }
  func.func @transform_28(%arg0: i32) -> (i32, i32) {
    %c0_i32 = arith.constant 0 : i32
    %c0_i32_0 = arith.constant 0 : i32
    %c0_i32_1 = arith.constant 0 : i32
    return %c0_i32, %c0_i32_0 : i32, i32
  }
  func.func @transform_29(%arg0: i32) -> (i32, i32) {
    %c0_i32 = arith.constant 0 : i32
    %c0_i32_0 = arith.constant 0 : i32
    %c0_i32_1 = arith.constant 0 : i32
    return %c0_i32, %c0_i32_0 : i32, i32
  }
  func.func @transform_30(%arg0: i32) -> (i32, i32) {
    %c0_i32 = arith.constant 0 : i32
    %c0_i32_0 = arith.constant 0 : i32
    %c0_i32_1 = arith.constant 0 : i32
    return %c0_i32, %c0_i32_0 : i32, i32
  }
  func.func @transform_31(%arg0: i32) -> (i32, i32) {
    %c0_i32 = arith.constant 0 : i32
    %c0_i32_0 = arith.constant 0 : i32
    %c0_i32_1 = arith.constant 0 : i32
    return %c0_i32, %c0_i32_0 : i32, i32
  }
  func.func @transform_32(%arg0: i32) -> (i32, i32) {
    %c0_i32 = arith.constant 0 : i32
    %c0_i32_0 = arith.constant 0 : i32
    %c0_i32_1 = arith.constant 0 : i32
    return %c0_i32, %c0_i32_0 : i32, i32
  }
  func.func @transform_33(%arg0: i32) -> (i32, i32) {
    %c0_i32 = arith.constant 0 : i32
    %c0_i32_0 = arith.constant 0 : i32
    %c0_i32_1 = arith.constant 0 : i32
    return %c0_i32, %c0_i32_0 : i32, i32
  }
  func.func @transform_34(%arg0: i32) -> (i32, i32) {
    %c0_i32 = arith.constant 0 : i32
    %c0_i32_0 = arith.constant 0 : i32
    %c0_i32_1 = arith.constant 0 : i32
    return %c0_i32, %c0_i32_0 : i32, i32
  }
  func.func @transform_35(%arg0: i32) -> (i32, i32) {
    %c0_i32 = arith.constant 0 : i32
    %c0_i32_0 = arith.constant 0 : i32
    %c0_i32_1 = arith.constant 0 : i32
    return %c0_i32, %c0_i32_0 : i32, i32
  }
  func.func @transform_36(%arg0: i32) -> (i32, i32) {
    %c0_i32 = arith.constant 0 : i32
    %c0_i32_0 = arith.constant 0 : i32
    %c0_i32_1 = arith.constant 0 : i32
    return %c0_i32, %c0_i32_0 : i32, i32
  }
  func.func @transform_37(%arg0: i32) -> (i32, i32) {
    %c0_i32 = arith.constant 0 : i32
    %c0_i32_0 = arith.constant 0 : i32
    return %arg0, %c0_i32 : i32, i32
  }
}

</mosaic_0001>

<llo_original>
// kernel: resnet_encoder_forward.1
$region0: #{resnet_encoder_forward.1}
  #allocation0 [shape = 'u32[]', space=smem, size = 0x4, offset = 0x4, fixed_abs, tag = 'smem constant byte address 0x4 - core index']
  #allocation1 [shape = 'u32[72,128]{1,0:T(1,128)}', space=vmem, size = 0x9000, scoped, tag = 'internal scratch']
  %s0 = inlined_call_operand.smem [shape: u32[38], index: -1, kind: input, shape index: {}]
  %s1 = sld [smem:[%s0]]
  %s2 = scalar_lea.smem %s0, 1
  %s3 = sld [smem:[%s2]]
  %s4 = scalar_lea.smem %s0, 2
  %s5 = sld [smem:[%s4]]
  %s6 = scalar_lea.smem %s0, 3
  %s7 = sld [smem:[%s6]]
  %s8 = scalar_lea.smem %s0, 4
  %s9 = sld [smem:[%s8]]
  %s10 = scalar_lea.smem %s0, 5
  %s11 = sld [smem:[%s10]]
  %s12 = scalar_lea.smem %s0, 6
  %s13 = sld [smem:[%s12]]
  %s14 = scalar_lea.smem %s0, 7
  %s15 = sld [smem:[%s14]]
  %s16 = scalar_lea.smem %s0, 8
  %s17 = sld [smem:[%s16]]
  %s18 = scalar_lea.smem %s0, 9
  %s19 = sld [smem:[%s18]]
  %s20 = scalar_lea.smem %s0, 10
  %s21 = sld [smem:[%s20]]
  %s22 = scalar_lea.smem %s0, 11
  %s23 = sld [smem:[%s22]]
  %s24 = scalar_lea.smem %s0, 12
  %s25 = sld [smem:[%s24]]
  %s26 = scalar_lea.smem %s0, 13
  %s27 = sld [smem:[%s26]]
  %s28 = scalar_lea.smem %s0, 14
  %s29 = sld [smem:[%s28]]
  %s30 = scalar_lea.smem %s0, 15
  %s31 = sld [smem:[%s30]]
  %s32 = scalar_lea.smem %s0, 16
  %s33 = sld [smem:[%s32]]
  %s34 = scalar_lea.smem %s0, 17
  %s35 = sld [smem:[%s34]]
  %s36 = scalar_lea.smem %s0, 18
  %s37 = sld [smem:[%s36]]
  %s38 = scalar_lea.smem %s0, 19
  %s39 = sld [smem:[%s38]]
  %s40 = scalar_lea.smem %s0, 20
  %s41 = sld [smem:[%s40]]
  %s42 = scalar_lea.smem %s0, 21
  %s43 = sld [smem:[%s42]]
  %s44 = scalar_lea.smem %s0, 22
  %s45 = sld [smem:[%s44]]
  %s46 = scalar_lea.smem %s0, 23
  %s47 = sld [smem:[%s46]]
  %s48 = scalar_lea.smem %s0, 24
  %s49 = sld [smem:[%s48]]
  %s50 = scalar_lea.smem %s0, 25
  %s51 = sld [smem:[%s50]]
  %s52 = scalar_lea.smem %s0, 26
  %s53 = sld [smem:[%s52]]
  %s54 = scalar_lea.smem %s0, 27
  %s55 = sld [smem:[%s54]]
  %s56 = scalar_lea.smem %s0, 28
  %s57 = sld [smem:[%s56]]
  %s58 = scalar_lea.smem %s0, 29
  %s59 = sld [smem:[%s58]]
  %s60 = scalar_lea.smem %s0, 30
  %s61 = sld [smem:[%s60]]
  %s62 = scalar_lea.smem %s0, 31
  %s63 = sld [smem:[%s62]]
  %s64 = scalar_lea.smem %s0, 32
  %s65 = sld [smem:[%s64]]
  %s66 = scalar_lea.smem %s0, 33
  %s67 = sld [smem:[%s66]]
  %s68 = scalar_lea.smem %s0, 34
  %s69 = sld [smem:[%s68]]
  %s70 = scalar_lea.smem %s0, 35
  %s71 = sld [smem:[%s70]]
  %s72 = scalar_lea.smem %s0, 36
  %s73 = sld [smem:[%s72]]
  %s74 = scalar_lea.smem %s0, 37
  %s75 = sld [smem:[%s74]]
  %s76 = sld [smem:[#allocation0]]
  $region226: #{resnet_encoder_forward.1} parent=0
    _
  %s78 = ssub.s32 1, %s76
  %s79 = scalar_select 0, %s78, %s76
  $region1: #{resnet_encoder_forward.1} parent=0
    #allocation2 [shape = 'u8[512]{0}', space=vmem, size = 0x400, scoped, tag = 'input window, operand 4, single buffered']
    #allocation3 [shape = 's32[1]{0}', space=sflag, size = 0x4, scoped, tag = 'scoped memory for resnet_encoder_forward.1']
    #allocation4 [shape = 'u8[16384]{0}', space=vmem, size = 0x4000, scoped, tag = 'input window, operand 6, single buffered']
    #allocation5 [shape = 's32[1]{0}', space=sflag, size = 0x4, scoped, tag = 'scoped memory for resnet_encoder_forward.1']
    #allocation6 [shape = 'u8[12288]{0}', space=vmem, size = 0x3000, scoped, tag = 'input window, operand 7, single buffered']
    #allocation7 [shape = 'u8[512]{0}', space=vmem, size = 0x400, scoped, tag = 'input window, operand 12, single buffered']
    #allocation8 [shape = 's32[1]{0}', space=sflag, size = 0x4, scoped, tag = 'scoped memory for resnet_encoder_forward.1']
    #allocation9 [shape = 'u8[512]{0}', space=vmem, size = 0x400, scoped, tag = 'input window, operand 13, single buffered']
    #allocation10 [shape = 'u8[512]{0}', space=vmem, size = 0x400, scoped, tag = 'input window, operand 15, single buffered']
    #allocation11 [shape = 's32[1]{0}', space=sflag, size = 0x4, scoped, tag = 'scoped memory for resnet_encoder_forward.1']
    #allocation12 [shape = 'u8[512]{0}', space=vmem, size = 0x400, scoped, tag = 'input window, operand 16, single buffered']
    #allocation13 [shape = 'u8[8192]{0}', space=vmem, size = 0x2000, scoped, tag = 'input window, operand 18, single buffered']
    #allocation14 [shape = 's32[1]{0}', space=sflag, size = 0x4, scoped, tag = 'scoped memory for resnet_encoder_forward.1']
    #allocation15 [shape = 'u8[16384]{0}', space=vmem, size = 0x4000, scoped, tag = 'input window, operand 20, single buffered']
    #allocation16 [shape = 'u8[512]{0}', space=vmem, size = 0x400, scoped, tag = 'input window, operand 21, single buffered']
    #allocation17 [shape = 's32[1]{0}', space=sflag, size = 0x4, scoped, tag = 'scoped memory for resnet_encoder_forward.1']
    #allocation18 [shape = 'u8[512]{0}', space=vmem, size = 0x400, scoped, tag = 'input window, operand 22, single buffered']
    #allocation19 [shape = 'u8[512]{0}', space=vmem, size = 0x400, scoped, tag = 'input window, operand 25, single buffered']
    #allocation20 [shape = 's32[1]{0}', space=sflag, size = 0x4, scoped, tag = 'scoped memory for resnet_encoder_forward.1']
    #allocation21 [shape = 'u8[512]{0}', space=vmem, size = 0x400, scoped, tag = 'input window, operand 26, single buffered']
    #allocation22 [shape = 'u8[512]{0}', space=vmem, size = 0x400, scoped, tag = 'input window, operand 30, single buffered']
    #allocation23 [shape = 's32[1]{0}', space=sflag, size = 0x4, scoped, tag = 'scoped memory for resnet_encoder_forward.1']
    #allocation24 [shape = 'u8[512]{0}', space=vmem, size = 0x400, scoped, tag = 'input window, operand 31, single buffered']
    #allocation25 [shape = 'u8[32768]{0}', space=vmem, size = 0x8000, scoped, tag = 'input window, operand 32, single buffered']
    #allocation26 [shape = 's32[1]{0}', space=sflag, size = 0x4, scoped, tag = 'scoped memory for resnet_encoder_forward.1']
    #allocation27 [shape = 'u8[196608]{0}', space=vmem, size = 0x30000, scoped, tag = 'input window, operand 34, single buffered']
    %80 = vsyncpa [#allocation3], 0
    %81 = vsyncpa [#allocation5], 0
    %82 = vsyncpa [#allocation8], 0
    %83 = vsyncpa [#allocation11], 0
    %84 = vsyncpa [#allocation14], 0
    %85 = vsyncpa [#allocation17], 0
    %86 = vsyncpa [#allocation20], 0
    %87 = vsyncpa [#allocation23], 0
    %88 = vsyncpa [#allocation26], 0
    // Predicated region
    $region2: #{resnet_encoder_forward.1} parent=1 // pred_check
      _
    $region3: #{resnet_encoder_forward.1} parent=1 // pred_check_branch
      %90 = sbr.rel (0) target = $region5
    $region4: #{resnet_encoder_forward.1} parent=1 // pred_region
      _
    $region5: #{resnet_encoder_forward.1} parent=1 // pred_fallthru
      _
    // Predicated region
    $region6: #{resnet_encoder_forward.1} parent=1 // pred_check
      _
    $region7: #{resnet_encoder_forward.1} parent=1 // pred_check_branch
      %92 = sbr.rel (0) target = $region9
    $region8: #{resnet_encoder_forward.1} parent=1 // pred_region
      _
    $region9: #{resnet_encoder_forward.1} parent=1 // pred_fallthru
      _
    // Predicated region
    $region10: #{resnet_encoder_forward.1} parent=1 // pred_check
      _
    $region11: #{resnet_encoder_forward.1} parent=1 // pred_check_branch
      %94 = sbr.rel (0) target = $region13
    $region12: #{resnet_encoder_forward.1} parent=1 // pred_region
      _
    $region13: #{resnet_encoder_forward.1} parent=1 // pred_fallthru
      _
    // Predicated region
    $region14: #{resnet_encoder_forward.1} parent=1 // pred_check
      _
    $region15: #{resnet_encoder_forward.1} parent=1 // pred_check_branch
      %96 = sbr.rel (0) target = $region17
    $region16: #{resnet_encoder_forward.1} parent=1 // pred_region
      _
    $region17: #{resnet_encoder_forward.1} parent=1 // pred_fallthru
      _
    // Predicated region
    $region18: #{resnet_encoder_forward.1} parent=1 // pred_check
      _
    $region19: #{resnet_encoder_forward.1} parent=1 // pred_check_branch
      %98 = sbr.rel (0) target = $region21
    $region20: #{resnet_encoder_forward.1} parent=1 // pred_region
      %100 = vsyncadd [#allocation3], 0
      %s102 = sshll.u32 %s9, 4
      %s103 = int_to_ptr.hbm [resolvable:$true] %s102
      %s104 = sshll.u32 [#allocation2], 4
      %s105 = int_to_ptr.vmem [resolvable:$true] %s104
      %107 = dma.hbm_to_vmem [thread:$0]  %s103, 16, %s105, [#allocation3]
    $region21: #{resnet_encoder_forward.1} parent=1 // pred_fallthru
      _
    // Predicated region
    $region22: #{resnet_encoder_forward.1} parent=1 // pred_check
      _
    $region23: #{resnet_encoder_forward.1} parent=1 // pred_check_branch
      %109 = sbr.rel (0) target = $region25
    $region24: #{resnet_encoder_forward.1} parent=1 // pred_region
      _
    $region25: #{resnet_encoder_forward.1} parent=1 // pred_fallthru
      _
    // Predicated region
    $region26: #{resnet_encoder_forward.1} parent=1 // pred_check
      _
    $region27: #{resnet_encoder_forward.1} parent=1 // pred_check_branch
      %111 = sbr.rel (0) target = $region29
    $region28: #{resnet_encoder_forward.1} parent=1 // pred_region
      %113 = vsyncadd [#allocation5], 0
      %s114 = sshll.u32 %s13, 4
      %s115 = int_to_ptr.hbm [resolvable:$true] %s114
      %s116 = sshll.u32 [#allocation4], 4
      %s117 = int_to_ptr.vmem [resolvable:$true] %s116
      %122 = dma.hbm_to_vmem [thread:$0]  %s115, 512, %s117, [#allocation5], 128, 128, 8
    $region29: #{resnet_encoder_forward.1} parent=1 // pred_fallthru
      _
    // Predicated region
    $region30: #{resnet_encoder_forward.1} parent=1 // pred_check
      _
    $region31: #{resnet_encoder_forward.1} parent=1 // pred_check_branch
      %124 = sbr.rel (0) target = $region33
    $region32: #{resnet_encoder_forward.1} parent=1 // pred_region
      %126 = vsyncadd [#allocation5], 0
      %s127 = sshll.u32 %s15, 4
      %s128 = int_to_ptr.hbm [resolvable:$true] %s127
      %s129 = sshll.u32 [#allocation6], 4
      %s130 = int_to_ptr.vmem [resolvable:$true] %s129
      %135 = dma.hbm_to_vmem [thread:$0]  %s128, 384, %s130, [#allocation5], 64, 64, 4
    $region33: #{resnet_encoder_forward.1} parent=1 // pred_fallthru
      _
    // Predicated region
    $region34: #{resnet_encoder_forward.1} parent=1 // pred_check
      _
    $region35: #{resnet_encoder_forward.1} parent=1 // pred_check_branch
      %137 = sbr.rel (0) target = $region37
    $region36: #{resnet_encoder_forward.1} parent=1 // pred_region
      _
    $region37: #{resnet_encoder_forward.1} parent=1 // pred_fallthru
      _
    // Predicated region
    $region38: #{resnet_encoder_forward.1} parent=1 // pred_check
      _
    $region39: #{resnet_encoder_forward.1} parent=1 // pred_check_branch
      %139 = sbr.rel (0) target = $region41
    $region40: #{resnet_encoder_forward.1} parent=1 // pred_region
      _
    $region41: #{resnet_encoder_forward.1} parent=1 // pred_fallthru
      _
    // Predicated region
    $region42: #{resnet_encoder_forward.1} parent=1 // pred_check
      _
    $region43: #{resnet_encoder_forward.1} parent=1 // pred_check_branch
      %141 = sbr.rel (0) target = $region45
    $region44: #{resnet_encoder_forward.1} parent=1 // pred_region
      _
    $region45: #{resnet_encoder_forward.1} parent=1 // pred_fallthru
      _
    // Predicated region
    $region46: #{resnet_encoder_forward.1} parent=1 // pred_check
      _
    $region47: #{resnet_encoder_forward.1} parent=1 // pred_check_branch
      %143 = sbr.rel (0) target = $region49
    $region48: #{resnet_encoder_forward.1} parent=1 // pred_region
      _
    $region49: #{resnet_encoder_forward.1} parent=1 // pred_fallthru
      _
    // Predicated region
    $region50: #{resnet_encoder_forward.1} parent=1 // pred_check
      _
    $region51: #{resnet_encoder_forward.1} parent=1 // pred_check_branch
      %145 = sbr.rel (0) target = $region53
    $region52: #{resnet_encoder_forward.1} parent=1 // pred_region
      %147 = vsyncadd [#allocation8], 0
      %s149 = sshll.u32 %s25, 4
      %s150 = int_to_ptr.hbm [resolvable:$true] %s149
      %s151 = sshll.u32 [#allocation7], 4
      %s152 = int_to_ptr.vmem [resolvable:$true] %s151
      %154 = dma.hbm_to_vmem [thread:$0]  %s150, 16, %s152, [#allocation8]
    $region53: #{resnet_encoder_forward.1} parent=1 // pred_fallthru
      _
    // Predicated region
    $region54: #{resnet_encoder_forward.1} parent=1 // pred_check
      _
    $region55: #{resnet_encoder_forward.1} parent=1 // pred_check_branch
      %156 = sbr.rel (0) target = $region57
    $region56: #{resnet_encoder_forward.1} parent=1 // pred_region
      %158 = vsyncadd [#allocation8], 0
      %s160 = sshll.u32 %s27, 4
      %s161 = int_to_ptr.hbm [resolvable:$true] %s160
      %s162 = sshll.u32 [#allocation9], 4
      %s163 = int_to_ptr.vmem [resolvable:$true] %s162
      %165 = dma.hbm_to_vmem [thread:$0]  %s161, 16, %s163, [#allocation8]
    $region57: #{resnet_encoder_forward.1} parent=1 // pred_fallthru
      _
    // Predicated region
    $region58: #{resnet_encoder_forward.1} parent=1 // pred_check
      _
    $region59: #{resnet_encoder_forward.1} parent=1 // pred_check_branch
      %167 = sbr.rel (0) target = $region61
    $region60: #{resnet_encoder_forward.1} parent=1 // pred_region
      _
    $region61: #{resnet_encoder_forward.1} parent=1 // pred_fallthru
      _
    // Predicated region
    $region62: #{resnet_encoder_forward.1} parent=1 // pred_check
      _
    $region63: #{resnet_encoder_forward.1} parent=1 // pred_check_branch
      %169 = sbr.rel (0) target = $region65
    $region64: #{resnet_encoder_forward.1} parent=1 // pred_region
      %171 = vsyncadd [#allocation11], 0
      %s173 = sshll.u32 %s31, 4
      %s174 = int_to_ptr.hbm [resolvable:$true] %s173
      %s175 = sshll.u32 [#allocation10], 4
      %s176 = int_to_ptr.vmem [resolvable:$true] %s175
      %178 = dma.hbm_to_vmem [thread:$0]  %s174, 16, %s176, [#allocation11]
    $region65: #{resnet_encoder_forward.1} parent=1 // pred_fallthru
      _
    // Predicated region
    $region66: #{resnet_encoder_forward.1} parent=1 // pred_check
      _
    $region67: #{resnet_encoder_forward.1} parent=1 // pred_check_branch
      %180 = sbr.rel (0) target = $region69
    $region68: #{resnet_encoder_forward.1} parent=1 // pred_region
      %182 = vsyncadd [#allocation11], 0
      %s184 = sshll.u32 %s33, 4
      %s185 = int_to_ptr.hbm [resolvable:$true] %s184
      %s186 = sshll.u32 [#allocation12], 4
      %s187 = int_to_ptr.vmem [resolvable:$true] %s186
      %189 = dma.hbm_to_vmem [thread:$0]  %s185, 16, %s187, [#allocation11]
    $region69: #{resnet_encoder_forward.1} parent=1 // pred_fallthru
      _
    // Predicated region
    $region70: #{resnet_encoder_forward.1} parent=1 // pred_check
      _
    $region71: #{resnet_encoder_forward.1} parent=1 // pred_check_branch
      %191 = sbr.rel (0) target = $region73
    $region72: #{resnet_encoder_forward.1} parent=1 // pred_region
      _
    $region73: #{resnet_encoder_forward.1} parent=1 // pred_fallthru
      _
    // Predicated region
    $region74: #{resnet_encoder_forward.1} parent=1 // pred_check
      _
    $region75: #{resnet_encoder_forward.1} parent=1 // pred_check_branch
      %193 = sbr.rel (0) target = $region77
    $region76: #{resnet_encoder_forward.1} parent=1 // pred_region
      %195 = vsyncadd [#allocation14], 0
      %s196 = sshll.u32 %s37, 4
      %s197 = int_to_ptr.hbm [resolvable:$true] %s196
      %s198 = sshll.u32 [#allocation13], 4
      %s199 = int_to_ptr.vmem [resolvable:$true] %s198
      %204 = dma.hbm_to_vmem [thread:$0]  %s197, 256, %s199, [#allocation14], 128, 128, 8
    $region77: #{resnet_encoder_forward.1} parent=1 // pred_fallthru
      _
    // Predicated region
    $region78: #{resnet_encoder_forward.1} parent=1 // pred_check
      _
    $region79: #{resnet_encoder_forward.1} parent=1 // pred_check_branch
      %206 = sbr.rel (0) target = $region81
    $region80: #{resnet_encoder_forward.1} parent=1 // pred_region
      _
    $region81: #{resnet_encoder_forward.1} parent=1 // pred_fallthru
      _
    // Predicated region
    $region82: #{resnet_encoder_forward.1} parent=1 // pred_check
      _
    $region83: #{resnet_encoder_forward.1} parent=1 // pred_check_branch
      %208 = sbr.rel (0) target = $region85
    $region84: #{resnet_encoder_forward.1} parent=1 // pred_region
      %210 = vsyncadd [#allocation14], 0
      %s211 = sshll.u32 %s41, 4
      %s212 = int_to_ptr.hbm [resolvable:$true] %s211
      %s213 = sshll.u32 [#allocation15], 4
      %s214 = int_to_ptr.vmem [resolvable:$true] %s213
      %219 = dma.hbm_to_vmem [thread:$0]  %s212, 512, %s214, [#allocation14], 64, 64, 4
    $region85: #{resnet_encoder_forward.1} parent=1 // pred_fallthru
      _
    // Predicated region
    $region86: #{resnet_encoder_forward.1} parent=1 // pred_check
      _
    $region87: #{resnet_encoder_forward.1} parent=1 // pred_check_branch
      %221 = sbr.rel (0) target = $region89
    $region88: #{resnet_encoder_forward.1} parent=1 // pred_region
      %223 = vsyncadd [#allocation17], 0
      %s225 = sshll.u32 %s43, 4
      %s226 = int_to_ptr.hbm [resolvable:$true] %s225
      %s227 = sshll.u32 [#allocation16], 4
      %s228 = int_to_ptr.vmem [resolvable:$true] %s227
      %230 = dma.hbm_to_vmem [thread:$0]  %s226, 16, %s228, [#allocation17]
    $region89: #{resnet_encoder_forward.1} parent=1 // pred_fallthru
      _
    // Predicated region
    $region90: #{resnet_encoder_forward.1} parent=1 // pred_check
      _
    $region91: #{resnet_encoder_forward.1} parent=1 // pred_check_branch
      %232 = sbr.rel (0) target = $region93
    $region92: #{resnet_encoder_forward.1} parent=1 // pred_region
      %234 = vsyncadd [#allocation17], 0
      %s236 = sshll.u32 %s45, 4
      %s237 = int_to_ptr.hbm [resolvable:$true] %s236
      %s238 = sshll.u32 [#allocation18], 4
      %s239 = int_to_ptr.vmem [resolvable:$true] %s238
      %241 = dma.hbm_to_vmem [thread:$0]  %s237, 16, %s239, [#allocation17]
    $region93: #{resnet_encoder_forward.1} parent=1 // pred_fallthru
      _
    // Predicated region
    $region94: #{resnet_encoder_forward.1} parent=1 // pred_check
      _
    $region95: #{resnet_encoder_forward.1} parent=1 // pred_check_branch
      %243 = sbr.rel (0) target = $region97
    $region96: #{resnet_encoder_forward.1} parent=1 // pred_region
      _
    $region97: #{resnet_encoder_forward.1} parent=1 // pred_fallthru
      _
    // Predicated region
    $region98: #{resnet_encoder_forward.1} parent=1 // pred_check
      _
    $region99: #{resnet_encoder_forward.1} parent=1 // pred_check_branch
      %245 = sbr.rel (0) target = $region101
    $region100: #{resnet_encoder_forward.1} parent=1 // pred_region
      _
    $region101: #{resnet_encoder_forward.1} parent=1 // pred_fallthru
      _
    // Predicated region
    $region102: #{resnet_encoder_forward.1} parent=1 // pred_check
      _
    $region103: #{resnet_encoder_forward.1} parent=1 // pred_check_branch
      %247 = sbr.rel (0) target = $region105
    $region104: #{resnet_encoder_forward.1} parent=1 // pred_region
      %249 = vsyncadd [#allocation20], 0
      %s251 = sshll.u32 %s51, 4
      %s252 = int_to_ptr.hbm [resolvable:$true] %s251
      %s253 = sshll.u32 [#allocation19], 4
      %s254 = int_to_ptr.vmem [resolvable:$true] %s253
      %256 = dma.hbm_to_vmem [thread:$0]  %s252, 16, %s254, [#allocation20]
    $region105: #{resnet_encoder_forward.1} parent=1 // pred_fallthru
      _
    // Predicated region
    $region106: #{resnet_encoder_forward.1} parent=1 // pred_check
      _
    $region107: #{resnet_encoder_forward.1} parent=1 // pred_check_branch
      %258 = sbr.rel (0) target = $region109
    $region108: #{resnet_encoder_forward.1} parent=1 // pred_region
      %260 = vsyncadd [#allocation20], 0
      %s262 = sshll.u32 %s53, 4
      %s263 = int_to_ptr.hbm [resolvable:$true] %s262
      %s264 = sshll.u32 [#allocation21], 4
      %s265 = int_to_ptr.vmem [resolvable:$true] %s264
      %267 = dma.hbm_to_vmem [thread:$0]  %s263, 16, %s265, [#allocation20]
    $region109: #{resnet_encoder_forward.1} parent=1 // pred_fallthru
      _
    // Predicated region
    $region110: #{resnet_encoder_forward.1} parent=1 // pred_check
      _
    $region111: #{resnet_encoder_forward.1} parent=1 // pred_check_branch
      %269 = sbr.rel (0) target = $region113
    $region112: #{resnet_encoder_forward.1} parent=1 // pred_region
      _
    $region113: #{resnet_encoder_forward.1} parent=1 // pred_fallthru
      _
    // Predicated region
    $region114: #{resnet_encoder_forward.1} parent=1 // pred_check
      _
    $region115: #{resnet_encoder_forward.1} parent=1 // pred_check_branch
      %271 = sbr.rel (0) target = $region117
    $region116: #{resnet_encoder_forward.1} parent=1 // pred_region
      _
    $region117: #{resnet_encoder_forward.1} parent=1 // pred_fallthru
      _
    // Predicated region
    $region118: #{resnet_encoder_forward.1} parent=1 // pred_check
      _
    $region119: #{resnet_encoder_forward.1} parent=1 // pred_check_branch
      %273 = sbr.rel (0) target = $region121
    $region120: #{resnet_encoder_forward.1} parent=1 // pred_region
      _
    $region121: #{resnet_encoder_forward.1} parent=1 // pred_fallthru
      _
    // Predicated region
    $region122: #{resnet_encoder_forward.1} parent=1 // pred_check
      _
    $region123: #{resnet_encoder_forward.1} parent=1 // pred_check_branch
      %275 = sbr.rel (0) target = $region125
    $region124: #{resnet_encoder_forward.1} parent=1 // pred_region
      %277 = vsyncadd [#allocation23], 0
      %s279 = sshll.u32 %s61, 4
      %s280 = int_to_ptr.hbm [resolvable:$true] %s279
      %s281 = sshll.u32 [#allocation22], 4
      %s282 = int_to_ptr.vmem [resolvable:$true] %s281
      %284 = dma.hbm_to_vmem [thread:$0]  %s280, 16, %s282, [#allocation23]
    $region125: #{resnet_encoder_forward.1} parent=1 // pred_fallthru
      _
    // Predicated region
    $region126: #{resnet_encoder_forward.1} parent=1 // pred_check
      _
    $region127: #{resnet_encoder_forward.1} parent=1 // pred_check_branch
      %286 = sbr.rel (0) target = $region129
    $region128: #{resnet_encoder_forward.1} parent=1 // pred_region
      %288 = vsyncadd [#allocation23], 0
      %s290 = sshll.u32 %s63, 4
      %s291 = int_to_ptr.hbm [resolvable:$true] %s290
      %s292 = sshll.u32 [#allocation24], 4
      %s293 = int_to_ptr.vmem [resolvable:$true] %s292
      %295 = dma.hbm_to_vmem [thread:$0]  %s291, 16, %s293, [#allocation23]
    $region129: #{resnet_encoder_forward.1} parent=1 // pred_fallthru
      _
    // Predicated region
    $region130: #{resnet_encoder_forward.1} parent=1 // pred_check
      _
    $region131: #{resnet_encoder_forward.1} parent=1 // pred_check_branch
      %297 = sbr.rel (0) target = $region133
    $region132: #{resnet_encoder_forward.1} parent=1 // pred_region
      %299 = vsyncadd [#allocation26], 0
      %s300 = sshll.u32 %s65, 4
      %s301 = int_to_ptr.hbm [resolvable:$true] %s300
      %s302 = sshll.u32 [#allocation25], 4
      %s303 = int_to_ptr.vmem [resolvable:$true] %s302
      %308 = dma.hbm_to_vmem [thread:$0]  %s301, 1024, %s303, [#allocation26], 128, 128, 8
    $region133: #{resnet_encoder_forward.1} parent=1 // pred_fallthru
      _
    // Predicated region
    $region134: #{resnet_encoder_forward.1} parent=1 // pred_check
      _
    $region135: #{resnet_encoder_forward.1} parent=1 // pred_check_branch
      %310 = sbr.rel (0) target = $region137
    $region136: #{resnet_encoder_forward.1} parent=1 // pred_region
      _
    $region137: #{resnet_encoder_forward.1} parent=1 // pred_fallthru
      _
    // Predicated region
    $region138: #{resnet_encoder_forward.1} parent=1 // pred_check
      _
    $region139: #{resnet_encoder_forward.1} parent=1 // pred_check_branch
      %312 = sbr.rel (0) target = $region141
    $region140: #{resnet_encoder_forward.1} parent=1 // pred_region
      %314 = vsyncadd [#allocation26], 0
      %s315 = sshll.u32 %s69, 4
      %s316 = int_to_ptr.hbm [resolvable:$true] %s315
      %s317 = sshll.u32 [#allocation27], 4
      %s318 = int_to_ptr.vmem [resolvable:$true] %s317
      %323 = dma.hbm_to_vmem [thread:$0]  %s316, 6144, %s318, [#allocation26], 256, 256, 16
    $region141: #{resnet_encoder_forward.1} parent=1 // pred_fallthru
      _
    // Predicated region
    $region142: #{resnet_encoder_forward.1} parent=1 // pred_check
      _
    $region143: #{resnet_encoder_forward.1} parent=1 // pred_check_branch
      %325 = sbr.rel (0) target = $region145
    $region144: #{resnet_encoder_forward.1} parent=1 // pred_region
      _
    $region145: #{resnet_encoder_forward.1} parent=1 // pred_fallthru
      _
    // Predicated region
    $region146: #{resnet_encoder_forward.1} parent=1 // pred_check
      _
    $region147: #{resnet_encoder_forward.1} parent=1 // pred_check_branch
      %327 = sbr.rel (0) target = $region149
    $region148: #{resnet_encoder_forward.1} parent=1 // pred_region
      _
    $region149: #{resnet_encoder_forward.1} parent=1 // pred_fallthru
      _
    // Predicated region
    $region150: #{resnet_encoder_forward.1} parent=1 // pred_check
      _
    $region151: #{resnet_encoder_forward.1} parent=1 // pred_check_branch
      %329 = sbr.rel (0) target = $region153
    $region152: #{resnet_encoder_forward.1} parent=1 // pred_region
      %331 = dma.done [#allocation3], 16
    $region153: #{resnet_encoder_forward.1} parent=1 // pred_fallthru
      _
    // Predicated region
    $region154: #{resnet_encoder_forward.1} parent=1 // pred_check
      _
    $region155: #{resnet_encoder_forward.1} parent=1 // pred_check_branch
      %333 = sbr.rel (0) target = $region157
    $region156: #{resnet_encoder_forward.1} parent=1 // pred_region
      %335 = dma.done [#allocation5], 512
    $region157: #{resnet_encoder_forward.1} parent=1 // pred_fallthru
      _
    // Predicated region
    $region158: #{resnet_encoder_forward.1} parent=1 // pred_check
      _
    $region159: #{resnet_encoder_forward.1} parent=1 // pred_check_branch
      %337 = sbr.rel (0) target = $region161
    $region160: #{resnet_encoder_forward.1} parent=1 // pred_region
      %339 = dma.done [#allocation5], 384
    $region161: #{resnet_encoder_forward.1} parent=1 // pred_fallthru
      _
    // Predicated region
    $region162: #{resnet_encoder_forward.1} parent=1 // pred_check
      _
    $region163: #{resnet_encoder_forward.1} parent=1 // pred_check_branch
      %341 = sbr.rel (0) target = $region165
    $region164: #{resnet_encoder_forward.1} parent=1 // pred_region
      %343 = dma.done [#allocation8], 16
    $region165: #{resnet_encoder_forward.1} parent=1 // pred_fallthru
      _
    // Predicated region
    $region166: #{resnet_encoder_forward.1} parent=1 // pred_check
      _
    $region167: #{resnet_encoder_forward.1} parent=1 // pred_check_branch
      %345 = sbr.rel (0) target = $region169
    $region168: #{resnet_encoder_forward.1} parent=1 // pred_region
      %347 = dma.done [#allocation8], 16
    $region169: #{resnet_encoder_forward.1} parent=1 // pred_fallthru
      _
    // Predicated region
    $region170: #{resnet_encoder_forward.1} parent=1 // pred_check
      _
    $region171: #{resnet_encoder_forward.1} parent=1 // pred_check_branch
      %349 = sbr.rel (0) target = $region173
    $region172: #{resnet_encoder_forward.1} parent=1 // pred_region
      %351 = dma.done [#allocation11], 16
    $region173: #{resnet_encoder_forward.1} parent=1 // pred_fallthru
      _
    // Predicated region
    $region174: #{resnet_encoder_forward.1} parent=1 // pred_check
      _
    $region175: #{resnet_encoder_forward.1} parent=1 // pred_check_branch
      %353 = sbr.rel (0) target = $region177
    $region176: #{resnet_encoder_forward.1} parent=1 // pred_region
      %355 = dma.done [#allocation11], 16
    $region177: #{resnet_encoder_forward.1} parent=1 // pred_fallthru
      _
    // Predicated region
    $region178: #{resnet_encoder_forward.1} parent=1 // pred_check
      _
    $region179: #{resnet_encoder_forward.1} parent=1 // pred_check_branch
      %357 = sbr.rel (0) target = $region181
    $region180: #{resnet_encoder_forward.1} parent=1 // pred_region
      %359 = dma.done [#allocation14], 256
    $region181: #{resnet_encoder_forward.1} parent=1 // pred_fallthru
      _
    // Predicated region
    $region182: #{resnet_encoder_forward.1} parent=1 // pred_check
      _
    $region183: #{resnet_encoder_forward.1} parent=1 // pred_check_branch
      %361 = sbr.rel (0) target = $region185
    $region184: #{resnet_encoder_forward.1} parent=1 // pred_region
      %363 = dma.done [#allocation14], 512
    $region185: #{resnet_encoder_forward.1} parent=1 // pred_fallthru
      _
    // Predicated region
    $region186: #{resnet_encoder_forward.1} parent=1 // pred_check
      _
    $region187: #{resnet_encoder_forward.1} parent=1 // pred_check_branch
      %365 = sbr.rel (0) target = $region189
    $region188: #{resnet_encoder_forward.1} parent=1 // pred_region
      %367 = dma.done [#allocation17], 16
    $region189: #{resnet_encoder_forward.1} parent=1 // pred_fallthru
      _
    // Predicated region
    $region190: #{resnet_encoder_forward.1} parent=1 // pred_check
      _
    $region191: #{resnet_encoder_forward.1} parent=1 // pred_check_branch
      %369 = sbr.rel (0) target = $region193
    $region192: #{resnet_encoder_forward.1} parent=1 // pred_region
      %371 = dma.done [#allocation17], 16
    $region193: #{resnet_encoder_forward.1} parent=1 // pred_fallthru
      _
    // Predicated region
    $region194: #{resnet_encoder_forward.1} parent=1 // pred_check
      _
    $region195: #{resnet_encoder_forward.1} parent=1 // pred_check_branch
      %373 = sbr.rel (0) target = $region197
    $region196: #{resnet_encoder_forward.1} parent=1 // pred_region
      %375 = dma.done [#allocation20], 16
    $region197: #{resnet_encoder_forward.1} parent=1 // pred_fallthru
      _
    // Predicated region
    $region198: #{resnet_encoder_forward.1} parent=1 // pred_check
      _
    $region199: #{resnet_encoder_forward.1} parent=1 // pred_check_branch
      %377 = sbr.rel (0) target = $region201
    $region200: #{resnet_encoder_forward.1} parent=1 // pred_region
      %379 = dma.done [#allocation20], 16
    $region201: #{resnet_encoder_forward.1} parent=1 // pred_fallthru
      _
    // Predicated region
    $region202: #{resnet_encoder_forward.1} parent=1 // pred_check
      _
    $region203: #{resnet_encoder_forward.1} parent=1 // pred_check_branch
      %381 = sbr.rel (0) target = $region205
    $region204: #{resnet_encoder_forward.1} parent=1 // pred_region
      %383 = dma.done [#allocation23], 16
    $region205: #{resnet_encoder_forward.1} parent=1 // pred_fallthru
      _
    // Predicated region
    $region206: #{resnet_encoder_forward.1} parent=1 // pred_check
      _
    $region207: #{resnet_encoder_forward.1} parent=1 // pred_check_branch
      %385 = sbr.rel (0) target = $region209
    $region208: #{resnet_encoder_forward.1} parent=1 // pred_region
      %387 = dma.done [#allocation23], 16
    $region209: #{resnet_encoder_forward.1} parent=1 // pred_fallthru
      _
    // Predicated region
    $region210: #{resnet_encoder_forward.1} parent=1 // pred_check
      _
    $region211: #{resnet_encoder_forward.1} parent=1 // pred_check_branch
      %389 = sbr.rel (0) target = $region213
    $region212: #{resnet_encoder_forward.1} parent=1 // pred_region
      %391 = dma.done [#allocation26], 1024
    $region213: #{resnet_encoder_forward.1} parent=1 // pred_fallthru
      _
    // Predicated region
    $region214: #{resnet_encoder_forward.1} parent=1 // pred_check
      _
    $region215: #{resnet_encoder_forward.1} parent=1 // pred_check_branch
      %393 = sbr.rel (0) target = $region217
    $region216: #{resnet_encoder_forward.1} parent=1 // pred_region
      %395 = dma.done [#allocation26], 6144
    $region217: #{resnet_encoder_forward.1} parent=1 // pred_fallthru
      _
    %v397 = vld [vmem:[%s1] sm:$0xff]
    %v398 = vld [vmem:[%s1 + $0x8] sm:$0xff]
    %v399 = vld [vmem:[%s1 + $0x10] sm:$0xff]
    %v400 = vld [vmem:[%s1 + $0x18] sm:$0xff]
    %v401 = vld [vmem:[%s1 + $0x20] sm:$0xff]
    %v402 = vld [vmem:[%s1 + $0x28] sm:$0xff]
    %v403 = vld [vmem:[%s1 + $0x30] sm:$0xff]
    %v404 = vld [vmem:[%s1 + $0x38] sm:$0xff]
    %v405 = vld [vmem:[%s1 + $0x40] sm:$0xff]
    %v406 = vld [vmem:[%s1 + $0x48] sm:$0xff]
    %v407 = vld [vmem:[%s1 + $0x50] sm:$0xff]
    %v408 = vld [vmem:[%s1 + $0x58] sm:$0xff]
    %v409 = vld [vmem:[%s1 + $0x60] sm:$0xff]
    %v410 = vld [vmem:[%s1 + $0x68] sm:$0xff]
    %v411 = vld [vmem:[%s1 + $0x70] sm:$0xff]
    %v412 = vld [vmem:[%s1 + $0x78] sm:$0xff]
    %v413 = vpack.c.bf16 %v398, %v397
    %v414 = vpack.c.bf16 %v400, %v399
    %v415 = vpack.c.bf16 %v402, %v401
    %v416 = vpack.c.bf16 %v404, %v403
    %v417 = vpack.c.bf16 %v406, %v405
    %v418 = vpack.c.bf16 %v408, %v407
    %v419 = vpack.c.bf16 %v410, %v409
    %v420 = vpack.c.bf16 %v412, %v411
    %v421 = vld [vmem:[%s3] sm:$0xf]
    %v422 = vld [vmem:[%s3 + $0x4] sm:$0xf]
    %v423 = vld [vmem:[%s3 + $0x8] sm:$0xf]
    %v424 = vld [vmem:[%s3 + $0xc] sm:$0xf]
    %v429 = vunpack.c.l.b16 %v421
    %v430 = vunpack.c.l.b16 %v422
    %v431 = vunpack.c.l.b16 %v423
    %v432 = vunpack.c.l.b16 %v424
    %v433 = vpack.c.b16 %v430, %v429
    %v434 = vpack.c.b16 %v432, %v431
    %437 = vmatpush.bf16.msra.mxu0 %v420
    %438 = vmatpush.bf16.msra.mxu0 %v419
    %439 = vmatpush.bf16.msra.mxu0 %v418
    %440 = vmatpush.bf16.msra.mxu0 %v417
    %441 = vmatpush.bf16.msra.mxu0 %v416
    %442 = vmatpush.bf16.msra.mxu0 %v415
    %443 = vmatpush.bf16.msra.mxu0 %v414
    %444 = vmatpush.bf16.msra.mxu0 %v413
    %445 = vmatmul.bf16.gmra.mxu0 %v433
    %v446 = vpop.f32.mrf.mxu0
    %v447 = vadd.f32 0.0, %v446
    %v448 = vpop.f32.mrf.mxu0
    %v449 = vadd.f32 0.0, %v448
    %450 = vmatmul.bf16.gmra.mxu0 %v434
    %v451 = vpop.f32.mrf.mxu0
    %v452 = vadd.f32 0.0, %v451
    %v453 = vpop.f32.mrf.mxu0
    %v454 = vadd.f32 0.0, %v453
    %455 = vdwg.mxu0
    %v456 = vpack.c.bf16 %v447, %v447
    %v457 = vpack.c.bf16 %v449, %v449
    %v458 = vpack.c.bf16 %v452, %v452
    %v459 = vpack.c.bf16 %v454, %v454
    %s460 = scalar_lea.vmem %s3, 16
    %v461 = vld [vmem:[%s460] sm:$0xf]
    %v462 = vld [vmem:[%s460 + $0x4] sm:$0xf]
    %v463 = vld [vmem:[%s460 + $0x8] sm:$0xf]
    %v464 = vld [vmem:[%s460 + $0xc] sm:$0xf]
    %v469 = vunpack.c.l.b16 %v461
    %v470 = vunpack.c.l.b16 %v462
    %v471 = vunpack.c.l.b16 %v463
    %v472 = vunpack.c.l.b16 %v464
    %v473 = vpack.c.b16 %v470, %v469
    %v474 = vpack.c.b16 %v472, %v471
    %477 = vmatpush.bf16.msra.mxu0 %v420
    %478 = vmatpush.bf16.msra.mxu0 %v419
    %479 = vmatpush.bf16.msra.mxu0 %v418
    %480 = vmatpush.bf16.msra.mxu0 %v417
    %481 = vmatpush.bf16.msra.mxu0 %v416
    %482 = vmatpush.bf16.msra.mxu0 %v415
    %483 = vmatpush.bf16.msra.mxu0 %v414
    %484 = vmatpush.bf16.msra.mxu0 %v413
    %485 = vmatmul.bf16.gmra.mxu0 %v473
    %v486 = vpop.f32.mrf.mxu0
    %v487 = vadd.f32 0.0, %v486
    %v488 = vpop.f32.mrf.mxu0
    %v489 = vadd.f32 0.0, %v488
    %490 = vmatmul.bf16.gmra.mxu0 %v474
    %v491 = vpop.f32.mrf.mxu0
    %v492 = vadd.f32 0.0, %v491
    %v493 = vpop.f32.mrf.mxu0
    %v494 = vadd.f32 0.0, %v493
    %495 = vdwg.mxu0
    %v496 = vpack.c.bf16 %v487, %v487
    %v497 = vpack.c.bf16 %v489, %v489
    %v498 = vpack.c.bf16 %v492, %v492
    %v499 = vpack.c.bf16 %v494, %v494
    %s500 = scalar_lea.vmem %s3, 32
    %v501 = vld [vmem:[%s500] sm:$0xf]
    %v502 = vld [vmem:[%s500 + $0x4] sm:$0xf]
    %v503 = vld [vmem:[%s500 + $0x8] sm:$0xf]
    %v504 = vld [vmem:[%s500 + $0xc] sm:$0xf]
    %v509 = vunpack.c.l.b16 %v501
    %v510 = vunpack.c.l.b16 %v502
    %v511 = vunpack.c.l.b16 %v503
    %v512 = vunpack.c.l.b16 %v504
    %v513 = vpack.c.b16 %v510, %v509
    %v514 = vpack.c.b16 %v512, %v511
    %517 = vmatpush.bf16.msra.mxu0 %v420
    %518 = vmatpush.bf16.msra.mxu0 %v419
    %519 = vmatpush.bf16.msra.mxu0 %v418
    %520 = vmatpush.bf16.msra.mxu0 %v417
    %521 = vmatpush.bf16.msra.mxu0 %v416
    %522 = vmatpush.bf16.msra.mxu0 %v415
    %523 = vmatpush.bf16.msra.mxu0 %v414
    %524 = vmatpush.bf16.msra.mxu0 %v413
    %525 = vmatmul.bf16.gmra.mxu0 %v513
    %v526 = vpop.f32.mrf.mxu0
    %v527 = vadd.f32 0.0, %v526
    %v528 = vpop.f32.mrf.mxu0
    %v529 = vadd.f32 0.0, %v528
    %530 = vmatmul.bf16.gmra.mxu0 %v514
    %v531 = vpop.f32.mrf.mxu0
    %v532 = vadd.f32 0.0, %v531
    %v533 = vpop.f32.mrf.mxu0
    %v534 = vadd.f32 0.0, %v533
    %535 = vdwg.mxu0
    %v536 = vpack.c.bf16 %v527, %v527
    %v537 = vpack.c.bf16 %v529, %v529
    %v538 = vpack.c.bf16 %v532, %v532
    %v539 = vpack.c.bf16 %v534, %v534
    %s540 = scalar_lea.vmem %s3, 48
    %v541 = vld [vmem:[%s540] sm:$0xf]
    %v542 = vld [vmem:[%s540 + $0x4] sm:$0xf]
    %v543 = vld [vmem:[%s540 + $0x8] sm:$0xf]
    %v544 = vld [vmem:[%s540 + $0xc] sm:$0xf]
    %v549 = vunpack.c.l.b16 %v541
    %v550 = vunpack.c.l.b16 %v542
    %v551 = vunpack.c.l.b16 %v543
    %v552 = vunpack.c.l.b16 %v544
    %v553 = vpack.c.b16 %v550, %v549
    %v554 = vpack.c.b16 %v552, %v551
    %557 = vmatpush.bf16.msra.mxu0 %v420
    %558 = vmatpush.bf16.msra.mxu0 %v419
    %559 = vmatpush.bf16.msra.mxu0 %v418
    %560 = vmatpush.bf16.msra.mxu0 %v417
    %561 = vmatpush.bf16.msra.mxu0 %v416
    %562 = vmatpush.bf16.msra.mxu0 %v415
    %563 = vmatpush.bf16.msra.mxu0 %v414
    %564 = vmatpush.bf16.msra.mxu0 %v413
    %565 = vmatmul.bf16.gmra.mxu0 %v553
    %v566 = vpop.f32.mrf.mxu0
    %v567 = vadd.f32 0.0, %v566
    %v568 = vpop.f32.mrf.mxu0
    %v569 = vadd.f32 0.0, %v568
    %570 = vmatmul.bf16.gmra.mxu0 %v554
    %v571 = vpop.f32.mrf.mxu0
    %v572 = vadd.f32 0.0, %v571
    %v573 = vpop.f32.mrf.mxu0
    %v574 = vadd.f32 0.0, %v573
    %575 = vdwg.mxu0
    %v576 = vpack.c.bf16 %v567, %v567
    %v577 = vpack.c.bf16 %v569, %v569
    %v578 = vpack.c.bf16 %v572, %v572
    %v579 = vpack.c.bf16 %v574, %v574
    %s580 = scalar_lea.vmem %s3, 64
    %v581 = vld [vmem:[%s580] sm:$0xf]
    %v582 = vld [vmem:[%s580 + $0x4] sm:$0xf]
    %v583 = vld [vmem:[%s580 + $0x8] sm:$0xf]
    %v584 = vld [vmem:[%s580 + $0xc] sm:$0xf]
    %v589 = vunpack.c.l.b16 %v581
    %v590 = vunpack.c.l.b16 %v582
    %v591 = vunpack.c.l.b16 %v583
    %v592 = vunpack.c.l.b16 %v584
    %v593 = vpack.c.b16 %v590, %v589
    %v594 = vpack.c.b16 %v592, %v591
    %597 = vmatpush.bf16.msra.mxu0 %v420
    %598 = vmatpush.bf16.msra.mxu0 %v419
    %599 = vmatpush.bf16.msra.mxu0 %v418
    %600 = vmatpush.bf16.msra.mxu0 %v417
    %601 = vmatpush.bf16.msra.mxu0 %v416
    %602 = vmatpush.bf16.msra.mxu0 %v415
    %603 = vmatpush.bf16.msra.mxu0 %v414
    %604 = vmatpush.bf16.msra.mxu0 %v413
    %605 = vmatmul.bf16.gmra.mxu0 %v593
    %v606 = vpop.f32.mrf.mxu0
    %v607 = vadd.f32 0.0, %v606
    %v608 = vpop.f32.mrf.mxu0
    %v609 = vadd.f32 0.0, %v608
    %610 = vmatmul.bf16.gmra.mxu0 %v594
    %v611 = vpop.f32.mrf.mxu0
    %v612 = vadd.f32 0.0, %v611
    %v613 = vpop.f32.mrf.mxu0
    %v614 = vadd.f32 0.0, %v613
    %615 = vdwg.mxu0
    %v616 = vpack.c.bf16 %v607, %v607
    %v617 = vpack.c.bf16 %v609, %v609
    %v618 = vpack.c.bf16 %v612, %v612
    %v619 = vpack.c.bf16 %v614, %v614
    %s620 = scalar_lea.vmem %s3, 80
    %v621 = vld [vmem:[%s620] sm:$0xf]
    %v622 = vld [vmem:[%s620 + $0x4] sm:$0xf]
    %v623 = vld [vmem:[%s620 + $0x8] sm:$0xf]
    %v624 = vld [vmem:[%s620 + $0xc] sm:$0xf]
    %v629 = vunpack.c.l.b16 %v621
    %v630 = vunpack.c.l.b16 %v622
    %v631 = vunpack.c.l.b16 %v623
    %v632 = vunpack.c.l.b16 %v624
    %v633 = vpack.c.b16 %v630, %v629
    %v634 = vpack.c.b16 %v632, %v631
    %637 = vmatpush.bf16.msra.mxu0 %v420
    %638 = vmatpush.bf16.msra.mxu0 %v419
    %639 = vmatpush.bf16.msra.mxu0 %v418
    %640 = vmatpush.bf16.msra.mxu0 %v417
    %641 = vmatpush.bf16.msra.mxu0 %v416
    %642 = vmatpush.bf16.msra.mxu0 %v415
    %643 = vmatpush.bf16.msra.mxu0 %v414
    %644 = vmatpush.bf16.msra.mxu0 %v413
    %645 = vmatmul.bf16.gmra.mxu0 %v633
    %v646 = vpop.f32.mrf.mxu0
    %v647 = vadd.f32 0.0, %v646
    %v648 = vpop.f32.mrf.mxu0
    %v649 = vadd.f32 0.0, %v648
    %650 = vmatmul.bf16.gmra.mxu0 %v634
    %v651 = vpop.f32.mrf.mxu0
    %v652 = vadd.f32 0.0, %v651
    %v653 = vpop.f32.mrf.mxu0
    %v654 = vadd.f32 0.0, %v653
    %655 = vdwg.mxu0
    %v656 = vpack.c.bf16 %v647, %v647
    %v657 = vpack.c.bf16 %v649, %v649
    %v658 = vpack.c.bf16 %v652, %v652
    %v659 = vpack.c.bf16 %v654, %v654
    %s660 = scalar_lea.vmem %s3, 96
    %v661 = vld [vmem:[%s660] sm:$0xf]
    %v662 = vld [vmem:[%s660 + $0x4] sm:$0xf]
    %v663 = vld [vmem:[%s660 + $0x8] sm:$0xf]
    %v664 = vld [vmem:[%s660 + $0xc] sm:$0xf]
    %v669 = vunpack.c.l.b16 %v661
    %v670 = vunpack.c.l.b16 %v662
    %v671 = vunpack.c.l.b16 %v663
    %v672 = vunpack.c.l.b16 %v664
    %v673 = vpack.c.b16 %v670, %v669
    %v674 = vpack.c.b16 %v672, %v671
    %677 = vmatpush.bf16.msra.mxu0 %v420
    %678 = vmatpush.bf16.msra.mxu0 %v419
    %679 = vmatpush.bf16.msra.mxu0 %v418
    %680 = vmatpush.bf16.msra.mxu0 %v417
    %681 = vmatpush.bf16.msra.mxu0 %v416
    %682 = vmatpush.bf16.msra.mxu0 %v415
    %683 = vmatpush.bf16.msra.mxu0 %v414
    %684 = vmatpush.bf16.msra.mxu0 %v413
    %685 = vmatmul.bf16.gmra.mxu0 %v673
    %v686 = vpop.f32.mrf.mxu0
    %v687 = vadd.f32 0.0, %v686
    %v688 = vpop.f32.mrf.mxu0
    %v689 = vadd.f32 0.0, %v688
    %690 = vmatmul.bf16.gmra.mxu0 %v674
    %v691 = vpop.f32.mrf.mxu0
    %v692 = vadd.f32 0.0, %v691
    %v693 = vpop.f32.mrf.mxu0
    %v694 = vadd.f32 0.0, %v693
    %695 = vdwg.mxu0
    %v696 = vpack.c.bf16 %v687, %v687
    %v697 = vpack.c.bf16 %v689, %v689
    %v698 = vpack.c.bf16 %v692, %v692
    %v699 = vpack.c.bf16 %v694, %v694
    %v704 = vunpack.c.l.b16 %v456
    %v705 = vunpack.c.l.b16 %v457
    %v706 = vunpack.c.l.b16 %v458
    %v707 = vunpack.c.l.b16 %v459
    %v708 = vpack.c.b16 %v705, %v704
    %v709 = vpack.c.b16 %v707, %v706
    %v714 = vunpack.c.l.b16 %v496
    %v715 = vunpack.c.l.b16 %v497
    %v716 = vunpack.c.l.b16 %v498
    %v717 = vunpack.c.l.b16 %v499
    %v718 = vpack.c.b16 %v715, %v714
    %v719 = vpack.c.b16 %v717, %v716
    %720 = vrot.lane.b32.xlu0 %v718, 64
    %v721 = vpop.permute.xlu0 %720
    %722 = vrot.lane.b32.xlu0 %v719, 64
    %v723 = vpop.permute.xlu0 %722
    %v728 = vunpack.c.l.b16 %v536
    %v729 = vunpack.c.l.b16 %v537
    %v730 = vunpack.c.l.b16 %v538
    %v731 = vunpack.c.l.b16 %v539
    %v732 = vpack.c.b16 %v729, %v728
    %v733 = vpack.c.b16 %v731, %v730
    %v738 = vunpack.c.l.b16 %v576
    %v739 = vunpack.c.l.b16 %v577
    %v740 = vunpack.c.l.b16 %v578
    %v741 = vunpack.c.l.b16 %v579
    %v742 = vpack.c.b16 %v739, %v738
    %v743 = vpack.c.b16 %v741, %v740
    %744 = vrot.lane.b32.xlu0 %v742, 64
    %v745 = vpop.permute.xlu0 %744
    %746 = vrot.lane.b32.xlu0 %v743, 64
    %v747 = vpop.permute.xlu0 %746
    %v752 = vunpack.c.l.b16 %v616
    %v753 = vunpack.c.l.b16 %v617
    %v754 = vunpack.c.l.b16 %v618
    %v755 = vunpack.c.l.b16 %v619
    %v756 = vpack.c.b16 %v753, %v752
    %v757 = vpack.c.b16 %v755, %v754
    %v762 = vunpack.c.l.b16 %v656
    %v763 = vunpack.c.l.b16 %v657
    %v764 = vunpack.c.l.b16 %v658
    %v765 = vunpack.c.l.b16 %v659
    %v766 = vpack.c.b16 %v763, %v762
    %v767 = vpack.c.b16 %v765, %v764
    %768 = vrot.lane.b32.xlu0 %v766, 64
    %v769 = vpop.permute.xlu0 %768
    %770 = vrot.lane.b32.xlu0 %v767, 64
    %v771 = vpop.permute.xlu0 %770
    %v776 = vunpack.c.l.b16 %v696
    %v777 = vunpack.c.l.b16 %v697
    %v778 = vunpack.c.l.b16 %v698
    %v779 = vunpack.c.l.b16 %v699
    %v780 = vpack.c.b16 %v777, %v776
    %v781 = vpack.c.b16 %v779, %v778
    %vm782 = vcmask 523264
    %v785 = vsel %vm782, %v708, %v721
    %v789 = vsel %vm782, %v709, %v723
    %v793 = vsel %vm782, %v732, %v745
    %v797 = vsel %vm782, %v733, %v747
    %v801 = vsel %vm782, %v756, %v769
    %v805 = vsel %vm782, %v757, %v771
    %v807 = vld [vmem:[%s5] sm:$0xf]
    %v808 = vld [vmem:[%s5 + $0x4] sm:$0xf]
    %v809 = vld [vmem:[%s5 + $0x8] sm:$0xf]
    %v810 = vld [vmem:[%s5 + $0xc] sm:$0xf]
    %v811 = vld [vmem:[%s5 + $0x10] sm:$0xf]
    %v812 = vld [vmem:[%s5 + $0x14] sm:$0xf]
    %v813 = vld [vmem:[%s5 + $0x18] sm:$0xf]
    %v814 = vld [vmem:[%s5 + $0x1c] sm:$0xf]
    %v815 = vld [vmem:[%s5 + $0x20] sm:$0xf]
    %v816 = vld [vmem:[%s5 + $0x24] sm:$0xf]
    %v817 = vld [vmem:[%s5 + $0x28] sm:$0xf]
    %v818 = vld [vmem:[%s5 + $0x2c] sm:$0xf]
    %v819 = vld [vmem:[%s5 + $0x30] sm:$0xf]
    %v820 = vld [vmem:[%s5 + $0x34] sm:$0xf]
    %v821 = vld [vmem:[%s5 + $0x38] sm:$0xf]
    %v822 = vld [vmem:[%s5 + $0x3c] sm:$0xf]
    %v823 = vld [vmem:[%s5 + $0x40] sm:$0xf]
    %v824 = vld [vmem:[%s5 + $0x44] sm:$0xf]
    %v825 = vld [vmem:[%s5 + $0x48] sm:$0xf]
    %v826 = vld [vmem:[%s5 + $0x4c] sm:$0xf]
    %v827 = vld [vmem:[%s5 + $0x50] sm:$0xf]
    %v828 = vld [vmem:[%s5 + $0x54] sm:$0xf]
    %v829 = vld [vmem:[%s5 + $0x58] sm:$0xf]
    %v830 = vld [vmem:[%s5 + $0x5c] sm:$0xf]
    %v831 = vld [vmem:[%s5 + $0x60] sm:$0xf]
    %v832 = vld [vmem:[%s5 + $0x64] sm:$0xf]
    %v833 = vld [vmem:[%s5 + $0x68] sm:$0xf]
    %v834 = vld [vmem:[%s5 + $0x6c] sm:$0xf]
    %v835 = vld [vmem:[%s5 + $0x70] sm:$0xf]
    %v836 = vld [vmem:[%s5 + $0x74] sm:$0xf]
    %v837 = vld [vmem:[%s5 + $0x78] sm:$0xf]
    %v838 = vld [vmem:[%s5 + $0x7c] sm:$0xf]
    %v839 = vld [vmem:[%s5 + $0x80] sm:$0xf]
    %v840 = vld [vmem:[%s5 + $0x84] sm:$0xf]
    %v841 = vld [vmem:[%s5 + $0x88] sm:$0xf]
    %v842 = vld [vmem:[%s5 + $0x8c] sm:$0xf]
    %v843 = vld [vmem:[%s5 + $0x90] sm:$0xf]
    %v844 = vld [vmem:[%s5 + $0x94] sm:$0xf]
    %v845 = vld [vmem:[%s5 + $0x98] sm:$0xf]
    %v846 = vld [vmem:[%s5 + $0x9c] sm:$0xf]
    %v847 = vld [vmem:[%s5 + $0xa0] sm:$0xf]
    %v848 = vld [vmem:[%s5 + $0xa4] sm:$0xf]
    %v849 = vld [vmem:[%s5 + $0xa8] sm:$0xf]
    %v850 = vld [vmem:[%s5 + $0xac] sm:$0xf]
    %v851 = vld [vmem:[%s5 + $0xb0] sm:$0xf]
    %v852 = vld [vmem:[%s5 + $0xb4] sm:$0xf]
    %v853 = vld [vmem:[%s5 + $0xb8] sm:$0xf]
    %v854 = vld [vmem:[%s5 + $0xbc] sm:$0xf]
    %v855 = vld [vmem:[%s5 + $0xc0] sm:$0xf]
    %v856 = vld [vmem:[%s5 + $0xc4] sm:$0xf]
    %v857 = vld [vmem:[%s5 + $0xc8] sm:$0xf]
    %v858 = vld [vmem:[%s5 + $0xcc] sm:$0xf]
    %v859 = vld [vmem:[%s5 + $0xd0] sm:$0xf]
    %v860 = vld [vmem:[%s5 + $0xd4] sm:$0xf]
    %v861 = vld [vmem:[%s5 + $0xd8] sm:$0xf]
    %v862 = vld [vmem:[%s5 + $0xdc] sm:$0xf]
    %v919 = vunpack.c.l.b16 %v807
    %v920 = vunpack.c.l.b16 %v808
    %v921 = vunpack.c.l.b16 %v809
    %v922 = vunpack.c.l.b16 %v810
    %v923 = vunpack.c.l.b16 %v811
    %v924 = vunpack.c.l.b16 %v812
    %v925 = vunpack.c.l.b16 %v813
    %v926 = vunpack.c.l.b16 %v814
    %v927 = vunpack.c.l.b16 %v815
    %v928 = vunpack.c.l.b16 %v816
    %v929 = vunpack.c.l.b16 %v817
    %v930 = vunpack.c.l.b16 %v818
    %v931 = vunpack.c.l.b16 %v819
    %v932 = vunpack.c.l.b16 %v820
    %v933 = vunpack.c.l.b16 %v821
    %v934 = vunpack.c.l.b16 %v822
    %v935 = vunpack.c.l.b16 %v823
    %v936 = vunpack.c.l.b16 %v824
    %v937 = vunpack.c.l.b16 %v825
    %v938 = vunpack.c.l.b16 %v826
    %v939 = vunpack.c.l.b16 %v827
    %v940 = vunpack.c.l.b16 %v828
    %v941 = vunpack.c.l.b16 %v829
    %v942 = vunpack.c.l.b16 %v830
    %v943 = vunpack.c.l.b16 %v831
    %v944 = vunpack.c.l.b16 %v832
    %v945 = vunpack.c.l.b16 %v833
    %v946 = vunpack.c.l.b16 %v834
    %v947 = vunpack.c.l.b16 %v835
    %v948 = vunpack.c.l.b16 %v836
    %v949 = vunpack.c.l.b16 %v837
    %v950 = vunpack.c.l.b16 %v838
    %v951 = vunpack.c.l.b16 %v839
    %v952 = vunpack.c.l.b16 %v840
    %v953 = vunpack.c.l.b16 %v841
    %v954 = vunpack.c.l.b16 %v842
    %v955 = vunpack.c.l.b16 %v843
    %v956 = vunpack.c.l.b16 %v844
    %v957 = vunpack.c.l.b16 %v845
    %v958 = vunpack.c.l.b16 %v846
    %v959 = vunpack.c.l.b16 %v847
    %v960 = vunpack.c.l.b16 %v848
    %v961 = vunpack.c.l.b16 %v849
    %v962 = vunpack.c.l.b16 %v850
    %v963 = vunpack.c.l.b16 %v851
    %v964 = vunpack.c.l.b16 %v852
    %v965 = vunpack.c.l.b16 %v853
    %v966 = vunpack.c.l.b16 %v854
    %v967 = vunpack.c.l.b16 %v855
    %v968 = vunpack.c.l.b16 %v856
    %v969 = vunpack.c.l.b16 %v857
    %v970 = vunpack.c.l.b16 %v858
    %v971 = vunpack.c.l.b16 %v859
    %v972 = vunpack.c.l.b16 %v860
    %v973 = vunpack.c.l.b16 %v861
    %v974 = vunpack.c.l.b16 %v862
    %v975 = vpack.c.b16 %v920, %v919
    %v976 = vpack.c.b16 %v922, %v921
    %v977 = vpack.c.b16 %v924, %v923
    %v978 = vpack.c.b16 %v926, %v925
    %v979 = vpack.c.b16 %v928, %v927
    %v980 = vpack.c.b16 %v930, %v929
    %v981 = vpack.c.b16 %v932, %v931
    %v982 = vpack.c.b16 %v934, %v933
    %v983 = vpack.c.b16 %v936, %v935
    %v984 = vpack.c.b16 %v938, %v937
    %v985 = vpack.c.b16 %v940, %v939
    %v986 = vpack.c.b16 %v942, %v941
    %v987 = vpack.c.b16 %v944, %v943
    %v988 = vpack.c.b16 %v946, %v945
    %v989 = vpack.c.b16 %v948, %v947
    %v990 = vpack.c.b16 %v950, %v949
    %v991 = vpack.c.b16 %v952, %v951
    %v992 = vpack.c.b16 %v954, %v953
    %v993 = vpack.c.b16 %v956, %v955
    %v994 = vpack.c.b16 %v958, %v957
    %v995 = vpack.c.b16 %v960, %v959
    %v996 = vpack.c.b16 %v962, %v961
    %v997 = vpack.c.b16 %v964, %v963
    %v998 = vpack.c.b16 %v966, %v965
    %v999 = vpack.c.b16 %v968, %v967
    %v1000 = vpack.c.b16 %v970, %v969
    %v1001 = vpack.c.b16 %v972, %v971
    %v1002 = vpack.c.b16 %v974, %v973
    %v1032 = vsel %vm782, %v780, 0
    %v1035 = vsel %vm782, %v781, 0
    %1037 = vmatpush.bf16.msra.mxu0 %v982
    %1038 = vmatpush.bf16.msra.mxu0 %v981
    %1039 = vmatpush.bf16.msra.mxu0 %v980
    %1040 = vmatpush.bf16.msra.mxu0 %v979
    %1041 = vmatpush.bf16.msra.mxu0 %v978
    %1042 = vmatpush.bf16.msra.mxu0 %v977
    %1043 = vmatpush.bf16.msra.mxu0 %v976
    %1044 = vmatpush.bf16.msra.mxu0 %v975
    %1045 = vmatmul.bf16.gmra.mxu0 %v785
    %v1046 = vpop.f32.mrf.mxu0
    %v1047 = vadd.f32 0.0, %v1046
    %v1048 = vpop.f32.mrf.mxu0
    %v1049 = vadd.f32 0.0, %v1048
    %1050 = vmatmul.bf16.gmra.mxu0 %v789
    %v1051 = vpop.f32.mrf.mxu0
    %v1052 = vadd.f32 0.0, %v1051
    %v1053 = vpop.f32.mrf.mxu0
    %v1054 = vadd.f32 0.0, %v1053
    %1055 = vdwg.mxu0
    %1056 = vmatpush.bf16.msra.mxu0 %v990
    %1057 = vmatpush.bf16.msra.mxu0 %v989
    %1058 = vmatpush.bf16.msra.mxu0 %v988
    %1059 = vmatpush.bf16.msra.mxu0 %v987
    %1060 = vmatpush.bf16.msra.mxu0 %v986
    %1061 = vmatpush.bf16.msra.mxu0 %v985
    %1062 = vmatpush.bf16.msra.mxu0 %v984
    %1063 = vmatpush.bf16.msra.mxu0 %v983
    %1064 = vmatmul.bf16.gmra.mxu0 %v793
    %v1065 = vpop.f32.mrf.mxu0
    %v1066 = vadd.f32 %v1047, %v1065
    %v1067 = vpop.f32.mrf.mxu0
    %v1068 = vadd.f32 %v1049, %v1067
    %1069 = vmatmul.bf16.gmra.mxu0 %v797
    %v1070 = vpop.f32.mrf.mxu0
    %v1071 = vadd.f32 %v1052, %v1070
    %v1072 = vpop.f32.mrf.mxu0
    %v1073 = vadd.f32 %v1054, %v1072
    %1074 = vdwg.mxu0
    %1075 = vmatpush.bf16.msra.mxu0 %v998
    %1076 = vmatpush.bf16.msra.mxu0 %v997
    %1077 = vmatpush.bf16.msra.mxu0 %v996
    %1078 = vmatpush.bf16.msra.mxu0 %v995
    %1079 = vmatpush.bf16.msra.mxu0 %v994
    %1080 = vmatpush.bf16.msra.mxu0 %v993
    %1081 = vmatpush.bf16.msra.mxu0 %v992
    %1082 = vmatpush.bf16.msra.mxu0 %v991
    %1083 = vmatmul.bf16.gmra.mxu0 %v801
    %v1084 = vpop.f32.mrf.mxu0
    %v1085 = vadd.f32 %v1066, %v1084
    %v1086 = vpop.f32.mrf.mxu0
    %v1087 = vadd.f32 %v1068, %v1086
    %1088 = vmatmul.bf16.gmra.mxu0 %v805
    %v1089 = vpop.f32.mrf.mxu0
    %v1090 = vadd.f32 %v1071, %v1089
    %v1091 = vpop.f32.mrf.mxu0
    %v1092 = vadd.f32 %v1073, %v1091
    %1093 = vdwg.mxu0
    %1094 = vmatpush.bf16.msra.mxu0 0
    %1095 = vmatpush.bf16.msra.mxu0 0
    %1096 = vmatpush.bf16.msra.mxu0 0
    %1097 = vmatpush.bf16.msra.mxu0 0
    %1098 = vmatpush.bf16.msra.mxu0 %v1002
    %1099 = vmatpush.bf16.msra.mxu0 %v1001
    %1100 = vmatpush.bf16.msra.mxu0 %v1000
    %1101 = vmatpush.bf16.msra.mxu0 %v999
    %1102 = vmatmul.bf16.gmra.mxu0 %v1032
    %v1103 = vpop.f32.mrf.mxu0
    %v1104 = vadd.f32 %v1085, %v1103
    %v1105 = vpop.f32.mrf.mxu0
    %v1106 = vadd.f32 %v1087, %v1105
    %1107 = vmatmul.bf16.gmra.mxu0 %v1035
    %v1108 = vpop.f32.mrf.mxu0
    %v1109 = vadd.f32 %v1090, %v1108
    %v1110 = vpop.f32.mrf.mxu0
    %v1111 = vadd.f32 %v1092, %v1110
    %1112 = vdwg.mxu0
    %v1113 = vld [vmem:[#allocation4] sm:$0xff]
    %v1114 = vld [vmem:[#allocation4 + $0x8] sm:$0xff]
    %v1115 = vld [vmem:[#allocation4 + $0x10] sm:$0xff]
    %v1116 = vld [vmem:[#allocation4 + $0x18] sm:$0xff]
    %vm1117 = vcmask 261120
    %v1119 = vsel %vm1117, %v1113, 0
    %v1122 = vsel %vm1117, %v1114, 0
    %v1125 = vsel %vm1117, %v1115, 0
    %v1128 = vsel %vm1117, %v1116, 0
    %1130 = vmatpush.msra.mxu0 0.0
    %1131 = vmatpush.msra.mxu0 0.0
    %1132 = vmatpush.msra.mxu0 0.0
    %1133 = vmatpush.msra.mxu0 0.0
    %1134 = vmatpush.msra.mxu0 0.0
    %1135 = vmatpush.msra.mxu0 0.0
    %1136 = vmatpush.msra.mxu0 0.0
    %1137 = vmatpush.msra.mxu0 0.0
    %1138 = vmatpush.msra.mxu0 0.0
    %1139 = vmatpush.msra.mxu0 0.0
    %1140 = vmatpush.msra.mxu0 0.0
    %1141 = vmatpush.msra.mxu0 0.0
    %1142 = vmatpush.msra.mxu0 %v1111
    %1143 = vmatpush.msra.mxu0 %v1109
    %1144 = vmatpush.msra.mxu0 %v1106
    %1145 = vmatpush.msra.mxu0 %v1104
    %1146 = vmatmul.f32.gmra.mxu0 %v1119
    %v1147 = vpop.f32.mrf.mxu0
    %v1148 = vadd.f32 0.0, %v1147
    %1149 = vmatmul.f32.gmra.mxu0 %v1122
    %v1150 = vpop.f32.mrf.mxu0
    %v1151 = vadd.f32 0.0, %v1150
    %1152 = vmatmul.f32.gmra.mxu0 %v1125
    %v1153 = vpop.f32.mrf.mxu0
    %v1154 = vadd.f32 0.0, %v1153
    %1155 = vmatmul.f32.gmra.mxu0 %v1128
    %v1156 = vpop.f32.mrf.mxu0
    %v1157 = vadd.f32 0.0, %v1156
    %1158 = vdwg.mxu0
    %v1159 = vld [vmem:[%s11] sm:$0xff]
    %v1160 = vld [vmem:[%s11 + $0x8] sm:$0xff]
    %v1161 = vld [vmem:[%s11 + $0x10] sm:$0xff]
    %v1162 = vld [vmem:[%s11 + $0x18] sm:$0xff]
    %v1163 = vld [vmem:[%s11 + $0x20] sm:$0xff]
    %v1164 = vld [vmem:[%s11 + $0x28] sm:$0xff]
    %v1165 = vld [vmem:[%s11 + $0x30] sm:$0xff]
    %v1166 = vld [vmem:[%s11 + $0x38] sm:$0xff]
    %v1167 = vld [vmem:[%s11 + $0x40] sm:$0xff]
    %v1168 = vld [vmem:[%s11 + $0x48] sm:$0xff]
    %v1169 = vld [vmem:[%s11 + $0x50] sm:$0xff]
    %v1170 = vld [vmem:[%s11 + $0x58] sm:$0xff]
    %v1171 = vld [vmem:[%s11 + $0x60] sm:$0xff]
    %v1172 = vld [vmem:[%s11 + $0x68] sm:$0xff]
    %v1173 = vld [vmem:[%s11 + $0x70] sm:$0xff]
    %v1174 = vld [vmem:[%s11 + $0x78] sm:$0xff]
    %1175 = vmatpush.msra.mxu0 %v1174
    %1176 = vmatpush.msra.mxu0 %v1173
    %1177 = vmatpush.msra.mxu0 %v1172
    %1178 = vmatpush.msra.mxu0 %v1171
    %1179 = vmatpush.msra.mxu0 %v1170
    %1180 = vmatpush.msra.mxu0 %v1169
    %1181 = vmatpush.msra.mxu0 %v1168
    %1182 = vmatpush.msra.mxu0 %v1167
    %1183 = vmatpush.msra.mxu0 %v1166
    %1184 = vmatpush.msra.mxu0 %v1165
    %1185 = vmatpush.msra.mxu0 %v1164
    %1186 = vmatpush.msra.mxu0 %v1163
    %1187 = vmatpush.msra.mxu0 %v1162
    %1188 = vmatpush.msra.mxu0 %v1161
    %1189 = vmatpush.msra.mxu0 %v1160
    %1190 = vmatpush.msra.mxu0 %v1159
    %1191 = vmatmul.f32.gmra.mxu0 %v1148
    %v1192 = vpop.f32.mrf.mxu0
    %v1193 = vadd.f32 0.0, %v1192
    %1194 = vmatmul.f32.gmra.mxu0 %v1151
    %v1195 = vpop.f32.mrf.mxu0
    %v1196 = vadd.f32 0.0, %v1195
    %1197 = vmatmul.f32.gmra.mxu0 %v1154
    %v1198 = vpop.f32.mrf.mxu0
    %v1199 = vadd.f32 0.0, %v1198
    %1200 = vmatmul.f32.gmra.mxu0 %v1157
    %v1201 = vpop.f32.mrf.mxu0
    %v1202 = vadd.f32 0.0, %v1201
    %1203 = vdwg.mxu0
    %v1204 = vsub.f32 %v1104, %v1193
    %v1205 = vsub.f32 %v1106, %v1196
    %v1206 = vsub.f32 %v1109, %v1199
    %v1207 = vsub.f32 %v1111, %v1202
    %v1208 = vmul.f32 %v1204, %v1204
    %v1209 = vmul.f32 %v1205, %v1205
    %v1210 = vmul.f32 %v1206, %v1206
    %v1211 = vmul.f32 %v1207, %v1207
    %1212 = vmatpush.msra.mxu0 0.0
    %1213 = vmatpush.msra.mxu0 0.0
    %1214 = vmatpush.msra.mxu0 0.0
    %1215 = vmatpush.msra.mxu0 0.0
    %1216 = vmatpush.msra.mxu0 0.0
    %1217 = vmatpush.msra.mxu0 0.0
    %1218 = vmatpush.msra.mxu0 0.0
    %1219 = vmatpush.msra.mxu0 0.0
    %1220 = vmatpush.msra.mxu0 0.0
    %1221 = vmatpush.msra.mxu0 0.0
    %1222 = vmatpush.msra.mxu0 0.0
    %1223 = vmatpush.msra.mxu0 0.0
    %1224 = vmatpush.msra.mxu0 %v1211
    %1225 = vmatpush.msra.mxu0 %v1210
    %1226 = vmatpush.msra.mxu0 %v1209
    %1227 = vmatpush.msra.mxu0 %v1208
    %1228 = vmatmul.f32.gmra.mxu0 %v1119
    %v1229 = vpop.f32.mrf.mxu0
    %v1230 = vadd.f32 0.0, %v1229
    %1231 = vmatmul.f32.gmra.mxu0 %v1122
    %v1232 = vpop.f32.mrf.mxu0
    %v1233 = vadd.f32 0.0, %v1232
    %1234 = vmatmul.f32.gmra.mxu0 %v1125
    %v1235 = vpop.f32.mrf.mxu0
    %v1236 = vadd.f32 0.0, %v1235
    %1237 = vmatmul.f32.gmra.mxu0 %v1128
    %v1238 = vpop.f32.mrf.mxu0
    %v1239 = vadd.f32 0.0, %v1238
    %1240 = vdwg.mxu0
    %1241 = vmatpush.msra.mxu0 %v1174
    %1242 = vmatpush.msra.mxu0 %v1173
    %1243 = vmatpush.msra.mxu0 %v1172
    %1244 = vmatpush.msra.mxu0 %v1171
    %1245 = vmatpush.msra.mxu0 %v1170
    %1246 = vmatpush.msra.mxu0 %v1169
    %1247 = vmatpush.msra.mxu0 %v1168
    %1248 = vmatpush.msra.mxu0 %v1167
    %1249 = vmatpush.msra.mxu0 %v1166
    %1250 = vmatpush.msra.mxu0 %v1165
    %1251 = vmatpush.msra.mxu0 %v1164
    %1252 = vmatpush.msra.mxu0 %v1163
    %1253 = vmatpush.msra.mxu0 %v1162
    %1254 = vmatpush.msra.mxu0 %v1161
    %1255 = vmatpush.msra.mxu0 %v1160
    %1256 = vmatpush.msra.mxu0 %v1159
    %1257 = vmatmul.f32.gmra.mxu0 %v1230
    %v1258 = vpop.f32.mrf.mxu0
    %v1259 = vadd.f32 1e-05, %v1258
    %1260 = vmatmul.f32.gmra.mxu0 %v1233
    %v1261 = vpop.f32.mrf.mxu0
    %v1262 = vadd.f32 1e-05, %v1261
    %1263 = vmatmul.f32.gmra.mxu0 %v1236
    %v1264 = vpop.f32.mrf.mxu0
    %v1265 = vadd.f32 1e-05, %v1264
    %1266 = vmatmul.f32.gmra.mxu0 %v1239
    %v1267 = vpop.f32.mrf.mxu0
    %v1268 = vadd.f32 1e-05, %v1267
    %1269 = vdwg.mxu0
    %v1270 = vrsqrt.pop %v1259
    %v1271 = vmul.f32 %v1270, %v1259
    %v1272 = vmul.f32 %v1271, %v1270
    %v1273 = vmul.f32 0.5, %v1272
    %v1274 = vsub.f32 1.5, %v1273
    %v1275 = vmul.f32 %v1270, %v1274
    %vm1276 = vweird.f32 %v1259
    %vm1277 = vweird.f32 %v1270
    %vm1278 = vmor %vm1276, %vm1277
    %v1279 = vsel %vm1278, %v1270, %v1275
    %v1280 = vrsqrt.pop %v1262
    %v1281 = vmul.f32 %v1280, %v1262
    %v1282 = vmul.f32 %v1281, %v1280
    %v1283 = vmul.f32 0.5, %v1282
    %v1284 = vsub.f32 1.5, %v1283
    %v1285 = vmul.f32 %v1280, %v1284
    %vm1286 = vweird.f32 %v1262
    %vm1287 = vweird.f32 %v1280
    %vm1288 = vmor %vm1286, %vm1287
    %v1289 = vsel %vm1288, %v1280, %v1285
    %v1290 = vrsqrt.pop %v1265
    %v1291 = vmul.f32 %v1290, %v1265
    %v1292 = vmul.f32 %v1291, %v1290
    %v1293 = vmul.f32 0.5, %v1292
    %v1294 = vsub.f32 1.5, %v1293
    %v1295 = vmul.f32 %v1290, %v1294
    %vm1296 = vweird.f32 %v1265
    %vm1297 = vweird.f32 %v1290
    %vm1298 = vmor %vm1296, %vm1297
    %v1299 = vsel %vm1298, %v1290, %v1295
    %v1300 = vrsqrt.pop %v1268
    %v1301 = vmul.f32 %v1300, %v1268
    %v1302 = vmul.f32 %v1301, %v1300
    %v1303 = vmul.f32 0.5, %v1302
    %v1304 = vsub.f32 1.5, %v1303
    %v1305 = vmul.f32 %v1300, %v1304
    %vm1306 = vweird.f32 %v1268
    %vm1307 = vweird.f32 %v1300
    %vm1308 = vmor %vm1306, %vm1307
    %v1309 = vsel %vm1308, %v1300, %v1305
    %v1310 = vmul.f32 %v1204, %v1279
    %v1311 = vmul.f32 %v1205, %v1289
    %v1312 = vmul.f32 %v1206, %v1299
    %v1313 = vmul.f32 %v1207, %v1309
    %v1314 = vld [vmem:[%s7] sm:$0x1]
    %v1316 = vperm.slane %v1314, 0
    %v1318 = vmul.f32 %v1310, %v1316
    %v1319 = vmul.f32 %v1311, %v1316
    %v1320 = vmul.f32 %v1312, %v1316
    %v1321 = vmul.f32 %v1313, %v1316
    %v1322 = vld [vmem:[#allocation2] sm:$0x1]
    %v1324 = vperm.slane %v1322, 0
    %v1326 = vadd.f32 %v1318, %v1324
    %v1327 = vadd.f32 %v1319, %v1324
    %v1328 = vadd.f32 %v1320, %v1324
    %v1329 = vadd.f32 %v1321, %v1324
    %v1330 = vmax.f32 %v1326, 0.0
    %v1331 = vmax.f32 %v1327, 0.0
    %v1332 = vmax.f32 %v1328, 0.0
    %v1333 = vmax.f32 %v1329, 0.0
    %v1334 = vpack.c.bf16 %v1331, %v1330
    %v1335 = vpack.c.bf16 %v1333, %v1332
    %v1336 = vld [vmem:[#allocation6] sm:$0xf]
    %v1337 = vld [vmem:[#allocation6 + $0x4] sm:$0xf]
    %v1340 = vunpack.c.l.b16 %v1336
    %v1341 = vunpack.c.l.b16 %v1337
    %v1342 = vpack.c.b16 %v1341, %v1340
    %v1344 = vsel %vm1117, %v1342, 0
    %1346 = vmatpush.bf16.msra.mxu0 0
    %1347 = vmatpush.bf16.msra.mxu0 0
    %1348 = vmatpush.bf16.msra.mxu0 0
    %1349 = vmatpush.bf16.msra.mxu0 0
    %1350 = vmatpush.bf16.msra.mxu0 0
    %1351 = vmatpush.bf16.msra.mxu0 0
    %1352 = vmatpush.bf16.msra.mxu0 %v1335
    %1353 = vmatpush.bf16.msra.mxu0 %v1334
    %1354 = vmatmul.bf16.gmra.mxu0 %v1344
    %v1355 = vpop.f32.mrf.mxu0
    %v1356 = vadd.f32 0.0, %v1355
    %v1357 = vpop.f32.mrf.mxu0
    %v1358 = vadd.f32 0.0, %v1357
    %1359 = vdwg.mxu0
    %s1360 = scalar_lea.vmem [#allocation6], 8
    %v1361 = vld [vmem:[%s1360] sm:$0xf]
    %v1362 = vld [vmem:[%s1360 + $0x4] sm:$0xf]
    %v1365 = vunpack.c.l.b16 %v1361
    %v1366 = vunpack.c.l.b16 %v1362
    %v1367 = vpack.c.b16 %v1366, %v1365
    %v1369 = vsel %vm1117, %v1367, 0
    %1371 = vmatpush.bf16.msra.mxu0 0
    %1372 = vmatpush.bf16.msra.mxu0 0
    %1373 = vmatpush.bf16.msra.mxu0 0
    %1374 = vmatpush.bf16.msra.mxu0 0
    %1375 = vmatpush.bf16.msra.mxu0 0
    %1376 = vmatpush.bf16.msra.mxu0 0
    %1377 = vmatpush.bf16.msra.mxu0 %v1335
    %1378 = vmatpush.bf16.msra.mxu0 %v1334
    %1379 = vmatmul.bf16.gmra.mxu0 %v1369
    %v1380 = vpop.f32.mrf.mxu0
    %v1381 = vadd.f32 0.0, %v1380
    %v1382 = vpop.f32.mrf.mxu0
    %v1383 = vadd.f32 0.0, %v1382
    %1384 = vdwg.mxu0
    %v1385 = vmax.f32 %v1356, %v1381
    %v1386 = vmax.f32 %v1358, %v1383
    %s1387 = scalar_lea.vmem [#allocation6], 16
    %v1388 = vld [vmem:[%s1387] sm:$0xf]
    %v1389 = vld [vmem:[%s1387 + $0x4] sm:$0xf]
    %v1392 = vunpack.c.l.b16 %v1388
    %v1393 = vunpack.c.l.b16 %v1389
    %v1394 = vpack.c.b16 %v1393, %v1392
    %v1396 = vsel %vm1117, %v1394, 0
    %1398 = vmatpush.bf16.msra.mxu0 0
    %1399 = vmatpush.bf16.msra.mxu0 0
    %1400 = vmatpush.bf16.msra.mxu0 0
    %1401 = vmatpush.bf16.msra.mxu0 0
    %1402 = vmatpush.bf16.msra.mxu0 0
    %1403 = vmatpush.bf16.msra.mxu0 0
    %1404 = vmatpush.bf16.msra.mxu0 %v1335
    %1405 = vmatpush.bf16.msra.mxu0 %v1334
    %1406 = vmatmul.bf16.gmra.mxu0 %v1396
    %v1407 = vpop.f32.mrf.mxu0
    %v1408 = vadd.f32 0.0, %v1407
    %v1409 = vpop.f32.mrf.mxu0
    %v1410 = vadd.f32 0.0, %v1409
    %1411 = vdwg.mxu0
    %v1412 = vmax.f32 %v1385, %v1408
    %v1413 = vmax.f32 %v1386, %v1410
    %v1414 = vpack.c.bf16 %v1413, %v1412
    %v1415 = vld [vmem:[%s17] sm:$0xf]
    %v1416 = vld [vmem:[%s17 + $0x4] sm:$0xf]
    %v1417 = vld [vmem:[%s17 + $0x8] sm:$0xf]
    %v1418 = vld [vmem:[%s17 + $0xc] sm:$0xf]
    %v1419 = vld [vmem:[%s17 + $0x10] sm:$0xf]
    %v1420 = vld [vmem:[%s17 + $0x14] sm:$0xf]
    %v1421 = vld [vmem:[%s17 + $0x18] sm:$0xf]
    %v1422 = vld [vmem:[%s17 + $0x1c] sm:$0xf]
    %v1423 = vld [vmem:[%s17 + $0x20] sm:$0xf]
    %v1424 = vld [vmem:[%s17 + $0x24] sm:$0xf]
    %v1425 = vld [vmem:[%s17 + $0x28] sm:$0xf]
    %v1426 = vld [vmem:[%s17 + $0x2c] sm:$0xf]
    %v1427 = vld [vmem:[%s17 + $0x30] sm:$0xf]
    %v1428 = vld [vmem:[%s17 + $0x34] sm:$0xf]
    %v1429 = vld [vmem:[%s17 + $0x38] sm:$0xf]
    %v1430 = vld [vmem:[%s17 + $0x3c] sm:$0xf]
    %v1447 = vunpack.c.l.b16 %v1415
    %v1448 = vunpack.c.l.b16 %v1416
    %v1449 = vunpack.c.l.b16 %v1417
    %v1450 = vunpack.c.l.b16 %v1418
    %v1451 = vunpack.c.l.b16 %v1419
    %v1452 = vunpack.c.l.b16 %v1420
    %v1453 = vunpack.c.l.b16 %v1421
    %v1454 = vunpack.c.l.b16 %v1422
    %v1455 = vunpack.c.l.b16 %v1423
    %v1456 = vunpack.c.l.b16 %v1424
    %v1457 = vunpack.c.l.b16 %v1425
    %v1458 = vunpack.c.l.b16 %v1426
    %v1459 = vunpack.c.l.b16 %v1427
    %v1460 = vunpack.c.l.b16 %v1428
    %v1461 = vunpack.c.l.b16 %v1429
    %v1462 = vunpack.c.l.b16 %v1430
    %v1463 = vpack.c.b16 %v1448, %v1447
    %v1464 = vpack.c.b16 %v1450, %v1449
    %v1465 = vpack.c.b16 %v1452, %v1451
    %v1466 = vpack.c.b16 %v1454, %v1453
    %v1467 = vpack.c.b16 %v1456, %v1455
    %v1468 = vpack.c.b16 %v1458, %v1457
    %v1469 = vpack.c.b16 %v1460, %v1459
    %v1470 = vpack.c.b16 %v1462, %v1461
    %1479 = vmatpush.bf16.msra.mxu0 %v1470
    %1480 = vmatpush.bf16.msra.mxu0 %v1469
    %1481 = vmatpush.bf16.msra.mxu0 %v1468
    %1482 = vmatpush.bf16.msra.mxu0 %v1467
    %1483 = vmatpush.bf16.msra.mxu0 %v1466
    %1484 = vmatpush.bf16.msra.mxu0 %v1465
    %1485 = vmatpush.bf16.msra.mxu0 %v1464
    %1486 = vmatpush.bf16.msra.mxu0 %v1463
    %1487 = vmatmul.bf16.gmra.mxu0 %v1414
    %v1488 = vpop.f32.mrf.mxu0
    %v1489 = vadd.f32 0.0, %v1488
    %v1490 = vpop.f32.mrf.mxu0
    %v1491 = vadd.f32 0.0, %v1490
    %1492 = vdwg.mxu0
    %s1493 = scalar_lea.vmem %s17, 64
    %v1494 = vld [vmem:[%s1493] sm:$0xf]
    %v1495 = vld [vmem:[%s1493 + $0x4] sm:$0xf]
    %v1496 = vld [vmem:[%s1493 + $0x8] sm:$0xf]
    %v1497 = vld [vmem:[%s1493 + $0xc] sm:$0xf]
    %v1498 = vld [vmem:[%s1493 + $0x10] sm:$0xf]
    %v1499 = vld [vmem:[%s1493 + $0x14] sm:$0xf]
    %v1500 = vld [vmem:[%s1493 + $0x18] sm:$0xf]
    %v1501 = vld [vmem:[%s1493 + $0x1c] sm:$0xf]
    %v1502 = vld [vmem:[%s1493 + $0x20] sm:$0xf]
    %v1503 = vld [vmem:[%s1493 + $0x24] sm:$0xf]
    %v1504 = vld [vmem:[%s1493 + $0x28] sm:$0xf]
    %v1505 = vld [vmem:[%s1493 + $0x2c] sm:$0xf]
    %v1506 = vld [vmem:[%s1493 + $0x30] sm:$0xf]
    %v1507 = vld [vmem:[%s1493 + $0x34] sm:$0xf]
    %v1508 = vld [vmem:[%s1493 + $0x38] sm:$0xf]
    %v1509 = vld [vmem:[%s1493 + $0x3c] sm:$0xf]
    %v1526 = vunpack.c.l.b16 %v1494
    %v1527 = vunpack.c.l.b16 %v1495
    %v1528 = vunpack.c.l.b16 %v1496
    %v1529 = vunpack.c.l.b16 %v1497
    %v1530 = vunpack.c.l.b16 %v1498
    %v1531 = vunpack.c.l.b16 %v1499
    %v1532 = vunpack.c.l.b16 %v1500
    %v1533 = vunpack.c.l.b16 %v1501
    %v1534 = vunpack.c.l.b16 %v1502
    %v1535 = vunpack.c.l.b16 %v1503
    %v1536 = vunpack.c.l.b16 %v1504
    %v1537 = vunpack.c.l.b16 %v1505
    %v1538 = vunpack.c.l.b16 %v1506
    %v1539 = vunpack.c.l.b16 %v1507
    %v1540 = vunpack.c.l.b16 %v1508
    %v1541 = vunpack.c.l.b16 %v1509
    %v1542 = vpack.c.b16 %v1527, %v1526
    %v1543 = vpack.c.b16 %v1529, %v1528
    %v1544 = vpack.c.b16 %v1531, %v1530
    %v1545 = vpack.c.b16 %v1533, %v1532
    %v1546 = vpack.c.b16 %v1535, %v1534
    %v1547 = vpack.c.b16 %v1537, %v1536
    %v1548 = vpack.c.b16 %v1539, %v1538
    %v1549 = vpack.c.b16 %v1541, %v1540
    %1558 = vmatpush.bf16.msra.mxu0 %v1549
    %1559 = vmatpush.bf16.msra.mxu0 %v1548
    %1560 = vmatpush.bf16.msra.mxu0 %v1547
    %1561 = vmatpush.bf16.msra.mxu0 %v1546
    %1562 = vmatpush.bf16.msra.mxu0 %v1545
    %1563 = vmatpush.bf16.msra.mxu0 %v1544
    %1564 = vmatpush.bf16.msra.mxu0 %v1543
    %1565 = vmatpush.bf16.msra.mxu0 %v1542
    %1566 = vmatmul.bf16.gmra.mxu0 %v1414
    %v1567 = vpop.f32.mrf.mxu0
    %v1568 = vadd.f32 0.0, %v1567
    %v1569 = vpop.f32.mrf.mxu0
    %v1570 = vadd.f32 0.0, %v1569
    %1571 = vdwg.mxu0
    %v1572 = vmax.f32 %v1489, %v1568
    %v1573 = vmax.f32 %v1491, %v1570
    %s1574 = scalar_lea.vmem %s17, 128
    %v1575 = vld [vmem:[%s1574] sm:$0xf]
    %v1576 = vld [vmem:[%s1574 + $0x4] sm:$0xf]
    %v1577 = vld [vmem:[%s1574 + $0x8] sm:$0xf]
    %v1578 = vld [vmem:[%s1574 + $0xc] sm:$0xf]
    %v1579 = vld [vmem:[%s1574 + $0x10] sm:$0xf]
    %v1580 = vld [vmem:[%s1574 + $0x14] sm:$0xf]
    %v1581 = vld [vmem:[%s1574 + $0x18] sm:$0xf]
    %v1582 = vld [vmem:[%s1574 + $0x1c] sm:$0xf]
    %v1583 = vld [vmem:[%s1574 + $0x20] sm:$0xf]
    %v1584 = vld [vmem:[%s1574 + $0x24] sm:$0xf]
    %v1585 = vld [vmem:[%s1574 + $0x28] sm:$0xf]
    %v1586 = vld [vmem:[%s1574 + $0x2c] sm:$0xf]
    %v1587 = vld [vmem:[%s1574 + $0x30] sm:$0xf]
    %v1588 = vld [vmem:[%s1574 + $0x34] sm:$0xf]
    %v1589 = vld [vmem:[%s1574 + $0x38] sm:$0xf]
    %v1590 = vld [vmem:[%s1574 + $0x3c] sm:$0xf]
    %v1607 = vunpack.c.l.b16 %v1575
    %v1608 = vunpack.c.l.b16 %v1576
    %v1609 = vunpack.c.l.b16 %v1577
    %v1610 = vunpack.c.l.b16 %v1578
    %v1611 = vunpack.c.l.b16 %v1579
    %v1612 = vunpack.c.l.b16 %v1580
    %v1613 = vunpack.c.l.b16 %v1581
    %v1614 = vunpack.c.l.b16 %v1582
    %v1615 = vunpack.c.l.b16 %v1583
    %v1616 = vunpack.c.l.b16 %v1584
    %v1617 = vunpack.c.l.b16 %v1585
    %v1618 = vunpack.c.l.b16 %v1586
    %v1619 = vunpack.c.l.b16 %v1587
    %v1620 = vunpack.c.l.b16 %v1588
    %v1621 = vunpack.c.l.b16 %v1589
    %v1622 = vunpack.c.l.b16 %v1590
    %v1623 = vpack.c.b16 %v1608, %v1607
    %v1624 = vpack.c.b16 %v1610, %v1609
    %v1625 = vpack.c.b16 %v1612, %v1611
    %v1626 = vpack.c.b16 %v1614, %v1613
    %v1627 = vpack.c.b16 %v1616, %v1615
    %v1628 = vpack.c.b16 %v1618, %v1617
    %v1629 = vpack.c.b16 %v1620, %v1619
    %v1630 = vpack.c.b16 %v1622, %v1621
    %1639 = vmatpush.bf16.msra.mxu0 %v1630
    %1640 = vmatpush.bf16.msra.mxu0 %v1629
    %1641 = vmatpush.bf16.msra.mxu0 %v1628
    %1642 = vmatpush.bf16.msra.mxu0 %v1627
    %1643 = vmatpush.bf16.msra.mxu0 %v1626
    %1644 = vmatpush.bf16.msra.mxu0 %v1625
    %1645 = vmatpush.bf16.msra.mxu0 %v1624
    %1646 = vmatpush.bf16.msra.mxu0 %v1623
    %1647 = vmatmul.bf16.gmra.mxu0 %v1414
    %v1648 = vpop.f32.mrf.mxu0
    %v1649 = vadd.f32 0.0, %v1648
    %v1650 = vpop.f32.mrf.mxu0
    %v1651 = vadd.f32 0.0, %v1650
    %1652 = vdwg.mxu0
    %v1653 = vmax.f32 %v1572, %v1649
    %v1654 = vmax.f32 %v1573, %v1651
    %v1655 = vpack.c.bf16 %v1653, %v1653
    %v1656 = vpack.c.bf16 %v1654, %v1654
    %v1658 = vunpack.c.l.b16 %v1656
    %v1659 = vpack.c.b16 %v1658, %v1658
    %v1661 = vshrl.u32 %v1659, 16
    %v1663 = vrot.slane %v1661, 3
    %v1666 = vunpack.c.l.b16 %v1655
    %v1667 = vpack.c.b16 %v1658, %v1666
    %v1669 = vshrl.u32 %v1667, 16
    %v1671 = vrot.slane %v1669, 7
    %v1672 = vshll.u32 %v1667, 16
    %v1674 = vor.u32 %v1671, %v1672
    %vm1676 = vcmask 1040384
    %vm1677 = vsmask.f32 256
    %vm1678 = vmand %vm1676, %vm1677
    %v1679 = vsel %vm1678, %v1663, %v1674
    %v1680 = vld [vmem:[%s19] sm:$0xf]
    %v1681 = vld [vmem:[%s19 + $0x4] sm:$0xf]
    %1683 = vset.pattern.permute.xlu0 0
    %1684 = vperm.xlu0 %1683, %v1680
    %v1685 = vpop.permute.xlu0 %1684
    %v1688 = vunpack.c.l.s4 839922192
    %v1689 = vunpack.c.0.s8 %v1688
    %v1690 = vperm.slane %v1685, %v1689
    %1692 = vset.pattern.permute.xlu0 0
    %1693 = vperm.xlu0 %1692, %v1681
    %v1694 = vpop.permute.xlu0 %1693
    %v1697 = vunpack.c.l.s4 839922192
    %v1698 = vunpack.c.0.s8 %v1697
    %v1699 = vperm.slane %v1694, %v1698
    %v1700 = vunpack.c.l.bf16 %v1679
    %v1701 = vunpack.c.h.bf16 %v1679
    %v1702 = vunpack.c.l.bf16 %v1690
    %v1703 = vunpack.c.l.bf16 %v1699
    %v1704 = vmul.f32 %v1700, %v1702
    %v1705 = vmul.f32 %v1701, %v1703
    %v1706 = vpack.c.bf16 %v1704, %v1704
    %v1707 = vpack.c.bf16 %v1705, %v1705
    %v1708 = vrot.slane %v1672, 1
    %v1709 = vor.u32 %v1669, %v1708
    %v1711 = vpack.c.b16 %v1666, %v1666
    %v1713 = vshll.u32 %v1711, 16
    %v1715 = vrot.slane %v1713, 1
    %vm1717 = vcmask 1047552
    %vm1718 = vsmask.f32 7424
    %vm1719 = vmand %vm1717, %vm1718
    %v1720 = vsel %vm1719, %v1709, %v1715
    %v1721 = vld [vmem:[%s21] sm:$0xf]
    %v1722 = vld [vmem:[%s21 + $0x4] sm:$0xf]
    %1724 = vset.pattern.permute.xlu0 0
    %1725 = vperm.xlu0 %1724, %v1721
    %v1726 = vpop.permute.xlu0 %1725
    %v1729 = vunpack.c.l.s4 839922192
    %v1730 = vunpack.c.0.s8 %v1729
    %v1731 = vperm.slane %v1726, %v1730
    %1733 = vset.pattern.permute.xlu0 0
    %1734 = vperm.xlu0 %1733, %v1722
    %v1735 = vpop.permute.xlu0 %1734
    %v1738 = vunpack.c.l.s4 839922192
    %v1739 = vunpack.c.0.s8 %v1738
    %v1740 = vperm.slane %v1735, %v1739
    %v1741 = vunpack.c.l.bf16 %v1720
    %v1742 = vunpack.c.h.bf16 %v1720
    %v1743 = vunpack.c.l.bf16 %v1731
    %v1744 = vunpack.c.l.bf16 %v1740
    %v1745 = vmul.f32 %v1741, %v1743
    %v1746 = vmul.f32 %v1742, %v1744
    %v1747 = vpack.c.bf16 %v1745, %v1745
    %v1748 = vpack.c.bf16 %v1746, %v1746
    %v1751 = vunpack.c.l.b16 %v1706
    %v1752 = vunpack.c.l.b16 %v1707
    %v1753 = vpack.c.b16 %v1752, %v1751
    %1754 = vrot.lane.b32.xlu0 %v1667, 64
    %v1755 = vpop.permute.xlu0 %1754
    %v1758 = vunpack.c.l.b16 %v1747
    %v1759 = vunpack.c.l.b16 %v1748
    %v1760 = vpack.c.b16 %v1759, %v1758
    %v1763 = vsel %vm782, %v1753, %v1755
    %v1765 = vld [vmem:[%s23] sm:$0xf]
    %v1766 = vld [vmem:[%s23 + $0x4] sm:$0xf]
    %v1767 = vld [vmem:[%s23 + $0x8] sm:$0xf]
    %v1768 = vld [vmem:[%s23 + $0xc] sm:$0xf]
    %v1769 = vld [vmem:[%s23 + $0x10] sm:$0xf]
    %v1770 = vld [vmem:[%s23 + $0x14] sm:$0xf]
    %v1771 = vld [vmem:[%s23 + $0x18] sm:$0xf]
    %v1772 = vld [vmem:[%s23 + $0x1c] sm:$0xf]
    %v1773 = vld [vmem:[%s23 + $0x20] sm:$0xf]
    %v1774 = vld [vmem:[%s23 + $0x24] sm:$0xf]
    %v1775 = vld [vmem:[%s23 + $0x28] sm:$0xf]
    %v1776 = vld [vmem:[%s23 + $0x2c] sm:$0xf]
    %v1777 = vld [vmem:[%s23 + $0x30] sm:$0xf]
    %v1778 = vld [vmem:[%s23 + $0x34] sm:$0xf]
    %v1779 = vld [vmem:[%s23 + $0x38] sm:$0xf]
    %v1780 = vld [vmem:[%s23 + $0x3c] sm:$0xf]
    %v1781 = vld [vmem:[%s23 + $0x40] sm:$0xf]
    %v1782 = vld [vmem:[%s23 + $0x44] sm:$0xf]
    %v1783 = vld [vmem:[%s23 + $0x48] sm:$0xf]
    %v1784 = vld [vmem:[%s23 + $0x4c] sm:$0xf]
    %v1785 = vld [vmem:[%s23 + $0x50] sm:$0xf]
    %v1786 = vld [vmem:[%s23 + $0x54] sm:$0xf]
    %v1787 = vld [vmem:[%s23 + $0x58] sm:$0xf]
    %v1788 = vld [vmem:[%s23 + $0x5c] sm:$0xf]
    %v1813 = vunpack.c.l.b16 %v1765
    %v1814 = vunpack.c.l.b16 %v1766
    %v1815 = vunpack.c.l.b16 %v1767
    %v1816 = vunpack.c.l.b16 %v1768
    %v1817 = vunpack.c.l.b16 %v1769
    %v1818 = vunpack.c.l.b16 %v1770
    %v1819 = vunpack.c.l.b16 %v1771
    %v1820 = vunpack.c.l.b16 %v1772
    %v1821 = vunpack.c.l.b16 %v1773
    %v1822 = vunpack.c.l.b16 %v1774
    %v1823 = vunpack.c.l.b16 %v1775
    %v1824 = vunpack.c.l.b16 %v1776
    %v1825 = vunpack.c.l.b16 %v1777
    %v1826 = vunpack.c.l.b16 %v1778
    %v1827 = vunpack.c.l.b16 %v1779
    %v1828 = vunpack.c.l.b16 %v1780
    %v1829 = vunpack.c.l.b16 %v1781
    %v1830 = vunpack.c.l.b16 %v1782
    %v1831 = vunpack.c.l.b16 %v1783
    %v1832 = vunpack.c.l.b16 %v1784
    %v1833 = vunpack.c.l.b16 %v1785
    %v1834 = vunpack.c.l.b16 %v1786
    %v1835 = vunpack.c.l.b16 %v1787
    %v1836 = vunpack.c.l.b16 %v1788
    %v1837 = vpack.c.b16 %v1814, %v1813
    %v1838 = vpack.c.b16 %v1816, %v1815
    %v1839 = vpack.c.b16 %v1818, %v1817
    %v1840 = vpack.c.b16 %v1820, %v1819
    %v1841 = vpack.c.b16 %v1822, %v1821
    %v1842 = vpack.c.b16 %v1824, %v1823
    %v1843 = vpack.c.b16 %v1826, %v1825
    %v1844 = vpack.c.b16 %v1828, %v1827
    %v1845 = vpack.c.b16 %v1830, %v1829
    %v1846 = vpack.c.b16 %v1832, %v1831
    %v1847 = vpack.c.b16 %v1834, %v1833
    %v1848 = vpack.c.b16 %v1836, %v1835
    %v1862 = vsel %vm782, %v1760, 0
    %1864 = vmatpush.bf16.msra.mxu0 %v1844
    %1865 = vmatpush.bf16.msra.mxu0 %v1843
    %1866 = vmatpush.bf16.msra.mxu0 %v1842
    %1867 = vmatpush.bf16.msra.mxu0 %v1841
    %1868 = vmatpush.bf16.msra.mxu0 %v1840
    %1869 = vmatpush.bf16.msra.mxu0 %v1839
    %1870 = vmatpush.bf16.msra.mxu0 %v1838
    %1871 = vmatpush.bf16.msra.mxu0 %v1837
    %1872 = vmatmul.bf16.gmra.mxu0 %v1763
    %v1873 = vpop.f32.mrf.mxu0
    %v1874 = vadd.f32 0.0, %v1873
    %v1875 = vpop.f32.mrf.mxu0
    %v1876 = vadd.f32 0.0, %v1875
    %1877 = vdwg.mxu0
    %1878 = vmatpush.bf16.msra.mxu0 0
    %1879 = vmatpush.bf16.msra.mxu0 0
    %1880 = vmatpush.bf16.msra.mxu0 0
    %1881 = vmatpush.bf16.msra.mxu0 0
    %1882 = vmatpush.bf16.msra.mxu0 %v1848
    %1883 = vmatpush.bf16.msra.mxu0 %v1847
    %1884 = vmatpush.bf16.msra.mxu0 %v1846
    %1885 = vmatpush.bf16.msra.mxu0 %v1845
    %1886 = vmatmul.bf16.gmra.mxu0 %v1862
    %v1887 = vpop.f32.mrf.mxu0
    %v1888 = vadd.f32 %v1874, %v1887
    %v1889 = vpop.f32.mrf.mxu0
    %v1890 = vadd.f32 %v1876, %v1889
    %1891 = vdwg.mxu0
    %v1892 = vld [vmem:[#allocation13] sm:$0xff]
    %v1893 = vld [vmem:[#allocation13 + $0x8] sm:$0xff]
    %vm1894 = vcmask 130048
    %v1896 = vsel %vm1894, %v1892, 0
    %v1899 = vsel %vm1894, %v1893, 0
    %1901 = vmatpush.msra.mxu0 0.0
    %1902 = vmatpush.msra.mxu0 0.0
    %1903 = vmatpush.msra.mxu0 0.0
    %1904 = vmatpush.msra.mxu0 0.0
    %1905 = vmatpush.msra.mxu0 0.0
    %1906 = vmatpush.msra.mxu0 0.0
    %1907 = vmatpush.msra.mxu0 0.0
    %1908 = vmatpush.msra.mxu0 0.0
    %1909 = vmatpush.msra.mxu0 0.0
    %1910 = vmatpush.msra.mxu0 0.0
    %1911 = vmatpush.msra.mxu0 0.0
    %1912 = vmatpush.msra.mxu0 0.0
    %1913 = vmatpush.msra.mxu0 0.0
    %1914 = vmatpush.msra.mxu0 0.0
    %1915 = vmatpush.msra.mxu0 %v1890
    %1916 = vmatpush.msra.mxu0 %v1888
    %1917 = vmatmul.f32.gmra.mxu0 %v1896
    %v1918 = vpop.f32.mrf.mxu0
    %v1919 = vadd.f32 0.0, %v1918
    %1920 = vmatmul.f32.gmra.mxu0 %v1899
    %v1921 = vpop.f32.mrf.mxu0
    %v1922 = vadd.f32 0.0, %v1921
    %1923 = vdwg.mxu0
    %v1924 = vld [vmem:[%s35] sm:$0xff]
    %v1925 = vld [vmem:[%s35 + $0x8] sm:$0xff]
    %v1926 = vld [vmem:[%s35 + $0x10] sm:$0xff]
    %v1927 = vld [vmem:[%s35 + $0x18] sm:$0xff]
    %v1928 = vld [vmem:[%s35 + $0x20] sm:$0xff]
    %v1929 = vld [vmem:[%s35 + $0x28] sm:$0xff]
    %v1930 = vld [vmem:[%s35 + $0x30] sm:$0xff]
    %v1931 = vld [vmem:[%s35 + $0x38] sm:$0xff]
    %v1933 = vsel %vm782, %v1919, 0
    %v1936 = vsel %vm782, %v1922, 0
    %1938 = vmatpush.msra.mxu0 0.0
    %1939 = vmatpush.msra.mxu0 0.0
    %1940 = vmatpush.msra.mxu0 0.0
    %1941 = vmatpush.msra.mxu0 0.0
    %1942 = vmatpush.msra.mxu0 0.0
    %1943 = vmatpush.msra.mxu0 0.0
    %1944 = vmatpush.msra.mxu0 0.0
    %1945 = vmatpush.msra.mxu0 0.0
    %1946 = vmatpush.msra.mxu0 %v1931
    %1947 = vmatpush.msra.mxu0 %v1930
    %1948 = vmatpush.msra.mxu0 %v1929
    %1949 = vmatpush.msra.mxu0 %v1928
    %1950 = vmatpush.msra.mxu0 %v1927
    %1951 = vmatpush.msra.mxu0 %v1926
    %1952 = vmatpush.msra.mxu0 %v1925
    %1953 = vmatpush.msra.mxu0 %v1924
    %1954 = vmatmul.f32.gmra.mxu0 %v1933
    %v1955 = vpop.f32.mrf.mxu0
    %v1956 = vadd.f32 0.0, %v1955
    %1957 = vmatmul.f32.gmra.mxu0 %v1936
    %v1958 = vpop.f32.mrf.mxu0
    %v1959 = vadd.f32 0.0, %v1958
    %1960 = vdwg.mxu0
    %v1961 = vsub.f32 %v1888, %v1956
    %v1962 = vsub.f32 %v1890, %v1959
    %v1963 = vmul.f32 %v1961, %v1961
    %v1964 = vmul.f32 %v1962, %v1962
    %1965 = vmatpush.msra.mxu0 0.0
    %1966 = vmatpush.msra.mxu0 0.0
    %1967 = vmatpush.msra.mxu0 0.0
    %1968 = vmatpush.msra.mxu0 0.0
    %1969 = vmatpush.msra.mxu0 0.0
    %1970 = vmatpush.msra.mxu0 0.0
    %1971 = vmatpush.msra.mxu0 0.0
    %1972 = vmatpush.msra.mxu0 0.0
    %1973 = vmatpush.msra.mxu0 0.0
    %1974 = vmatpush.msra.mxu0 0.0
    %1975 = vmatpush.msra.mxu0 0.0
    %1976 = vmatpush.msra.mxu0 0.0
    %1977 = vmatpush.msra.mxu0 0.0
    %1978 = vmatpush.msra.mxu0 0.0
    %1979 = vmatpush.msra.mxu0 %v1964
    %1980 = vmatpush.msra.mxu0 %v1963
    %1981 = vmatmul.f32.gmra.mxu0 %v1896
    %v1982 = vpop.f32.mrf.mxu0
    %v1983 = vadd.f32 0.0, %v1982
    %1984 = vmatmul.f32.gmra.mxu0 %v1899
    %v1985 = vpop.f32.mrf.mxu0
    %v1986 = vadd.f32 0.0, %v1985
    %1987 = vdwg.mxu0
    %v1989 = vsel %vm782, %v1983, 0
    %v1992 = vsel %vm782, %v1986, 0
    %1994 = vmatpush.msra.mxu0 0.0
    %1995 = vmatpush.msra.mxu0 0.0
    %1996 = vmatpush.msra.mxu0 0.0
    %1997 = vmatpush.msra.mxu0 0.0
    %1998 = vmatpush.msra.mxu0 0.0
    %1999 = vmatpush.msra.mxu0 0.0
    %2000 = vmatpush.msra.mxu0 0.0
    %2001 = vmatpush.msra.mxu0 0.0
    %2002 = vmatpush.msra.mxu0 %v1931
    %2003 = vmatpush.msra.mxu0 %v1930
    %2004 = vmatpush.msra.mxu0 %v1929
    %2005 = vmatpush.msra.mxu0 %v1928
    %2006 = vmatpush.msra.mxu0 %v1927
    %2007 = vmatpush.msra.mxu0 %v1926
    %2008 = vmatpush.msra.mxu0 %v1925
    %2009 = vmatpush.msra.mxu0 %v1924
    %2010 = vmatmul.f32.gmra.mxu0 %v1989
    %v2011 = vpop.f32.mrf.mxu0
    %v2012 = vadd.f32 1e-05, %v2011
    %2013 = vmatmul.f32.gmra.mxu0 %v1992
    %v2014 = vpop.f32.mrf.mxu0
    %v2015 = vadd.f32 1e-05, %v2014
    %2016 = vdwg.mxu0
    %v2017 = vrsqrt.pop %v2012
    %v2018 = vmul.f32 %v2017, %v2012
    %v2019 = vmul.f32 %v2018, %v2017
    %v2020 = vmul.f32 0.5, %v2019
    %v2021 = vsub.f32 1.5, %v2020
    %v2022 = vmul.f32 %v2017, %v2021
    %vm2023 = vweird.f32 %v2012
    %vm2024 = vweird.f32 %v2017
    %vm2025 = vmor %vm2023, %vm2024
    %v2026 = vsel %vm2025, %v2017, %v2022
    %v2027 = vrsqrt.pop %v2015
    %v2028 = vmul.f32 %v2027, %v2015
    %v2029 = vmul.f32 %v2028, %v2027
    %v2030 = vmul.f32 0.5, %v2029
    %v2031 = vsub.f32 1.5, %v2030
    %v2032 = vmul.f32 %v2027, %v2031
    %vm2033 = vweird.f32 %v2015
    %vm2034 = vweird.f32 %v2027
    %vm2035 = vmor %vm2033, %vm2034
    %v2036 = vsel %vm2035, %v2027, %v2032
    %v2037 = vmul.f32 %v1961, %v2026
    %v2038 = vmul.f32 %v1962, %v2036
    %v2039 = vld [vmem:[#allocation7] sm:$0x1]
    %v2041 = vperm.slane %v2039, 0
    %v2043 = vmul.f32 %v2037, %v2041
    %v2044 = vmul.f32 %v2038, %v2041
    %v2045 = vld [vmem:[#allocation9] sm:$0x1]
    %v2047 = vperm.slane %v2045, 0
    %v2049 = vadd.f32 %v2043, %v2047
    %v2050 = vadd.f32 %v2044, %v2047
    %v2051 = vmax.f32 %v2049, 0.0
    %v2052 = vmax.f32 %v2050, 0.0
    %v2053 = vpack.c.bf16 %v2051, %v2051
    %v2054 = vpack.c.bf16 %v2052, %v2052
    %v2056 = vunpack.c.l.b16 %v2054
    %v2057 = vpack.c.b16 %v2056, %v2056
    %v2059 = vshrl.u32 %v2057, 16
    %v2061 = vrot.slane %v2059, 3
    %v2064 = vunpack.c.l.b16 %v2053
    %v2065 = vpack.c.b16 %v2056, %v2064
    %v2067 = vshrl.u32 %v2065, 16
    %v2069 = vrot.slane %v2067, 7
    %v2070 = vshll.u32 %v2065, 16
    %v2072 = vor.u32 %v2069, %v2070
    %v2074 = vsel %vm1678, %v2061, %v2072
    %v2075 = vunpack.c.l.bf16 %v2074
    %v2076 = vunpack.c.h.bf16 %v2074
    %v2077 = vmul.f32 %v2075, %v1702
    %v2078 = vmul.f32 %v2076, %v1703
    %v2079 = vpack.c.bf16 %v2077, %v2077
    %v2080 = vpack.c.bf16 %v2078, %v2078
    %v2081 = vrot.slane %v2070, 1
    %v2082 = vor.u32 %v2067, %v2081
    %v2084 = vpack.c.b16 %v2064, %v2064
    %v2086 = vshll.u32 %v2084, 16
    %v2088 = vrot.slane %v2086, 1
    %v2090 = vsel %vm1719, %v2082, %v2088
    %v2091 = vunpack.c.l.bf16 %v2090
    %v2092 = vunpack.c.h.bf16 %v2090
    %v2093 = vmul.f32 %v2091, %v1743
    %v2094 = vmul.f32 %v2092, %v1744
    %v2095 = vpack.c.bf16 %v2093, %v2093
    %v2096 = vpack.c.bf16 %v2094, %v2094
    %v2099 = vunpack.c.l.b16 %v2079
    %v2100 = vunpack.c.l.b16 %v2080
    %v2101 = vpack.c.b16 %v2100, %v2099
    %2102 = vrot.lane.b32.xlu0 %v2065, 64
    %v2103 = vpop.permute.xlu0 %2102
    %v2106 = vunpack.c.l.b16 %v2095
    %v2107 = vunpack.c.l.b16 %v2096
    %v2108 = vpack.c.b16 %v2107, %v2106
    %v2111 = vsel %vm782, %v2101, %v2103
    %v2113 = vld [vmem:[%s29] sm:$0xf]
    %v2114 = vld [vmem:[%s29 + $0x4] sm:$0xf]
    %v2115 = vld [vmem:[%s29 + $0x8] sm:$0xf]
    %v2116 = vld [vmem:[%s29 + $0xc] sm:$0xf]
    %v2117 = vld [vmem:[%s29 + $0x10] sm:$0xf]
    %v2118 = vld [vmem:[%s29 + $0x14] sm:$0xf]
    %v2119 = vld [vmem:[%s29 + $0x18] sm:$0xf]
    %v2120 = vld [vmem:[%s29 + $0x1c] sm:$0xf]
    %v2121 = vld [vmem:[%s29 + $0x20] sm:$0xf]
    %v2122 = vld [vmem:[%s29 + $0x24] sm:$0xf]
    %v2123 = vld [vmem:[%s29 + $0x28] sm:$0xf]
    %v2124 = vld [vmem:[%s29 + $0x2c] sm:$0xf]
    %v2125 = vld [vmem:[%s29 + $0x30] sm:$0xf]
    %v2126 = vld [vmem:[%s29 + $0x34] sm:$0xf]
    %v2127 = vld [vmem:[%s29 + $0x38] sm:$0xf]
    %v2128 = vld [vmem:[%s29 + $0x3c] sm:$0xf]
    %v2129 = vld [vmem:[%s29 + $0x40] sm:$0xf]
    %v2130 = vld [vmem:[%s29 + $0x44] sm:$0xf]
    %v2131 = vld [vmem:[%s29 + $0x48] sm:$0xf]
    %v2132 = vld [vmem:[%s29 + $0x4c] sm:$0xf]
    %v2133 = vld [vmem:[%s29 + $0x50] sm:$0xf]
    %v2134 = vld [vmem:[%s29 + $0x54] sm:$0xf]
    %v2135 = vld [vmem:[%s29 + $0x58] sm:$0xf]
    %v2136 = vld [vmem:[%s29 + $0x5c] sm:$0xf]
    %v2161 = vunpack.c.l.b16 %v2113
    %v2162 = vunpack.c.l.b16 %v2114
    %v2163 = vunpack.c.l.b16 %v2115
    %v2164 = vunpack.c.l.b16 %v2116
    %v2165 = vunpack.c.l.b16 %v2117
    %v2166 = vunpack.c.l.b16 %v2118
    %v2167 = vunpack.c.l.b16 %v2119
    %v2168 = vunpack.c.l.b16 %v2120
    %v2169 = vunpack.c.l.b16 %v2121
    %v2170 = vunpack.c.l.b16 %v2122
    %v2171 = vunpack.c.l.b16 %v2123
    %v2172 = vunpack.c.l.b16 %v2124
    %v2173 = vunpack.c.l.b16 %v2125
    %v2174 = vunpack.c.l.b16 %v2126
    %v2175 = vunpack.c.l.b16 %v2127
    %v2176 = vunpack.c.l.b16 %v2128
    %v2177 = vunpack.c.l.b16 %v2129
    %v2178 = vunpack.c.l.b16 %v2130
    %v2179 = vunpack.c.l.b16 %v2131
    %v2180 = vunpack.c.l.b16 %v2132
    %v2181 = vunpack.c.l.b16 %v2133
    %v2182 = vunpack.c.l.b16 %v2134
    %v2183 = vunpack.c.l.b16 %v2135
    %v2184 = vunpack.c.l.b16 %v2136
    %v2185 = vpack.c.b16 %v2162, %v2161
    %v2186 = vpack.c.b16 %v2164, %v2163
    %v2187 = vpack.c.b16 %v2166, %v2165
    %v2188 = vpack.c.b16 %v2168, %v2167
    %v2189 = vpack.c.b16 %v2170, %v2169
    %v2190 = vpack.c.b16 %v2172, %v2171
    %v2191 = vpack.c.b16 %v2174, %v2173
    %v2192 = vpack.c.b16 %v2176, %v2175
    %v2193 = vpack.c.b16 %v2178, %v2177
    %v2194 = vpack.c.b16 %v2180, %v2179
    %v2195 = vpack.c.b16 %v2182, %v2181
    %v2196 = vpack.c.b16 %v2184, %v2183
    %v2210 = vsel %vm782, %v2108, 0
    %2212 = vmatpush.bf16.msra.mxu0 %v2192
    %2213 = vmatpush.bf16.msra.mxu0 %v2191
    %2214 = vmatpush.bf16.msra.mxu0 %v2190
    %2215 = vmatpush.bf16.msra.mxu0 %v2189
    %2216 = vmatpush.bf16.msra.mxu0 %v2188
    %2217 = vmatpush.bf16.msra.mxu0 %v2187
    %2218 = vmatpush.bf16.msra.mxu0 %v2186
    %2219 = vmatpush.bf16.msra.mxu0 %v2185
    %2220 = vmatmul.bf16.gmra.mxu0 %v2111
    %v2221 = vpop.f32.mrf.mxu0
    %v2222 = vadd.f32 0.0, %v2221
    %v2223 = vpop.f32.mrf.mxu0
    %v2224 = vadd.f32 0.0, %v2223
    %2225 = vdwg.mxu0
    %2226 = vmatpush.bf16.msra.mxu0 0
    %2227 = vmatpush.bf16.msra.mxu0 0
    %2228 = vmatpush.bf16.msra.mxu0 0
    %2229 = vmatpush.bf16.msra.mxu0 0
    %2230 = vmatpush.bf16.msra.mxu0 %v2196
    %2231 = vmatpush.bf16.msra.mxu0 %v2195
    %2232 = vmatpush.bf16.msra.mxu0 %v2194
    %2233 = vmatpush.bf16.msra.mxu0 %v2193
    %2234 = vmatmul.bf16.gmra.mxu0 %v2210
    %v2235 = vpop.f32.mrf.mxu0
    %v2236 = vadd.f32 %v2222, %v2235
    %v2237 = vpop.f32.mrf.mxu0
    %v2238 = vadd.f32 %v2224, %v2237
    %2239 = vdwg.mxu0
    %2240 = vmatpush.msra.mxu0 0.0
    %2241 = vmatpush.msra.mxu0 0.0
    %2242 = vmatpush.msra.mxu0 0.0
    %2243 = vmatpush.msra.mxu0 0.0
    %2244 = vmatpush.msra.mxu0 0.0
    %2245 = vmatpush.msra.mxu0 0.0
    %2246 = vmatpush.msra.mxu0 0.0
    %2247 = vmatpush.msra.mxu0 0.0
    %2248 = vmatpush.msra.mxu0 0.0
    %2249 = vmatpush.msra.mxu0 0.0
    %2250 = vmatpush.msra.mxu0 0.0
    %2251 = vmatpush.msra.mxu0 0.0
    %2252 = vmatpush.msra.mxu0 0.0
    %2253 = vmatpush.msra.mxu0 0.0
    %2254 = vmatpush.msra.mxu0 %v2238
    %2255 = vmatpush.msra.mxu0 %v2236
    %2256 = vmatmul.f32.gmra.mxu0 %v1896
    %v2257 = vpop.f32.mrf.mxu0
    %v2258 = vadd.f32 0.0, %v2257
    %2259 = vmatmul.f32.gmra.mxu0 %v1899
    %v2260 = vpop.f32.mrf.mxu0
    %v2261 = vadd.f32 0.0, %v2260
    %2262 = vdwg.mxu0
    %v2264 = vsel %vm782, %v2258, 0
    %v2267 = vsel %vm782, %v2261, 0
    %2269 = vmatpush.msra.mxu0 0.0
    %2270 = vmatpush.msra.mxu0 0.0
    %2271 = vmatpush.msra.mxu0 0.0
    %2272 = vmatpush.msra.mxu0 0.0
    %2273 = vmatpush.msra.mxu0 0.0
    %2274 = vmatpush.msra.mxu0 0.0
    %2275 = vmatpush.msra.mxu0 0.0
    %2276 = vmatpush.msra.mxu0 0.0
    %2277 = vmatpush.msra.mxu0 %v1931
    %2278 = vmatpush.msra.mxu0 %v1930
    %2279 = vmatpush.msra.mxu0 %v1929
    %2280 = vmatpush.msra.mxu0 %v1928
    %2281 = vmatpush.msra.mxu0 %v1927
    %2282 = vmatpush.msra.mxu0 %v1926
    %2283 = vmatpush.msra.mxu0 %v1925
    %2284 = vmatpush.msra.mxu0 %v1924
    %2285 = vmatmul.f32.gmra.mxu0 %v2264
    %v2286 = vpop.f32.mrf.mxu0
    %v2287 = vadd.f32 0.0, %v2286
    %2288 = vmatmul.f32.gmra.mxu0 %v2267
    %v2289 = vpop.f32.mrf.mxu0
    %v2290 = vadd.f32 0.0, %v2289
    %2291 = vdwg.mxu0
    %v2292 = vsub.f32 %v2236, %v2287
    %v2293 = vsub.f32 %v2238, %v2290
    %v2294 = vmul.f32 %v2292, %v2292
    %v2295 = vmul.f32 %v2293, %v2293
    %2296 = vmatpush.msra.mxu0 0.0
    %2297 = vmatpush.msra.mxu0 0.0
    %2298 = vmatpush.msra.mxu0 0.0
    %2299 = vmatpush.msra.mxu0 0.0
    %2300 = vmatpush.msra.mxu0 0.0
    %2301 = vmatpush.msra.mxu0 0.0
    %2302 = vmatpush.msra.mxu0 0.0
    %2303 = vmatpush.msra.mxu0 0.0
    %2304 = vmatpush.msra.mxu0 0.0
    %2305 = vmatpush.msra.mxu0 0.0
    %2306 = vmatpush.msra.mxu0 0.0
    %2307 = vmatpush.msra.mxu0 0.0
    %2308 = vmatpush.msra.mxu0 0.0
    %2309 = vmatpush.msra.mxu0 0.0
    %2310 = vmatpush.msra.mxu0 %v2295
    %2311 = vmatpush.msra.mxu0 %v2294
    %2312 = vmatmul.f32.gmra.mxu0 %v1896
    %v2313 = vpop.f32.mrf.mxu0
    %v2314 = vadd.f32 0.0, %v2313
    %2315 = vmatmul.f32.gmra.mxu0 %v1899
    %v2316 = vpop.f32.mrf.mxu0
    %v2317 = vadd.f32 0.0, %v2316
    %2318 = vdwg.mxu0
    %v2320 = vsel %vm782, %v2314, 0
    %v2323 = vsel %vm782, %v2317, 0
    %2325 = vmatpush.msra.mxu0 0.0
    %2326 = vmatpush.msra.mxu0 0.0
    %2327 = vmatpush.msra.mxu0 0.0
    %2328 = vmatpush.msra.mxu0 0.0
    %2329 = vmatpush.msra.mxu0 0.0
    %2330 = vmatpush.msra.mxu0 0.0
    %2331 = vmatpush.msra.mxu0 0.0
    %2332 = vmatpush.msra.mxu0 0.0
    %2333 = vmatpush.msra.mxu0 %v1931
    %2334 = vmatpush.msra.mxu0 %v1930
    %2335 = vmatpush.msra.mxu0 %v1929
    %2336 = vmatpush.msra.mxu0 %v1928
    %2337 = vmatpush.msra.mxu0 %v1927
    %2338 = vmatpush.msra.mxu0 %v1926
    %2339 = vmatpush.msra.mxu0 %v1925
    %2340 = vmatpush.msra.mxu0 %v1924
    %2341 = vmatmul.f32.gmra.mxu0 %v2320
    %v2342 = vpop.f32.mrf.mxu0
    %v2343 = vadd.f32 1e-05, %v2342
    %2344 = vmatmul.f32.gmra.mxu0 %v2323
    %v2345 = vpop.f32.mrf.mxu0
    %v2346 = vadd.f32 1e-05, %v2345
    %2347 = vdwg.mxu0
    %v2348 = vrsqrt.pop %v2343
    %v2349 = vmul.f32 %v2348, %v2343
    %v2350 = vmul.f32 %v2349, %v2348
    %v2351 = vmul.f32 0.5, %v2350
    %v2352 = vsub.f32 1.5, %v2351
    %v2353 = vmul.f32 %v2348, %v2352
    %vm2354 = vweird.f32 %v2343
    %vm2355 = vweird.f32 %v2348
    %vm2356 = vmor %vm2354, %vm2355
    %v2357 = vsel %vm2356, %v2348, %v2353
    %v2358 = vrsqrt.pop %v2346
    %v2359 = vmul.f32 %v2358, %v2346
    %v2360 = vmul.f32 %v2359, %v2358
    %v2361 = vmul.f32 0.5, %v2360
    %v2362 = vsub.f32 1.5, %v2361
    %v2363 = vmul.f32 %v2358, %v2362
    %vm2364 = vweird.f32 %v2346
    %vm2365 = vweird.f32 %v2358
    %vm2366 = vmor %vm2364, %vm2365
    %v2367 = vsel %vm2366, %v2358, %v2363
    %v2368 = vmul.f32 %v2292, %v2357
    %v2369 = vmul.f32 %v2293, %v2367
    %v2370 = vld [vmem:[#allocation10] sm:$0x1]
    %v2372 = vperm.slane %v2370, 0
    %v2374 = vmul.f32 %v2368, %v2372
    %v2375 = vmul.f32 %v2369, %v2372
    %v2376 = vld [vmem:[#allocation12] sm:$0x1]
    %v2378 = vperm.slane %v2376, 0
    %v2380 = vadd.f32 %v2374, %v2378
    %v2381 = vadd.f32 %v2375, %v2378
    %v2382 = vadd.f32 %v2380, %v1653
    %v2383 = vadd.f32 %v2381, %v1654
    %v2384 = vmax.f32 %v2382, 0.0
    %v2385 = vmax.f32 %v2383, 0.0
    %v2386 = vpack.c.bf16 %v2385, %v2384
    %v2387 = vld [vmem:[%s39] sm:$0xf]
    %v2389 = vsel %vm1894, %v2387, 0
    %2391 = vmatpush.bf16.msra.mxu0 0
    %2392 = vmatpush.bf16.msra.mxu0 0
    %2393 = vmatpush.bf16.msra.mxu0 0
    %2394 = vmatpush.bf16.msra.mxu0 0
    %2395 = vmatpush.bf16.msra.mxu0 0
    %2396 = vmatpush.bf16.msra.mxu0 0
    %2397 = vmatpush.bf16.msra.mxu0 0
    %2398 = vmatpush.bf16.msra.mxu0 %v2386
    %2399 = vmatmul.bf16.gmra.mxu0 %v2389
    %v2400 = vpop.f32.mrf.mxu0
    %v2401 = vadd.f32 0.0, %v2400
    %v2402 = vpop.f32.mrf.mxu0
    %2403 = vdwg.mxu0
    %v2404 = vpack.c.bf16 %v2401, %v2401
    %v2405 = vld [vmem:[#allocation15] sm:$0xf]
    %v2406 = vld [vmem:[#allocation15 + $0x4] sm:$0xf]
    %v2407 = vld [vmem:[#allocation15 + $0x8] sm:$0xf]
    %v2408 = vld [vmem:[#allocation15 + $0xc] sm:$0xf]
    %v2409 = vld [vmem:[#allocation15 + $0x10] sm:$0xf]
    %v2410 = vld [vmem:[#allocation15 + $0x14] sm:$0xf]
    %v2411 = vld [vmem:[#allocation15 + $0x18] sm:$0xf]
    %v2412 = vld [vmem:[#allocation15 + $0x1c] sm:$0xf]
    %v2421 = vunpack.c.l.b16 %v2405
    %v2422 = vunpack.c.l.b16 %v2406
    %v2423 = vunpack.c.l.b16 %v2407
    %v2424 = vunpack.c.l.b16 %v2408
    %v2425 = vunpack.c.l.b16 %v2409
    %v2426 = vunpack.c.l.b16 %v2410
    %v2427 = vunpack.c.l.b16 %v2411
    %v2428 = vunpack.c.l.b16 %v2412
    %v2429 = vpack.c.b16 %v2422, %v2421
    %v2430 = vpack.c.b16 %v2424, %v2423
    %v2431 = vpack.c.b16 %v2426, %v2425
    %v2432 = vpack.c.b16 %v2428, %v2427
    %v2438 = vsel %vm782, %v2404, 0
    %2440 = vmatpush.bf16.msra.mxu0 0
    %2441 = vmatpush.bf16.msra.mxu0 0
    %2442 = vmatpush.bf16.msra.mxu0 0
    %2443 = vmatpush.bf16.msra.mxu0 0
    %2444 = vmatpush.bf16.msra.mxu0 %v2432
    %2445 = vmatpush.bf16.msra.mxu0 %v2431
    %2446 = vmatpush.bf16.msra.mxu0 %v2430
    %2447 = vmatpush.bf16.msra.mxu0 %v2429
    %2448 = vmatmul.bf16.gmra.mxu0 %v2438
    %v2449 = vpop.f32.mrf.mxu0
    %v2450 = vadd.f32 0.0, %v2449
    %v2451 = vpop.f32.mrf.mxu0
    %2452 = vdwg.mxu0
    %v2453 = vld [vmem:[%s67] sm:$0xff]
    %vm2454 = vcmask 64512
    %v2456 = vsel %vm2454, %v2453, 0
    %2458 = vmatpush.msra.mxu0 0.0
    %2459 = vmatpush.msra.mxu0 0.0
    %2460 = vmatpush.msra.mxu0 0.0
    %2461 = vmatpush.msra.mxu0 0.0
    %2462 = vmatpush.msra.mxu0 0.0
    %2463 = vmatpush.msra.mxu0 0.0
    %2464 = vmatpush.msra.mxu0 0.0
    %2465 = vmatpush.msra.mxu0 0.0
    %2466 = vmatpush.msra.mxu0 0.0
    %2467 = vmatpush.msra.mxu0 0.0
    %2468 = vmatpush.msra.mxu0 0.0
    %2469 = vmatpush.msra.mxu0 0.0
    %2470 = vmatpush.msra.mxu0 0.0
    %2471 = vmatpush.msra.mxu0 0.0
    %2472 = vmatpush.msra.mxu0 0.0
    %2473 = vmatpush.msra.mxu0 %v2450
    %2474 = vmatmul.f32.gmra.mxu0 %v2456
    %v2475 = vpop.f32.mrf.mxu0
    %v2476 = vadd.f32 0.0, %v2475
    %2477 = vdwg.mxu0
    %v2478 = vld [vmem:[#allocation25] sm:$0xff]
    %v2479 = vld [vmem:[#allocation25 + $0x8] sm:$0xff]
    %v2480 = vld [vmem:[#allocation25 + $0x10] sm:$0xff]
    %v2481 = vld [vmem:[#allocation25 + $0x18] sm:$0xff]
    %v2482 = vld [vmem:[#allocation25 + $0x20] sm:$0xff]
    %v2483 = vld [vmem:[#allocation25 + $0x28] sm:$0xff]
    %v2484 = vld [vmem:[#allocation25 + $0x30] sm:$0xff]
    %v2485 = vld [vmem:[#allocation25 + $0x38] sm:$0xff]
    %v2487 = vsel %vm782, %v2476, 0
    %2489 = vmatpush.msra.mxu0 0.0
    %2490 = vmatpush.msra.mxu0 0.0
    %2491 = vmatpush.msra.mxu0 0.0
    %2492 = vmatpush.msra.mxu0 0.0
    %2493 = vmatpush.msra.mxu0 0.0
    %2494 = vmatpush.msra.mxu0 0.0
    %2495 = vmatpush.msra.mxu0 0.0
    %2496 = vmatpush.msra.mxu0 0.0
    %2497 = vmatpush.msra.mxu0 %v2485
    %2498 = vmatpush.msra.mxu0 %v2484
    %2499 = vmatpush.msra.mxu0 %v2483
    %2500 = vmatpush.msra.mxu0 %v2482
    %2501 = vmatpush.msra.mxu0 %v2481
    %2502 = vmatpush.msra.mxu0 %v2480
    %2503 = vmatpush.msra.mxu0 %v2479
    %2504 = vmatpush.msra.mxu0 %v2478
    %2505 = vmatmul.f32.gmra.mxu0 %v2487
    %v2506 = vpop.f32.mrf.mxu0
    %v2507 = vadd.f32 0.0, %v2506
    %2508 = vdwg.mxu0
    %v2509 = vsub.f32 %v2450, %v2507
    %v2510 = vmul.f32 %v2509, %v2509
    %2511 = vmatpush.msra.mxu0 0.0
    %2512 = vmatpush.msra.mxu0 0.0
    %2513 = vmatpush.msra.mxu0 0.0
    %2514 = vmatpush.msra.mxu0 0.0
    %2515 = vmatpush.msra.mxu0 0.0
    %2516 = vmatpush.msra.mxu0 0.0
    %2517 = vmatpush.msra.mxu0 0.0
    %2518 = vmatpush.msra.mxu0 0.0
    %2519 = vmatpush.msra.mxu0 0.0
    %2520 = vmatpush.msra.mxu0 0.0
    %2521 = vmatpush.msra.mxu0 0.0
    %2522 = vmatpush.msra.mxu0 0.0
    %2523 = vmatpush.msra.mxu0 0.0
    %2524 = vmatpush.msra.mxu0 0.0
    %2525 = vmatpush.msra.mxu0 0.0
    %2526 = vmatpush.msra.mxu0 %v2510
    %2527 = vmatmul.f32.gmra.mxu0 %v2456
    %v2528 = vpop.f32.mrf.mxu0
    %v2529 = vadd.f32 0.0, %v2528
    %2530 = vdwg.mxu0
    %v2532 = vsel %vm782, %v2529, 0
    %2534 = vmatpush.msra.mxu0 0.0
    %2535 = vmatpush.msra.mxu0 0.0
    %2536 = vmatpush.msra.mxu0 0.0
    %2537 = vmatpush.msra.mxu0 0.0
    %2538 = vmatpush.msra.mxu0 0.0
    %2539 = vmatpush.msra.mxu0 0.0
    %2540 = vmatpush.msra.mxu0 0.0
    %2541 = vmatpush.msra.mxu0 0.0
    %2542 = vmatpush.msra.mxu0 %v2485
    %2543 = vmatpush.msra.mxu0 %v2484
    %2544 = vmatpush.msra.mxu0 %v2483
    %2545 = vmatpush.msra.mxu0 %v2482
    %2546 = vmatpush.msra.mxu0 %v2481
    %2547 = vmatpush.msra.mxu0 %v2480
    %2548 = vmatpush.msra.mxu0 %v2479
    %2549 = vmatpush.msra.mxu0 %v2478
    %2550 = vmatmul.f32.gmra.mxu0 %v2532
    %v2551 = vpop.f32.mrf.mxu0
    %v2552 = vadd.f32 1e-05, %v2551
    %2553 = vdwg.mxu0
    %v2554 = vrsqrt.pop %v2552
    %v2555 = vmul.f32 %v2554, %v2552
    %v2556 = vmul.f32 %v2555, %v2554
    %v2557 = vmul.f32 0.5, %v2556
    %v2558 = vsub.f32 1.5, %v2557
    %v2559 = vmul.f32 %v2554, %v2558
    %vm2560 = vweird.f32 %v2552
    %vm2561 = vweird.f32 %v2554
    %vm2562 = vmor %vm2560, %vm2561
    %v2563 = vsel %vm2562, %v2554, %v2559
    %v2564 = vmul.f32 %v2509, %v2563
    %v2565 = vld [vmem:[#allocation16] sm:$0x1]
    %v2567 = vperm.slane %v2565, 0
    %v2569 = vmul.f32 %v2564, %v2567
    %v2570 = vld [vmem:[#allocation18] sm:$0x1]
    %v2572 = vperm.slane %v2570, 0
    %v2574 = vadd.f32 %v2569, %v2572
    %v2575 = vld [vmem:[%s47] sm:$0xf]
    %v2577 = vsel %vm1894, %v2575, 0
    %2579 = vmatpush.bf16.msra.mxu0 0
    %2580 = vmatpush.bf16.msra.mxu0 0
    %2581 = vmatpush.bf16.msra.mxu0 0
    %2582 = vmatpush.bf16.msra.mxu0 0
    %2583 = vmatpush.bf16.msra.mxu0 0
    %2584 = vmatpush.bf16.msra.mxu0 0
    %2585 = vmatpush.bf16.msra.mxu0 0
    %2586 = vmatpush.bf16.msra.mxu0 %v2386
    %2587 = vmatmul.bf16.gmra.mxu0 %v2577
    %v2588 = vpop.f32.mrf.mxu0
    %v2589 = vadd.f32 0.0, %v2588
    %v2590 = vpop.f32.mrf.mxu0
    %2591 = vdwg.mxu0
    %v2592 = vpack.c.bf16 %v2589, %v2589
    %s2593 = scalar_lea.vmem %s47, 4
    %v2594 = vld [vmem:[%s2593] sm:$0xf]
    %v2596 = vsel %vm1894, %v2594, 0
    %2598 = vmatpush.bf16.msra.mxu0 0
    %2599 = vmatpush.bf16.msra.mxu0 0
    %2600 = vmatpush.bf16.msra.mxu0 0
    %2601 = vmatpush.bf16.msra.mxu0 0
    %2602 = vmatpush.bf16.msra.mxu0 0
    %2603 = vmatpush.bf16.msra.mxu0 0
    %2604 = vmatpush.bf16.msra.mxu0 0
    %2605 = vmatpush.bf16.msra.mxu0 %v2386
    %2606 = vmatmul.bf16.gmra.mxu0 %v2596
    %v2607 = vpop.f32.mrf.mxu0
    %v2608 = vadd.f32 0.0, %v2607
    %v2609 = vpop.f32.mrf.mxu0
    %2610 = vdwg.mxu0
    %v2611 = vpack.c.bf16 %v2608, %v2608
    %s2612 = scalar_lea.vmem %s47, 8
    %v2613 = vld [vmem:[%s2612] sm:$0xf]
    %v2615 = vsel %vm1894, %v2613, 0
    %2617 = vmatpush.bf16.msra.mxu0 0
    %2618 = vmatpush.bf16.msra.mxu0 0
    %2619 = vmatpush.bf16.msra.mxu0 0
    %2620 = vmatpush.bf16.msra.mxu0 0
    %2621 = vmatpush.bf16.msra.mxu0 0
    %2622 = vmatpush.bf16.msra.mxu0 0
    %2623 = vmatpush.bf16.msra.mxu0 0
    %2624 = vmatpush.bf16.msra.mxu0 %v2386
    %2625 = vmatmul.bf16.gmra.mxu0 %v2615
    %v2626 = vpop.f32.mrf.mxu0
    %v2627 = vadd.f32 0.0, %v2626
    %v2628 = vpop.f32.mrf.mxu0
    %2629 = vdwg.mxu0
    %v2630 = vpack.c.bf16 %v2627, %v2627
    %v2632 = vunpack.c.l.b16 %v2611
    %v2633 = vpack.c.b16 %v2632, %v2632
    %2634 = vrot.lane.b32.xlu0 %v2633, 64
    %v2635 = vpop.permute.xlu0 %2634
    %v2638 = vsel %vm782, %v2592, %v2635
    %v2640 = vld [vmem:[%s49] sm:$0xf]
    %v2641 = vld [vmem:[%s49 + $0x4] sm:$0xf]
    %v2642 = vld [vmem:[%s49 + $0x8] sm:$0xf]
    %v2643 = vld [vmem:[%s49 + $0xc] sm:$0xf]
    %v2644 = vld [vmem:[%s49 + $0x10] sm:$0xf]
    %v2645 = vld [vmem:[%s49 + $0x14] sm:$0xf]
    %v2646 = vld [vmem:[%s49 + $0x18] sm:$0xf]
    %v2647 = vld [vmem:[%s49 + $0x1c] sm:$0xf]
    %v2648 = vld [vmem:[%s49 + $0x20] sm:$0xf]
    %v2649 = vld [vmem:[%s49 + $0x24] sm:$0xf]
    %v2650 = vld [vmem:[%s49 + $0x28] sm:$0xf]
    %v2651 = vld [vmem:[%s49 + $0x2c] sm:$0xf]
    %v2652 = vld [vmem:[%s49 + $0x30] sm:$0xf]
    %v2653 = vld [vmem:[%s49 + $0x34] sm:$0xf]
    %v2654 = vld [vmem:[%s49 + $0x38] sm:$0xf]
    %v2655 = vld [vmem:[%s49 + $0x3c] sm:$0xf]
    %v2656 = vld [vmem:[%s49 + $0x40] sm:$0xf]
    %v2657 = vld [vmem:[%s49 + $0x44] sm:$0xf]
    %v2658 = vld [vmem:[%s49 + $0x48] sm:$0xf]
    %v2659 = vld [vmem:[%s49 + $0x4c] sm:$0xf]
    %v2660 = vld [vmem:[%s49 + $0x50] sm:$0xf]
    %v2661 = vld [vmem:[%s49 + $0x54] sm:$0xf]
    %v2662 = vld [vmem:[%s49 + $0x58] sm:$0xf]
    %v2663 = vld [vmem:[%s49 + $0x5c] sm:$0xf]
    %v2688 = vunpack.c.l.b16 %v2640
    %v2689 = vunpack.c.l.b16 %v2641
    %v2690 = vunpack.c.l.b16 %v2642
    %v2691 = vunpack.c.l.b16 %v2643
    %v2692 = vunpack.c.l.b16 %v2644
    %v2693 = vunpack.c.l.b16 %v2645
    %v2694 = vunpack.c.l.b16 %v2646
    %v2695 = vunpack.c.l.b16 %v2647
    %v2696 = vunpack.c.l.b16 %v2648
    %v2697 = vunpack.c.l.b16 %v2649
    %v2698 = vunpack.c.l.b16 %v2650
    %v2699 = vunpack.c.l.b16 %v2651
    %v2700 = vunpack.c.l.b16 %v2652
    %v2701 = vunpack.c.l.b16 %v2653
    %v2702 = vunpack.c.l.b16 %v2654
    %v2703 = vunpack.c.l.b16 %v2655
    %v2704 = vunpack.c.l.b16 %v2656
    %v2705 = vunpack.c.l.b16 %v2657
    %v2706 = vunpack.c.l.b16 %v2658
    %v2707 = vunpack.c.l.b16 %v2659
    %v2708 = vunpack.c.l.b16 %v2660
    %v2709 = vunpack.c.l.b16 %v2661
    %v2710 = vunpack.c.l.b16 %v2662
    %v2711 = vunpack.c.l.b16 %v2663
    %v2712 = vpack.c.b16 %v2689, %v2688
    %v2713 = vpack.c.b16 %v2691, %v2690
    %v2714 = vpack.c.b16 %v2693, %v2692
    %v2715 = vpack.c.b16 %v2695, %v2694
    %v2716 = vpack.c.b16 %v2697, %v2696
    %v2717 = vpack.c.b16 %v2699, %v2698
    %v2718 = vpack.c.b16 %v2701, %v2700
    %v2719 = vpack.c.b16 %v2703, %v2702
    %v2720 = vpack.c.b16 %v2705, %v2704
    %v2721 = vpack.c.b16 %v2707, %v2706
    %v2722 = vpack.c.b16 %v2709, %v2708
    %v2723 = vpack.c.b16 %v2711, %v2710
    %v2737 = vsel %vm782, %v2630, 0
    %2739 = vmatpush.bf16.msra.mxu0 %v2719
    %2740 = vmatpush.bf16.msra.mxu0 %v2718
    %2741 = vmatpush.bf16.msra.mxu0 %v2717
    %2742 = vmatpush.bf16.msra.mxu0 %v2716
    %2743 = vmatpush.bf16.msra.mxu0 %v2715
    %2744 = vmatpush.bf16.msra.mxu0 %v2714
    %2745 = vmatpush.bf16.msra.mxu0 %v2713
    %2746 = vmatpush.bf16.msra.mxu0 %v2712
    %2747 = vmatmul.bf16.gmra.mxu0 %v2638
    %v2748 = vpop.f32.mrf.mxu0
    %v2749 = vadd.f32 0.0, %v2748
    %v2750 = vpop.f32.mrf.mxu0
    %2751 = vdwg.mxu0
    %2752 = vmatpush.bf16.msra.mxu0 0
    %2753 = vmatpush.bf16.msra.mxu0 0
    %2754 = vmatpush.bf16.msra.mxu0 0
    %2755 = vmatpush.bf16.msra.mxu0 0
    %2756 = vmatpush.bf16.msra.mxu0 %v2723
    %2757 = vmatpush.bf16.msra.mxu0 %v2722
    %2758 = vmatpush.bf16.msra.mxu0 %v2721
    %2759 = vmatpush.bf16.msra.mxu0 %v2720
    %2760 = vmatmul.bf16.gmra.mxu0 %v2737
    %v2761 = vpop.f32.mrf.mxu0
    %v2762 = vadd.f32 %v2749, %v2761
    %v2763 = vpop.f32.mrf.mxu0
    %2764 = vdwg.mxu0
    %2765 = vmatpush.msra.mxu0 0.0
    %2766 = vmatpush.msra.mxu0 0.0
    %2767 = vmatpush.msra.mxu0 0.0
    %2768 = vmatpush.msra.mxu0 0.0
    %2769 = vmatpush.msra.mxu0 0.0
    %2770 = vmatpush.msra.mxu0 0.0
    %2771 = vmatpush.msra.mxu0 0.0
    %2772 = vmatpush.msra.mxu0 0.0
    %2773 = vmatpush.msra.mxu0 0.0
    %2774 = vmatpush.msra.mxu0 0.0
    %2775 = vmatpush.msra.mxu0 0.0
    %2776 = vmatpush.msra.mxu0 0.0
    %2777 = vmatpush.msra.mxu0 0.0
    %2778 = vmatpush.msra.mxu0 0.0
    %2779 = vmatpush.msra.mxu0 0.0
    %2780 = vmatpush.msra.mxu0 %v2762
    %2781 = vmatmul.f32.gmra.mxu0 %v2456
    %v2782 = vpop.f32.mrf.mxu0
    %v2783 = vadd.f32 0.0, %v2782
    %2784 = vdwg.mxu0
    %v2786 = vsel %vm782, %v2783, 0
    %2788 = vmatpush.msra.mxu0 0.0
    %2789 = vmatpush.msra.mxu0 0.0
    %2790 = vmatpush.msra.mxu0 0.0
    %2791 = vmatpush.msra.mxu0 0.0
    %2792 = vmatpush.msra.mxu0 0.0
    %2793 = vmatpush.msra.mxu0 0.0
    %2794 = vmatpush.msra.mxu0 0.0
    %2795 = vmatpush.msra.mxu0 0.0
    %2796 = vmatpush.msra.mxu0 %v2485
    %2797 = vmatpush.msra.mxu0 %v2484
    %2798 = vmatpush.msra.mxu0 %v2483
    %2799 = vmatpush.msra.mxu0 %v2482
    %2800 = vmatpush.msra.mxu0 %v2481
    %2801 = vmatpush.msra.mxu0 %v2480
    %2802 = vmatpush.msra.mxu0 %v2479
    %2803 = vmatpush.msra.mxu0 %v2478
    %2804 = vmatmul.f32.gmra.mxu0 %v2786
    %v2805 = vpop.f32.mrf.mxu0
    %v2806 = vadd.f32 0.0, %v2805
    %2807 = vdwg.mxu0
    %v2808 = vsub.f32 %v2762, %v2806
    %v2809 = vmul.f32 %v2808, %v2808
    %2810 = vmatpush.msra.mxu0 0.0
    %2811 = vmatpush.msra.mxu0 0.0
    %2812 = vmatpush.msra.mxu0 0.0
    %2813 = vmatpush.msra.mxu0 0.0
    %2814 = vmatpush.msra.mxu0 0.0
    %2815 = vmatpush.msra.mxu0 0.0
    %2816 = vmatpush.msra.mxu0 0.0
    %2817 = vmatpush.msra.mxu0 0.0
    %2818 = vmatpush.msra.mxu0 0.0
    %2819 = vmatpush.msra.mxu0 0.0
    %2820 = vmatpush.msra.mxu0 0.0
    %2821 = vmatpush.msra.mxu0 0.0
    %2822 = vmatpush.msra.mxu0 0.0
    %2823 = vmatpush.msra.mxu0 0.0
    %2824 = vmatpush.msra.mxu0 0.0
    %2825 = vmatpush.msra.mxu0 %v2809
    %2826 = vmatmul.f32.gmra.mxu0 %v2456
    %v2827 = vpop.f32.mrf.mxu0
    %v2828 = vadd.f32 0.0, %v2827
    %2829 = vdwg.mxu0
    %v2831 = vsel %vm782, %v2828, 0
    %2833 = vmatpush.msra.mxu0 0.0
    %2834 = vmatpush.msra.mxu0 0.0
    %2835 = vmatpush.msra.mxu0 0.0
    %2836 = vmatpush.msra.mxu0 0.0
    %2837 = vmatpush.msra.mxu0 0.0
    %2838 = vmatpush.msra.mxu0 0.0
    %2839 = vmatpush.msra.mxu0 0.0
    %2840 = vmatpush.msra.mxu0 0.0
    %2841 = vmatpush.msra.mxu0 %v2485
    %2842 = vmatpush.msra.mxu0 %v2484
    %2843 = vmatpush.msra.mxu0 %v2483
    %2844 = vmatpush.msra.mxu0 %v2482
    %2845 = vmatpush.msra.mxu0 %v2481
    %2846 = vmatpush.msra.mxu0 %v2480
    %2847 = vmatpush.msra.mxu0 %v2479
    %2848 = vmatpush.msra.mxu0 %v2478
    %2849 = vmatmul.f32.gmra.mxu0 %v2831
    %v2850 = vpop.f32.mrf.mxu0
    %v2851 = vadd.f32 1e-05, %v2850
    %2852 = vdwg.mxu0
    %v2853 = vrsqrt.pop %v2851
    %v2854 = vmul.f32 %v2853, %v2851
    %v2855 = vmul.f32 %v2854, %v2853
    %v2856 = vmul.f32 0.5, %v2855
    %v2857 = vsub.f32 1.5, %v2856
    %v2858 = vmul.f32 %v2853, %v2857
    %vm2859 = vweird.f32 %v2851
    %vm2860 = vweird.f32 %v2853
    %vm2861 = vmor %vm2859, %vm2860
    %v2862 = vsel %vm2861, %v2853, %v2858
    %v2863 = vmul.f32 %v2808, %v2862
    %v2864 = vld [vmem:[#allocation19] sm:$0x1]
    %v2866 = vperm.slane %v2864, 0
    %v2868 = vmul.f32 %v2863, %v2866
    %v2869 = vld [vmem:[#allocation21] sm:$0x1]
    %v2871 = vperm.slane %v2869, 0
    %v2873 = vadd.f32 %v2868, %v2871
    %v2874 = vmax.f32 %v2873, 0.0
    %v2875 = vpack.c.bf16 %v2874, %v2874
    %v2877 = vunpack.c.l.b16 %v2875
    %v2878 = vpack.c.b16 %v2877, %v2877
    %v2880 = vshrl.u32 %v2878, 16
    %v2882 = vrot.slane %v2880, 3
    %v2884 = vrot.slane %v2880, 7
    %v2885 = vshll.u32 %v2878, 16
    %v2887 = vor.u32 %v2884, %v2885
    %v2889 = vsel %vm1678, %v2882, %v2887
    %v2890 = vld [vmem:[%s55] sm:$0xf]
    %2892 = vset.pattern.permute.xlu0 0
    %2893 = vperm.xlu0 %2892, %v2890
    %v2894 = vpop.permute.xlu0 %2893
    %v2897 = vunpack.c.l.s4 839922192
    %v2898 = vunpack.c.0.s8 %v2897
    %v2899 = vperm.slane %v2894, %v2898
    %v2900 = vunpack.c.l.bf16 %v2889
    %v2901 = vunpack.c.l.bf16 %v2899
    %v2902 = vmul.f32 %v2900, %v2901
    %v2903 = vpack.c.bf16 %v2902, %v2902
    %v2904 = vrot.slane %v2885, 1
    %v2905 = vor.u32 %v2880, %v2904
    %v2907 = vrot.slane %v2885, 5
    %vm2909 = vcmask 1043456
    %vm2910 = vsmask.f32 3328
    %vm2911 = vmand %vm2909, %vm2910
    %v2912 = vsel %vm2911, %v2905, %v2907
    %v2913 = vld [vmem:[%s57] sm:$0xf]
    %2915 = vset.pattern.permute.xlu0 0
    %2916 = vperm.xlu0 %2915, %v2913
    %v2917 = vpop.permute.xlu0 %2916
    %v2920 = vunpack.c.l.s4 839922192
    %v2921 = vunpack.c.0.s8 %v2920
    %v2922 = vperm.slane %v2917, %v2921
    %v2923 = vunpack.c.l.bf16 %v2912
    %v2924 = vunpack.c.l.bf16 %v2922
    %v2925 = vmul.f32 %v2923, %v2924
    %v2926 = vpack.c.bf16 %v2925, %v2925
    %2927 = vrot.lane.b32.xlu0 %v2878, 64
    %v2928 = vpop.permute.xlu0 %2927
    %v2931 = vsel %vm782, %v2903, %v2928
    %v2933 = vld [vmem:[%s59] sm:$0xf]
    %v2934 = vld [vmem:[%s59 + $0x4] sm:$0xf]
    %v2935 = vld [vmem:[%s59 + $0x8] sm:$0xf]
    %v2936 = vld [vmem:[%s59 + $0xc] sm:$0xf]
    %v2937 = vld [vmem:[%s59 + $0x10] sm:$0xf]
    %v2938 = vld [vmem:[%s59 + $0x14] sm:$0xf]
    %v2939 = vld [vmem:[%s59 + $0x18] sm:$0xf]
    %v2940 = vld [vmem:[%s59 + $0x1c] sm:$0xf]
    %v2941 = vld [vmem:[%s59 + $0x20] sm:$0xf]
    %v2942 = vld [vmem:[%s59 + $0x24] sm:$0xf]
    %v2943 = vld [vmem:[%s59 + $0x28] sm:$0xf]
    %v2944 = vld [vmem:[%s59 + $0x2c] sm:$0xf]
    %v2945 = vld [vmem:[%s59 + $0x30] sm:$0xf]
    %v2946 = vld [vmem:[%s59 + $0x34] sm:$0xf]
    %v2947 = vld [vmem:[%s59 + $0x38] sm:$0xf]
    %v2948 = vld [vmem:[%s59 + $0x3c] sm:$0xf]
    %v2949 = vld [vmem:[%s59 + $0x40] sm:$0xf]
    %v2950 = vld [vmem:[%s59 + $0x44] sm:$0xf]
    %v2951 = vld [vmem:[%s59 + $0x48] sm:$0xf]
    %v2952 = vld [vmem:[%s59 + $0x4c] sm:$0xf]
    %v2953 = vld [vmem:[%s59 + $0x50] sm:$0xf]
    %v2954 = vld [vmem:[%s59 + $0x54] sm:$0xf]
    %v2955 = vld [vmem:[%s59 + $0x58] sm:$0xf]
    %v2956 = vld [vmem:[%s59 + $0x5c] sm:$0xf]
    %v2981 = vunpack.c.l.b16 %v2933
    %v2982 = vunpack.c.l.b16 %v2934
    %v2983 = vunpack.c.l.b16 %v2935
    %v2984 = vunpack.c.l.b16 %v2936
    %v2985 = vunpack.c.l.b16 %v2937
    %v2986 = vunpack.c.l.b16 %v2938
    %v2987 = vunpack.c.l.b16 %v2939
    %v2988 = vunpack.c.l.b16 %v2940
    %v2989 = vunpack.c.l.b16 %v2941
    %v2990 = vunpack.c.l.b16 %v2942
    %v2991 = vunpack.c.l.b16 %v2943
    %v2992 = vunpack.c.l.b16 %v2944
    %v2993 = vunpack.c.l.b16 %v2945
    %v2994 = vunpack.c.l.b16 %v2946
    %v2995 = vunpack.c.l.b16 %v2947
    %v2996 = vunpack.c.l.b16 %v2948
    %v2997 = vunpack.c.l.b16 %v2949
    %v2998 = vunpack.c.l.b16 %v2950
    %v2999 = vunpack.c.l.b16 %v2951
    %v3000 = vunpack.c.l.b16 %v2952
    %v3001 = vunpack.c.l.b16 %v2953
    %v3002 = vunpack.c.l.b16 %v2954
    %v3003 = vunpack.c.l.b16 %v2955
    %v3004 = vunpack.c.l.b16 %v2956
    %v3005 = vpack.c.b16 %v2982, %v2981
    %v3006 = vpack.c.b16 %v2984, %v2983
    %v3007 = vpack.c.b16 %v2986, %v2985
    %v3008 = vpack.c.b16 %v2988, %v2987
    %v3009 = vpack.c.b16 %v2990, %v2989
    %v3010 = vpack.c.b16 %v2992, %v2991
    %v3011 = vpack.c.b16 %v2994, %v2993
    %v3012 = vpack.c.b16 %v2996, %v2995
    %v3013 = vpack.c.b16 %v2998, %v2997
    %v3014 = vpack.c.b16 %v3000, %v2999
    %v3015 = vpack.c.b16 %v3002, %v3001
    %v3016 = vpack.c.b16 %v3004, %v3003
    %v3030 = vsel %vm782, %v2926, 0
    %3032 = vmatpush.bf16.msra.mxu0 %v3012
    %3033 = vmatpush.bf16.msra.mxu0 %v3011
    %3034 = vmatpush.bf16.msra.mxu0 %v3010
    %3035 = vmatpush.bf16.msra.mxu0 %v3009
    %3036 = vmatpush.bf16.msra.mxu0 %v3008
    %3037 = vmatpush.bf16.msra.mxu0 %v3007
    %3038 = vmatpush.bf16.msra.mxu0 %v3006
    %3039 = vmatpush.bf16.msra.mxu0 %v3005
    %3040 = vmatmul.bf16.gmra.mxu0 %v2931
    %v3041 = vpop.f32.mrf.mxu0
    %v3042 = vadd.f32 0.0, %v3041
    %v3043 = vpop.f32.mrf.mxu0
    %3044 = vdwg.mxu0
    %3045 = vmatpush.bf16.msra.mxu0 0
    %3046 = vmatpush.bf16.msra.mxu0 0
    %3047 = vmatpush.bf16.msra.mxu0 0
    %3048 = vmatpush.bf16.msra.mxu0 0
    %3049 = vmatpush.bf16.msra.mxu0 %v3016
    %3050 = vmatpush.bf16.msra.mxu0 %v3015
    %3051 = vmatpush.bf16.msra.mxu0 %v3014
    %3052 = vmatpush.bf16.msra.mxu0 %v3013
    %3053 = vmatmul.bf16.gmra.mxu0 %v3030
    %v3054 = vpop.f32.mrf.mxu0
    %v3055 = vadd.f32 %v3042, %v3054
    %v3056 = vpop.f32.mrf.mxu0
    %3057 = vdwg.mxu0
    %3058 = vmatpush.msra.mxu0 0.0
    %3059 = vmatpush.msra.mxu0 0.0
    %3060 = vmatpush.msra.mxu0 0.0
    %3061 = vmatpush.msra.mxu0 0.0
    %3062 = vmatpush.msra.mxu0 0.0
    %3063 = vmatpush.msra.mxu0 0.0
    %3064 = vmatpush.msra.mxu0 0.0
    %3065 = vmatpush.msra.mxu0 0.0
    %3066 = vmatpush.msra.mxu0 0.0
    %3067 = vmatpush.msra.mxu0 0.0
    %3068 = vmatpush.msra.mxu0 0.0
    %3069 = vmatpush.msra.mxu0 0.0
    %3070 = vmatpush.msra.mxu0 0.0
    %3071 = vmatpush.msra.mxu0 0.0
    %3072 = vmatpush.msra.mxu0 0.0
    %3073 = vmatpush.msra.mxu0 %v3055
    %3074 = vmatmul.f32.gmra.mxu0 %v2456
    %v3075 = vpop.f32.mrf.mxu0
    %v3076 = vadd.f32 0.0, %v3075
    %3077 = vdwg.mxu0
    %v3079 = vsel %vm782, %v3076, 0
    %3081 = vmatpush.msra.mxu0 0.0
    %3082 = vmatpush.msra.mxu0 0.0
    %3083 = vmatpush.msra.mxu0 0.0
    %3084 = vmatpush.msra.mxu0 0.0
    %3085 = vmatpush.msra.mxu0 0.0
    %3086 = vmatpush.msra.mxu0 0.0
    %3087 = vmatpush.msra.mxu0 0.0
    %3088 = vmatpush.msra.mxu0 0.0
    %3089 = vmatpush.msra.mxu0 %v2485
    %3090 = vmatpush.msra.mxu0 %v2484
    %3091 = vmatpush.msra.mxu0 %v2483
    %3092 = vmatpush.msra.mxu0 %v2482
    %3093 = vmatpush.msra.mxu0 %v2481
    %3094 = vmatpush.msra.mxu0 %v2480
    %3095 = vmatpush.msra.mxu0 %v2479
    %3096 = vmatpush.msra.mxu0 %v2478
    %3097 = vmatmul.f32.gmra.mxu0 %v3079
    %v3098 = vpop.f32.mrf.mxu0
    %v3099 = vadd.f32 0.0, %v3098
    %3100 = vdwg.mxu0
    %v3101 = vsub.f32 %v3055, %v3099
    %v3102 = vmul.f32 %v3101, %v3101
    %3103 = vmatpush.msra.mxu0 0.0
    %3104 = vmatpush.msra.mxu0 0.0
    %3105 = vmatpush.msra.mxu0 0.0
    %3106 = vmatpush.msra.mxu0 0.0
    %3107 = vmatpush.msra.mxu0 0.0
    %3108 = vmatpush.msra.mxu0 0.0
    %3109 = vmatpush.msra.mxu0 0.0
    %3110 = vmatpush.msra.mxu0 0.0
    %3111 = vmatpush.msra.mxu0 0.0
    %3112 = vmatpush.msra.mxu0 0.0
    %3113 = vmatpush.msra.mxu0 0.0
    %3114 = vmatpush.msra.mxu0 0.0
    %3115 = vmatpush.msra.mxu0 0.0
    %3116 = vmatpush.msra.mxu0 0.0
    %3117 = vmatpush.msra.mxu0 0.0
    %3118 = vmatpush.msra.mxu0 %v3102
    %3119 = vmatmul.f32.gmra.mxu0 %v2456
    %v3120 = vpop.f32.mrf.mxu0
    %v3121 = vadd.f32 0.0, %v3120
    %3122 = vdwg.mxu0
    %v3124 = vsel %vm782, %v3121, 0
    %3126 = vmatpush.msra.mxu0 0.0
    %3127 = vmatpush.msra.mxu0 0.0
    %3128 = vmatpush.msra.mxu0 0.0
    %3129 = vmatpush.msra.mxu0 0.0
    %3130 = vmatpush.msra.mxu0 0.0
    %3131 = vmatpush.msra.mxu0 0.0
    %3132 = vmatpush.msra.mxu0 0.0
    %3133 = vmatpush.msra.mxu0 0.0
    %3134 = vmatpush.msra.mxu0 %v2485
    %3135 = vmatpush.msra.mxu0 %v2484
    %3136 = vmatpush.msra.mxu0 %v2483
    %3137 = vmatpush.msra.mxu0 %v2482
    %3138 = vmatpush.msra.mxu0 %v2481
    %3139 = vmatpush.msra.mxu0 %v2480
    %3140 = vmatpush.msra.mxu0 %v2479
    %3141 = vmatpush.msra.mxu0 %v2478
    %3142 = vmatmul.f32.gmra.mxu0 %v3124
    %v3143 = vpop.f32.mrf.mxu0
    %v3144 = vadd.f32 1e-05, %v3143
    %3145 = vdwg.mxu0
    %v3146 = vrsqrt.pop %v3144
    %v3147 = vmul.f32 %v3146, %v3144
    %v3148 = vmul.f32 %v3147, %v3146
    %v3149 = vmul.f32 0.5, %v3148
    %v3150 = vsub.f32 1.5, %v3149
    %v3151 = vmul.f32 %v3146, %v3150
    %vm3152 = vweird.f32 %v3144
    %vm3153 = vweird.f32 %v3146
    %vm3154 = vmor %vm3152, %vm3153
    %v3155 = vsel %vm3154, %v3146, %v3151
    %v3156 = vmul.f32 %v3101, %v3155
    %v3157 = vld [vmem:[#allocation22] sm:$0x1]
    %v3159 = vperm.slane %v3157, 0
    %v3161 = vmul.f32 %v3156, %v3159
    %v3162 = vld [vmem:[#allocation24] sm:$0x1]
    %v3164 = vperm.slane %v3162, 0
    %v3166 = vadd.f32 %v3161, %v3164
    %v3167 = vadd.f32 %v3166, %v2574
    %v3168 = vmax.f32 %v3167, 0.0
    %v3169 = vpack.c.bf16 %v3168, %v3168
    %v3171 = vunpack.c.l.b16 %v3169
    %v3172 = vpack.c.b16 %v3171, %v3171
    %v3174 = vshrl.u32 %v3172, 16
    %v3176 = vrot.slane %v3174, 3
    %v3178 = vrot.slane %v3174, 7
    %v3179 = vshll.u32 %v3172, 16
    %v3181 = vor.u32 %v3178, %v3179
    %v3183 = vsel %vm1678, %v3176, %v3181
    %v3184 = vunpack.c.l.bf16 %v3183
    %v3185 = vmul.f32 %v3184, %v2901
    %v3186 = vpack.c.bf16 %v3185, %v3185
    %v3187 = vrot.slane %v3179, 1
    %v3188 = vor.u32 %v3174, %v3187
    %v3190 = vrot.slane %v3179, 5
    %v3192 = vsel %vm2911, %v3188, %v3190
    %v3193 = vunpack.c.l.bf16 %v3192
    %v3194 = vmul.f32 %v3193, %v2924
    %v3195 = vpack.c.bf16 %v3194, %v3194
    %3196 = vrot.lane.b32.xlu0 %v3172, 64
    %v3197 = vpop.permute.xlu0 %3196
    %v3200 = vsel %vm782, %v3186, %v3197
    %v3202 = vld [vmem:[#allocation27] sm:$0xff]
    %v3203 = vld [vmem:[#allocation27 + $0x8] sm:$0xff]
    %v3204 = vld [vmem:[#allocation27 + $0x10] sm:$0xff]
    %v3205 = vld [vmem:[#allocation27 + $0x18] sm:$0xff]
    %v3206 = vld [vmem:[#allocation27 + $0x20] sm:$0xff]
    %v3207 = vld [vmem:[#allocation27 + $0x28] sm:$0xff]
    %v3208 = vld [vmem:[#allocation27 + $0x30] sm:$0xff]
    %v3209 = vld [vmem:[#allocation27 + $0x38] sm:$0xff]
    %v3210 = vld [vmem:[#allocation27 + $0x40] sm:$0xff]
    %v3211 = vld [vmem:[#allocation27 + $0x48] sm:$0xff]
    %v3212 = vld [vmem:[#allocation27 + $0x50] sm:$0xff]
    %v3213 = vld [vmem:[#allocation27 + $0x58] sm:$0xff]
    %v3214 = vld [vmem:[#allocation27 + $0x60] sm:$0xff]
    %v3215 = vld [vmem:[#allocation27 + $0x68] sm:$0xff]
    %v3216 = vld [vmem:[#allocation27 + $0x70] sm:$0xff]
    %v3217 = vld [vmem:[#allocation27 + $0x78] sm:$0xff]
    %v3218 = vld [vmem:[#allocation27 + $0x80] sm:$0xff]
    %v3219 = vld [vmem:[#allocation27 + $0x88] sm:$0xff]
    %v3220 = vld [vmem:[#allocation27 + $0x90] sm:$0xff]
    %v3221 = vld [vmem:[#allocation27 + $0x98] sm:$0xff]
    %v3222 = vld [vmem:[#allocation27 + $0xa0] sm:$0xff]
    %v3223 = vld [vmem:[#allocation27 + $0xa8] sm:$0xff]
    %v3224 = vld [vmem:[#allocation27 + $0xb0] sm:$0xff]
    %v3225 = vld [vmem:[#allocation27 + $0xb8] sm:$0xff]
    %v3226 = vld [vmem:[#allocation27 + $0xc0] sm:$0xff]
    %v3227 = vld [vmem:[#allocation27 + $0xc8] sm:$0xff]
    %v3228 = vld [vmem:[#allocation27 + $0xd0] sm:$0xff]
    %v3229 = vld [vmem:[#allocation27 + $0xd8] sm:$0xff]
    %v3230 = vld [vmem:[#allocation27 + $0xe0] sm:$0xff]
    %v3231 = vld [vmem:[#allocation27 + $0xe8] sm:$0xff]
    %v3232 = vld [vmem:[#allocation27 + $0xf0] sm:$0xff]
    %v3233 = vld [vmem:[#allocation27 + $0xf8] sm:$0xff]
    %v3234 = vld [vmem:[#allocation27 + $0x100] sm:$0xff]
    %v3235 = vld [vmem:[#allocation27 + $0x108] sm:$0xff]
    %v3236 = vld [vmem:[#allocation27 + $0x110] sm:$0xff]
    %v3237 = vld [vmem:[#allocation27 + $0x118] sm:$0xff]
    %v3238 = vld [vmem:[#allocation27 + $0x120] sm:$0xff]
    %v3239 = vld [vmem:[#allocation27 + $0x128] sm:$0xff]
    %v3240 = vld [vmem:[#allocation27 + $0x130] sm:$0xff]
    %v3241 = vld [vmem:[#allocation27 + $0x138] sm:$0xff]
    %v3242 = vld [vmem:[#allocation27 + $0x140] sm:$0xff]
    %v3243 = vld [vmem:[#allocation27 + $0x148] sm:$0xff]
    %v3244 = vld [vmem:[#allocation27 + $0x150] sm:$0xff]
    %v3245 = vld [vmem:[#allocation27 + $0x158] sm:$0xff]
    %v3246 = vld [vmem:[#allocation27 + $0x160] sm:$0xff]
    %v3247 = vld [vmem:[#allocation27 + $0x168] sm:$0xff]
    %v3248 = vld [vmem:[#allocation27 + $0x170] sm:$0xff]
    %v3249 = vld [vmem:[#allocation27 + $0x178] sm:$0xff]
    %v3298 = vunpack.c.l.b16 %v3202
    %v3299 = vunpack.c.h.b16 %v3202
    %v3300 = vunpack.c.l.b16 %v3203
    %v3301 = vunpack.c.h.b16 %v3203
    %v3302 = vunpack.c.l.b16 %v3204
    %v3303 = vunpack.c.h.b16 %v3204
    %v3304 = vunpack.c.l.b16 %v3205
    %v3305 = vunpack.c.h.b16 %v3205
    %v3306 = vunpack.c.l.b16 %v3206
    %v3307 = vunpack.c.h.b16 %v3206
    %v3308 = vunpack.c.l.b16 %v3207
    %v3309 = vunpack.c.h.b16 %v3207
    %v3310 = vunpack.c.l.b16 %v3208
    %v3311 = vunpack.c.h.b16 %v3208
    %v3312 = vunpack.c.l.b16 %v3209
    %v3313 = vunpack.c.h.b16 %v3209
    %v3314 = vunpack.c.l.b16 %v3210
    %v3315 = vunpack.c.h.b16 %v3210
    %v3316 = vunpack.c.l.b16 %v3211
    %v3317 = vunpack.c.h.b16 %v3211
    %v3318 = vunpack.c.l.b16 %v3212
    %v3319 = vunpack.c.h.b16 %v3212
    %v3320 = vunpack.c.l.b16 %v3213
    %v3321 = vunpack.c.h.b16 %v3213
    %v3322 = vunpack.c.l.b16 %v3214
    %v3323 = vunpack.c.h.b16 %v3214
    %v3324 = vunpack.c.l.b16 %v3215
    %v3325 = vunpack.c.h.b16 %v3215
    %v3326 = vunpack.c.l.b16 %v3216
    %v3327 = vunpack.c.h.b16 %v3216
    %v3328 = vunpack.c.l.b16 %v3217
    %v3329 = vunpack.c.h.b16 %v3217
    %v3330 = vunpack.c.l.b16 %v3218
    %v3331 = vunpack.c.h.b16 %v3218
    %v3332 = vunpack.c.l.b16 %v3219
    %v3333 = vunpack.c.h.b16 %v3219
    %v3334 = vunpack.c.l.b16 %v3220
    %v3335 = vunpack.c.h.b16 %v3220
    %v3336 = vunpack.c.l.b16 %v3221
    %v3337 = vunpack.c.h.b16 %v3221
    %v3338 = vunpack.c.l.b16 %v3222
    %v3339 = vunpack.c.h.b16 %v3222
    %v3340 = vunpack.c.l.b16 %v3223
    %v3341 = vunpack.c.h.b16 %v3223
    %v3342 = vunpack.c.l.b16 %v3224
    %v3343 = vunpack.c.h.b16 %v3224
    %v3344 = vunpack.c.l.b16 %v3225
    %v3345 = vunpack.c.h.b16 %v3225
    %v3346 = vunpack.c.l.b16 %v3226
    %v3347 = vunpack.c.h.b16 %v3226
    %v3348 = vunpack.c.l.b16 %v3227
    %v3349 = vunpack.c.h.b16 %v3227
    %v3350 = vunpack.c.l.b16 %v3228
    %v3351 = vunpack.c.h.b16 %v3228
    %v3352 = vunpack.c.l.b16 %v3229
    %v3353 = vunpack.c.h.b16 %v3229
    %v3354 = vunpack.c.l.b16 %v3230
    %v3355 = vunpack.c.h.b16 %v3230
    %v3356 = vunpack.c.l.b16 %v3231
    %v3357 = vunpack.c.h.b16 %v3231
    %v3358 = vunpack.c.l.b16 %v3232
    %v3359 = vunpack.c.h.b16 %v3232
    %v3360 = vunpack.c.l.b16 %v3233
    %v3361 = vunpack.c.h.b16 %v3233
    %v3362 = vunpack.c.l.b16 %v3234
    %v3363 = vunpack.c.h.b16 %v3234
    %v3364 = vunpack.c.l.b16 %v3235
    %v3365 = vunpack.c.h.b16 %v3235
    %v3366 = vunpack.c.l.b16 %v3236
    %v3367 = vunpack.c.h.b16 %v3236
    %v3368 = vunpack.c.l.b16 %v3237
    %v3369 = vunpack.c.h.b16 %v3237
    %v3370 = vunpack.c.l.b16 %v3238
    %v3371 = vunpack.c.h.b16 %v3238
    %v3372 = vunpack.c.l.b16 %v3239
    %v3373 = vunpack.c.h.b16 %v3239
    %v3374 = vunpack.c.l.b16 %v3240
    %v3375 = vunpack.c.h.b16 %v3240
    %v3376 = vunpack.c.l.b16 %v3241
    %v3377 = vunpack.c.h.b16 %v3241
    %v3378 = vunpack.c.l.b16 %v3242
    %v3379 = vunpack.c.h.b16 %v3242
    %v3380 = vunpack.c.l.b16 %v3243
    %v3381 = vunpack.c.h.b16 %v3243
    %v3382 = vunpack.c.l.b16 %v3244
    %v3383 = vunpack.c.h.b16 %v3244
    %v3384 = vunpack.c.l.b16 %v3245
    %v3385 = vunpack.c.h.b16 %v3245
    %v3386 = vunpack.c.l.b16 %v3246
    %v3387 = vunpack.c.h.b16 %v3246
    %v3388 = vunpack.c.l.b16 %v3247
    %v3389 = vunpack.c.h.b16 %v3247
    %v3390 = vunpack.c.l.b16 %v3248
    %v3391 = vunpack.c.h.b16 %v3248
    %v3392 = vunpack.c.l.b16 %v3249
    %v3393 = vunpack.c.h.b16 %v3249
    %v3394 = vpack.c.b16 %v3302, %v3298
    %v3395 = vpack.c.b16 %v3303, %v3299
    %v3396 = vpack.c.b16 %v3304, %v3300
    %v3397 = vpack.c.b16 %v3305, %v3301
    %v3398 = vpack.c.b16 %v3310, %v3306
    %v3399 = vpack.c.b16 %v3311, %v3307
    %v3400 = vpack.c.b16 %v3312, %v3308
    %v3401 = vpack.c.b16 %v3313, %v3309
    %v3402 = vpack.c.b16 %v3318, %v3314
    %v3403 = vpack.c.b16 %v3319, %v3315
    %v3404 = vpack.c.b16 %v3320, %v3316
    %v3405 = vpack.c.b16 %v3321, %v3317
    %v3406 = vpack.c.b16 %v3326, %v3322
    %v3407 = vpack.c.b16 %v3327, %v3323
    %v3408 = vpack.c.b16 %v3328, %v3324
    %v3409 = vpack.c.b16 %v3329, %v3325
    %v3410 = vpack.c.b16 %v3334, %v3330
    %v3411 = vpack.c.b16 %v3335, %v3331
    %v3412 = vpack.c.b16 %v3336, %v3332
    %v3413 = vpack.c.b16 %v3337, %v3333
    %v3414 = vpack.c.b16 %v3342, %v3338
    %v3415 = vpack.c.b16 %v3343, %v3339
    %v3416 = vpack.c.b16 %v3344, %v3340
    %v3417 = vpack.c.b16 %v3345, %v3341
    %v3418 = vpack.c.b16 %v3350, %v3346
    %v3419 = vpack.c.b16 %v3351, %v3347
    %v3420 = vpack.c.b16 %v3352, %v3348
    %v3421 = vpack.c.b16 %v3353, %v3349
    %v3422 = vpack.c.b16 %v3358, %v3354
    %v3423 = vpack.c.b16 %v3359, %v3355
    %v3424 = vpack.c.b16 %v3360, %v3356
    %v3425 = vpack.c.b16 %v3361, %v3357
    %v3426 = vpack.c.b16 %v3366, %v3362
    %v3427 = vpack.c.b16 %v3367, %v3363
    %v3428 = vpack.c.b16 %v3368, %v3364
    %v3429 = vpack.c.b16 %v3369, %v3365
    %v3430 = vpack.c.b16 %v3374, %v3370
    %v3431 = vpack.c.b16 %v3375, %v3371
    %v3432 = vpack.c.b16 %v3376, %v3372
    %v3433 = vpack.c.b16 %v3377, %v3373
    %v3434 = vpack.c.b16 %v3382, %v3378
    %v3435 = vpack.c.b16 %v3383, %v3379
    %v3436 = vpack.c.b16 %v3384, %v3380
    %v3437 = vpack.c.b16 %v3385, %v3381
    %v3438 = vpack.c.b16 %v3390, %v3386
    %v3439 = vpack.c.b16 %v3391, %v3387
    %v3440 = vpack.c.b16 %v3392, %v3388
    %v3441 = vpack.c.b16 %v3393, %v3389
    %v3491 = vsel %vm782, %v3195, 0
    %3493 = vmatpush.bf16.msra.mxu0 %v3422
    %3494 = vmatpush.bf16.msra.mxu0 %v3418
    %3495 = vmatpush.bf16.msra.mxu0 %v3414
    %3496 = vmatpush.bf16.msra.mxu0 %v3410
    %3497 = vmatpush.bf16.msra.mxu0 %v3406
    %3498 = vmatpush.bf16.msra.mxu0 %v3402
    %3499 = vmatpush.bf16.msra.mxu0 %v3398
    %3500 = vmatpush.bf16.msra.mxu0 %v3394
    %3501 = vmatmul.bf16.gmra.mxu0 %v3200
    %v3502 = vpop.f32.mrf.mxu0
    %v3503 = vadd.f32 0.0, %v3502
    %v3504 = vpop.f32.mrf.mxu0
    %3505 = vdwg.mxu0
    %3506 = vmatpush.bf16.msra.mxu0 0
    %3507 = vmatpush.bf16.msra.mxu0 0
    %3508 = vmatpush.bf16.msra.mxu0 0
    %3509 = vmatpush.bf16.msra.mxu0 0
    %3510 = vmatpush.bf16.msra.mxu0 %v3438
    %3511 = vmatpush.bf16.msra.mxu0 %v3434
    %3512 = vmatpush.bf16.msra.mxu0 %v3430
    %3513 = vmatpush.bf16.msra.mxu0 %v3426
    %3514 = vmatmul.bf16.gmra.mxu0 %v3491
    %v3515 = vpop.f32.mrf.mxu0
    %v3516 = vadd.f32 %v3503, %v3515
    %v3517 = vpop.f32.mrf.mxu0
    %3518 = vdwg.mxu0
    %3519 = vmatpush.bf16.msra.mxu0 %v3423
    %3520 = vmatpush.bf16.msra.mxu0 %v3419
    %3521 = vmatpush.bf16.msra.mxu0 %v3415
    %3522 = vmatpush.bf16.msra.mxu0 %v3411
    %3523 = vmatpush.bf16.msra.mxu0 %v3407
    %3524 = vmatpush.bf16.msra.mxu0 %v3403
    %3525 = vmatpush.bf16.msra.mxu0 %v3399
    %3526 = vmatpush.bf16.msra.mxu0 %v3395
    %3527 = vmatmul.bf16.gmra.mxu0 %v3200
    %v3528 = vpop.f32.mrf.mxu0
    %v3529 = vadd.f32 0.0, %v3528
    %v3530 = vpop.f32.mrf.mxu0
    %3531 = vdwg.mxu0
    %3532 = vmatpush.bf16.msra.mxu0 0
    %3533 = vmatpush.bf16.msra.mxu0 0
    %3534 = vmatpush.bf16.msra.mxu0 0
    %3535 = vmatpush.bf16.msra.mxu0 0
    %3536 = vmatpush.bf16.msra.mxu0 %v3439
    %3537 = vmatpush.bf16.msra.mxu0 %v3435
    %3538 = vmatpush.bf16.msra.mxu0 %v3431
    %3539 = vmatpush.bf16.msra.mxu0 %v3427
    %3540 = vmatmul.bf16.gmra.mxu0 %v3491
    %v3541 = vpop.f32.mrf.mxu0
    %v3542 = vadd.f32 %v3529, %v3541
    %v3543 = vpop.f32.mrf.mxu0
    %3544 = vdwg.mxu0
    %3545 = vmatpush.bf16.msra.mxu0 %v3424
    %3546 = vmatpush.bf16.msra.mxu0 %v3420
    %3547 = vmatpush.bf16.msra.mxu0 %v3416
    %3548 = vmatpush.bf16.msra.mxu0 %v3412
    %3549 = vmatpush.bf16.msra.mxu0 %v3408
    %3550 = vmatpush.bf16.msra.mxu0 %v3404
    %3551 = vmatpush.bf16.msra.mxu0 %v3400
    %3552 = vmatpush.bf16.msra.mxu0 %v3396
    %3553 = vmatmul.bf16.gmra.mxu0 %v3200
    %v3554 = vpop.f32.mrf.mxu0
    %v3555 = vadd.f32 0.0, %v3554
    %v3556 = vpop.f32.mrf.mxu0
    %3557 = vdwg.mxu0
    %3558 = vmatpush.bf16.msra.mxu0 0
    %3559 = vmatpush.bf16.msra.mxu0 0
    %3560 = vmatpush.bf16.msra.mxu0 0
    %3561 = vmatpush.bf16.msra.mxu0 0
    %3562 = vmatpush.bf16.msra.mxu0 %v3440
    %3563 = vmatpush.bf16.msra.mxu0 %v3436
    %3564 = vmatpush.bf16.msra.mxu0 %v3432
    %3565 = vmatpush.bf16.msra.mxu0 %v3428
    %3566 = vmatmul.bf16.gmra.mxu0 %v3491
    %v3567 = vpop.f32.mrf.mxu0
    %v3568 = vadd.f32 %v3555, %v3567
    %v3569 = vpop.f32.mrf.mxu0
    %3570 = vdwg.mxu0
    %3571 = vmatpush.bf16.msra.mxu0 %v3425
    %3572 = vmatpush.bf16.msra.mxu0 %v3421
    %3573 = vmatpush.bf16.msra.mxu0 %v3417
    %3574 = vmatpush.bf16.msra.mxu0 %v3413
    %3575 = vmatpush.bf16.msra.mxu0 %v3409
    %3576 = vmatpush.bf16.msra.mxu0 %v3405
    %3577 = vmatpush.bf16.msra.mxu0 %v3401
    %3578 = vmatpush.bf16.msra.mxu0 %v3397
    %3579 = vmatmul.bf16.gmra.mxu0 %v3200
    %v3580 = vpop.f32.mrf.mxu0
    %v3581 = vadd.f32 0.0, %v3580
    %v3582 = vpop.f32.mrf.mxu0
    %3583 = vdwg.mxu0
    %3584 = vmatpush.bf16.msra.mxu0 0
    %3585 = vmatpush.bf16.msra.mxu0 0
    %3586 = vmatpush.bf16.msra.mxu0 0
    %3587 = vmatpush.bf16.msra.mxu0 0
    %3588 = vmatpush.bf16.msra.mxu0 %v3441
    %3589 = vmatpush.bf16.msra.mxu0 %v3437
    %3590 = vmatpush.bf16.msra.mxu0 %v3433
    %3591 = vmatpush.bf16.msra.mxu0 %v3429
    %3592 = vmatmul.bf16.gmra.mxu0 %v3491
    %v3593 = vpop.f32.mrf.mxu0
    %v3594 = vadd.f32 %v3581, %v3593
    %v3595 = vpop.f32.mrf.mxu0
    %3596 = vdwg.mxu0
    %3597 = vmatpush.msra.mxu0 0.0
    %3598 = vmatpush.msra.mxu0 0.0
    %3599 = vmatpush.msra.mxu0 0.0
    %3600 = vmatpush.msra.mxu0 0.0
    %3601 = vmatpush.msra.mxu0 0.0
    %3602 = vmatpush.msra.mxu0 0.0
    %3603 = vmatpush.msra.mxu0 0.0
    %3604 = vmatpush.msra.mxu0 0.0
    %3605 = vmatpush.msra.mxu0 0.0
    %3606 = vmatpush.msra.mxu0 0.0
    %3607 = vmatpush.msra.mxu0 0.0
    %3608 = vmatpush.msra.mxu0 0.0
    %3609 = vmatpush.msra.mxu0 0.0
    %3610 = vmatpush.msra.mxu0 0.0
    %3611 = vmatpush.msra.mxu0 0.0
    %3612 = vmatpush.msra.mxu0 %v3516
    %3613 = vmatmul.f32.gmra.mxu0 %v2456
    %v3614 = vpop.f32.mrf.mxu0
    %v3615 = vadd.f32 0.0, %v3614
    %3616 = vdwg.mxu0
    %3617 = vmatpush.msra.mxu0 0.0
    %3618 = vmatpush.msra.mxu0 0.0
    %3619 = vmatpush.msra.mxu0 0.0
    %3620 = vmatpush.msra.mxu0 0.0
    %3621 = vmatpush.msra.mxu0 0.0
    %3622 = vmatpush.msra.mxu0 0.0
    %3623 = vmatpush.msra.mxu0 0.0
    %3624 = vmatpush.msra.mxu0 0.0
    %3625 = vmatpush.msra.mxu0 0.0
    %3626 = vmatpush.msra.mxu0 0.0
    %3627 = vmatpush.msra.mxu0 0.0
    %3628 = vmatpush.msra.mxu0 0.0
    %3629 = vmatpush.msra.mxu0 0.0
    %3630 = vmatpush.msra.mxu0 0.0
    %3631 = vmatpush.msra.mxu0 0.0
    %3632 = vmatpush.msra.mxu0 %v3542
    %3633 = vmatmul.f32.gmra.mxu0 %v2456
    %v3634 = vpop.f32.mrf.mxu0
    %v3635 = vadd.f32 0.0, %v3634
    %3636 = vdwg.mxu0
    %3637 = vmatpush.msra.mxu0 0.0
    %3638 = vmatpush.msra.mxu0 0.0
    %3639 = vmatpush.msra.mxu0 0.0
    %3640 = vmatpush.msra.mxu0 0.0
    %3641 = vmatpush.msra.mxu0 0.0
    %3642 = vmatpush.msra.mxu0 0.0
    %3643 = vmatpush.msra.mxu0 0.0
    %3644 = vmatpush.msra.mxu0 0.0
    %3645 = vmatpush.msra.mxu0 0.0
    %3646 = vmatpush.msra.mxu0 0.0
    %3647 = vmatpush.msra.mxu0 0.0
    %3648 = vmatpush.msra.mxu0 0.0
    %3649 = vmatpush.msra.mxu0 0.0
    %3650 = vmatpush.msra.mxu0 0.0
    %3651 = vmatpush.msra.mxu0 0.0
    %3652 = vmatpush.msra.mxu0 %v3568
    %3653 = vmatmul.f32.gmra.mxu0 %v2456
    %v3654 = vpop.f32.mrf.mxu0
    %v3655 = vadd.f32 0.0, %v3654
    %3656 = vdwg.mxu0
    %3657 = vmatpush.msra.mxu0 0.0
    %3658 = vmatpush.msra.mxu0 0.0
    %3659 = vmatpush.msra.mxu0 0.0
    %3660 = vmatpush.msra.mxu0 0.0
    %3661 = vmatpush.msra.mxu0 0.0
    %3662 = vmatpush.msra.mxu0 0.0
    %3663 = vmatpush.msra.mxu0 0.0
    %3664 = vmatpush.msra.mxu0 0.0
    %3665 = vmatpush.msra.mxu0 0.0
    %3666 = vmatpush.msra.mxu0 0.0
    %3667 = vmatpush.msra.mxu0 0.0
    %3668 = vmatpush.msra.mxu0 0.0
    %3669 = vmatpush.msra.mxu0 0.0
    %3670 = vmatpush.msra.mxu0 0.0
    %3671 = vmatpush.msra.mxu0 0.0
    %3672 = vmatpush.msra.mxu0 %v3594
    %3673 = vmatmul.f32.gmra.mxu0 %v2456
    %v3674 = vpop.f32.mrf.mxu0
    %v3675 = vadd.f32 0.0, %v3674
    %3676 = vdwg.mxu0
    %v3677 = vadd.f32 %v3615, %v3635
    %v3678 = vadd.f32 %v3677, %v3655
    %v3679 = vadd.f32 %v3678, %v3675
    %3680 = vadd.xlane.f32.xlu0 %v3679
    %v3681 = vpop.xlane.xlu0 %3680
    %v3682 = vmul.f32 %v3681, 0.00048828125
    %v3683 = vsub.f32 %v3516, %v3682
    %v3684 = vsub.f32 %v3542, %v3682
    %v3685 = vsub.f32 %v3568, %v3682
    %v3686 = vsub.f32 %v3594, %v3682
    %v3687 = vmul.f32 %v3683, %v3683
    %v3688 = vmul.f32 %v3684, %v3684
    %v3689 = vmul.f32 %v3685, %v3685
    %v3690 = vmul.f32 %v3686, %v3686
    %3691 = vmatpush.msra.mxu0 0.0
    %3692 = vmatpush.msra.mxu0 0.0
    %3693 = vmatpush.msra.mxu0 0.0
    %3694 = vmatpush.msra.mxu0 0.0
    %3695 = vmatpush.msra.mxu0 0.0
    %3696 = vmatpush.msra.mxu0 0.0
    %3697 = vmatpush.msra.mxu0 0.0
    %3698 = vmatpush.msra.mxu0 0.0
    %3699 = vmatpush.msra.mxu0 0.0
    %3700 = vmatpush.msra.mxu0 0.0
    %3701 = vmatpush.msra.mxu0 0.0
    %3702 = vmatpush.msra.mxu0 0.0
    %3703 = vmatpush.msra.mxu0 0.0
    %3704 = vmatpush.msra.mxu0 0.0
    %3705 = vmatpush.msra.mxu0 0.0
    %3706 = vmatpush.msra.mxu0 %v3687
    %3707 = vmatmul.f32.gmra.mxu0 %v2456
    %v3708 = vpop.f32.mrf.mxu0
    %v3709 = vadd.f32 0.0, %v3708
    %3710 = vdwg.mxu0
    %3711 = vmatpush.msra.mxu0 0.0
    %3712 = vmatpush.msra.mxu0 0.0
    %3713 = vmatpush.msra.mxu0 0.0
    %3714 = vmatpush.msra.mxu0 0.0
    %3715 = vmatpush.msra.mxu0 0.0
    %3716 = vmatpush.msra.mxu0 0.0
    %3717 = vmatpush.msra.mxu0 0.0
    %3718 = vmatpush.msra.mxu0 0.0
    %3719 = vmatpush.msra.mxu0 0.0
    %3720 = vmatpush.msra.mxu0 0.0
    %3721 = vmatpush.msra.mxu0 0.0
    %3722 = vmatpush.msra.mxu0 0.0
    %3723 = vmatpush.msra.mxu0 0.0
    %3724 = vmatpush.msra.mxu0 0.0
    %3725 = vmatpush.msra.mxu0 0.0
    %3726 = vmatpush.msra.mxu0 %v3688
    %3727 = vmatmul.f32.gmra.mxu0 %v2456
    %v3728 = vpop.f32.mrf.mxu0
    %v3729 = vadd.f32 0.0, %v3728
    %3730 = vdwg.mxu0
    %3731 = vmatpush.msra.mxu0 0.0
    %3732 = vmatpush.msra.mxu0 0.0
    %3733 = vmatpush.msra.mxu0 0.0
    %3734 = vmatpush.msra.mxu0 0.0
    %3735 = vmatpush.msra.mxu0 0.0
    %3736 = vmatpush.msra.mxu0 0.0
    %3737 = vmatpush.msra.mxu0 0.0
    %3738 = vmatpush.msra.mxu0 0.0
    %3739 = vmatpush.msra.mxu0 0.0
    %3740 = vmatpush.msra.mxu0 0.0
    %3741 = vmatpush.msra.mxu0 0.0
    %3742 = vmatpush.msra.mxu0 0.0
    %3743 = vmatpush.msra.mxu0 0.0
    %3744 = vmatpush.msra.mxu0 0.0
    %3745 = vmatpush.msra.mxu0 0.0
    %3746 = vmatpush.msra.mxu0 %v3689
    %3747 = vmatmul.f32.gmra.mxu0 %v2456
    %v3748 = vpop.f32.mrf.mxu0
    %v3749 = vadd.f32 0.0, %v3748
    %3750 = vdwg.mxu0
    %3751 = vmatpush.msra.mxu0 0.0
    %3752 = vmatpush.msra.mxu0 0.0
    %3753 = vmatpush.msra.mxu0 0.0
    %3754 = vmatpush.msra.mxu0 0.0
    %3755 = vmatpush.msra.mxu0 0.0
    %3756 = vmatpush.msra.mxu0 0.0
    %3757 = vmatpush.msra.mxu0 0.0
    %3758 = vmatpush.msra.mxu0 0.0
    %3759 = vmatpush.msra.mxu0 0.0
    %3760 = vmatpush.msra.mxu0 0.0
    %3761 = vmatpush.msra.mxu0 0.0
    %3762 = vmatpush.msra.mxu0 0.0
    %3763 = vmatpush.msra.mxu0 0.0
    %3764 = vmatpush.msra.mxu0 0.0
    %3765 = vmatpush.msra.mxu0 0.0
    %3766 = vmatpush.msra.mxu0 %v3690
    %3767 = vmatmul.f32.gmra.mxu0 %v2456
    %v3768 = vpop.f32.mrf.mxu0
    %v3769 = vadd.f32 0.0, %v3768
    %3770 = vdwg.mxu0
    %v3771 = vadd.f32 %v3709, %v3729
    %v3772 = vadd.f32 %v3771, %v3749
    %v3773 = vadd.f32 %v3772, %v3769
    %3774 = vadd.xlane.f32.xlu0 %v3773
    %v3775 = vpop.xlane.xlu0 %3774
    %v3776 = vmul.f32 %v3775, 0.00048828125
    %v3777 = vadd.f32 %v3776, 1e-05
    %v3778 = vrsqrt.pop %v3777
    %v3779 = vmul.f32 %v3778, %v3777
    %v3780 = vmul.f32 %v3779, %v3778
    %v3781 = vmul.f32 0.5, %v3780
    %v3782 = vsub.f32 1.5, %v3781
    %v3783 = vmul.f32 %v3778, %v3782
    %vm3784 = vweird.f32 %v3777
    %vm3785 = vweird.f32 %v3778
    %vm3786 = vmor %vm3784, %vm3785
    %v3787 = vsel %vm3786, %v3778, %v3783
    %v3788 = vmul.f32 %v3683, %v3787
    %v3789 = vmul.f32 %v3684, %v3787
    %v3790 = vmul.f32 %v3685, %v3787
    %v3791 = vmul.f32 %v3686, %v3787
    %v3792 = vld [vmem:[%s71] sm:$0xf]
    %v3794 = vperm.slane %v3792, 0
    %v3795 = vperm.slane %v3792, 1
    %v3796 = vperm.slane %v3792, 2
    %v3797 = vperm.slane %v3792, 3
    %v3802 = vmul.f32 %v3788, %v3794
    %v3803 = vmul.f32 %v3789, %v3795
    %v3804 = vmul.f32 %v3790, %v3796
    %v3805 = vmul.f32 %v3791, %v3797
    %v3806 = vld [vmem:[%s73] sm:$0xf]
    %v3808 = vperm.slane %v3806, 0
    %v3809 = vperm.slane %v3806, 1
    %v3810 = vperm.slane %v3806, 2
    %v3811 = vperm.slane %v3806, 3
    %v3816 = vadd.f32 %v3802, %v3808
    %v3817 = vadd.f32 %v3803, %v3809
    %v3818 = vadd.f32 %v3804, %v3810
    %v3819 = vadd.f32 %v3805, %v3811
    %v3820 = vmax.f32 %v3816, 0.0
    %v3821 = vmax.f32 %v3817, 0.0
    %v3822 = vmax.f32 %v3818, 0.0
    %v3823 = vmax.f32 %v3819, 0.0
    %3824 = vst [vmem:[%s75] sm:$0xff] %v3820
    %3825 = vst [vmem:[%s75 + $0x8] sm:$0xff] %v3821
    %3826 = vst [vmem:[%s75 + $0x10] sm:$0xff] %v3822
    %3827 = vst [vmem:[%s75 + $0x18] sm:$0xff] %v3823
    // Predicated region
    $region218: #{resnet_encoder_forward.1} parent=1 // pred_check
      _
    $region219: #{resnet_encoder_forward.1} parent=1 // pred_check_branch
      %3829 = sbr.rel (0) target = $region221
    $region220: #{resnet_encoder_forward.1} parent=1 // pred_region
      _
    $region221: #{resnet_encoder_forward.1} parent=1 // pred_fallthru
      _
    // Predicated region
    $region222: #{resnet_encoder_forward.1} parent=1 // pred_check
      _
    $region223: #{resnet_encoder_forward.1} parent=1 // pred_check_branch
      %3831 = sbr.rel (0) target = $region225
    $region224: #{resnet_encoder_forward.1} parent=1 // pred_region
      _
    $region225: #{resnet_encoder_forward.1} parent=1 // pred_fallthru
      _
    %3832 = vsyncpa [#allocation3], 1
    %3833 = vsyncpa [#allocation5], 1
    %3834 = vsyncpa [#allocation8], 1
    %3835 = vsyncpa [#allocation11], 1
    %3836 = vsyncpa [#allocation14], 1
    %3837 = vsyncpa [#allocation17], 1
    %3838 = vsyncpa [#allocation20], 1
    %3839 = vsyncpa [#allocation23], 1
    %3840 = vsyncpa [#allocation26], 1

</llo_original>
